<compile_context>
chip_gen: v7x
topology: tpu7x:2x2x1
jax: 0.10.0
libtpu: 0.0.40
codegen_flags: <defaults>
</compile_context>

<pallas_src>
import jax
import jax.numpy as jnp
from jax.experimental import pallas as pl
from jax.experimental.pallas import tpu as pltpu

# ----- small synthetic model config (lane-dense, BERT-shaped) ----------------
BATCH = 2
SEQ = 16
TOKENS = BATCH * SEQ          # 32 rows -> sublane-aligned activation slab
HIDDEN = 128                  # multiple of 128 -> lane-dense vregs & stores
NUM_HEADS = 4
HEAD_DIM = HIDDEN // NUM_HEADS
FFN = 4 * HIDDEN              # 512, BERT-style 4x expansion
NUM_LAYERS = 2
VOCAB = 128
EPS = 1e-12                   # BERT LayerNorm eps
NEG_INF = -1e9


def _layer_norm(x, gamma, beta):
    """One-pass LayerNorm statistics: var = E[x^2] - mean^2 (halves XLU passes)."""
    mean = jnp.mean(x, axis=-1, keepdims=True)
    mean_sq = jnp.mean(x * x, axis=-1, keepdims=True)
    var = jnp.maximum(mean_sq - mean * mean, 0.0)
    return (x - mean) * jax.lax.rsqrt(var + EPS) * gamma + beta


def encoder_kernel(ids_ref, pos_type_ref, embg_ref, embb_ref, wemb_ref,
                   hmask_ref, bias_ref,
                   wqkv_ref, bqkv_ref, wo_ref, bo_ref, ln1g_ref, ln1b_ref,
                   w1_ref, b1_ref, w2_ref, b2_ref, ln2g_ref, ln2b_ref,
                   cls_ref, h_ref):
    """Whole encoder: grid axis = layer; activation slab resident in VMEM scratch."""
    layer = pl.program_id(0)

    # --- fused embedding: one-hot gather (MXU) + pos/type add + LayerNorm ----
    @pl.when(layer == 0)
    def _():
        ids = ids_ref[...]                                           # (T, 1) i32
        vocab_iota = jax.lax.broadcasted_iota(jnp.int32, (TOKENS, VOCAB), 1)
        one_hot = (vocab_iota == ids).astype(jnp.float32)            # (T, V)
        emb = jnp.dot(one_hot, wemb_ref[...],
                      preferred_element_type=jnp.float32)            # exact gather
        emb = emb + pos_type_ref[...]
        h_ref[...] = _layer_norm(emb, embg_ref[...], embb_ref[...])

    x = h_ref[...]                                                   # (T, H) f32
    x_bf = x.astype(jnp.bfloat16)

    # --- fused QKV: one lane-dense (T,H)@(H,3H) matmul; Q pre-scaled ---------
    qkv = jnp.dot(x_bf, wqkv_ref[0],
                  preferred_element_type=jnp.float32) + bqkv_ref[0]  # (T, 3H)
    qkv = qkv.astype(jnp.bfloat16)
    q = qkv[:, :HIDDEN]                 # 128-lane-aligned slices
    k = qkv[:, HIDDEN:2 * HIDDEN]
    v = qkv[:, 2 * HIDDEN:]

    # --- attention with heads folded onto sublanes ---------------------------
    # head_mask[r, c] = (r // TOKENS == c // HEAD_DIM): block-diag head selector.
    hmask = hmask_ref[...]                                           # (NH*T, H) f32
    q_tiled = jnp.concatenate([q] * NUM_HEADS, axis=0)               # (NH*T, H)
    qbd = q_tiled * hmask.astype(jnp.bfloat16)
    # scores: row r = (head, query) pair, cols = keys; lane-dense K=128 matmul.
    s = jnp.dot(qbd, k.T, preferred_element_type=jnp.float32)        # (NH*T, T)
    s = s + bias_ref[...]                # padding + cross-batch additive mask
    m = jnp.max(s, axis=-1, keepdims=True)
    p = jnp.exp(s - m)
    p = p * pl.reciprocal(jnp.sum(p, axis=-1, keepdims=True), approx=True)

    # context: (NH*T, T)@(T, H) then keep only each head's own dH columns; the
    # sublane-block sum lands ctx directly in the (T, NH*dH) head-concat layout.
    ctx_full = jnp.dot(p.astype(jnp.bfloat16), v,
                       preferred_element_type=jnp.float32)           # (NH*T, H)
    ctx_full = ctx_full * hmask
    ctx = ctx_full[0:TOKENS]
    for h in range(1, NUM_HEADS):
        ctx = ctx + ctx_full[h * TOKENS:(h + 1) * TOKENS]            # (T, H)

    # output projection: head-concat folded into ONE K=128 matmul.
    attn = jnp.dot(ctx.astype(jnp.bfloat16), wo_ref[0],
                   preferred_element_type=jnp.float32) + bo_ref[0]

    h1 = _layer_norm(x + attn, ln1g_ref[0], ln1b_ref[0])             # f32

    # --- FFN ------------------------------------------------------------------
    ff = jnp.dot(h1.astype(jnp.bfloat16), w1_ref[0],
                 preferred_element_type=jnp.float32) + b1_ref[0]
    # TODO(synk): HF BERT uses exact erf-GELU; tanh approximation used here.
    ff = jax.nn.gelu(ff, approximate=True)
    ff = jnp.dot(ff.astype(jnp.bfloat16), w2_ref[0],
                 preferred_element_type=jnp.float32) + b2_ref[0]
    out = _layer_norm(h1 + ff, ln2g_ref[0], ln2b_ref[0])

    h_ref[...] = out                                                 # slab stays in VMEM

    # --- emit only the CLS rows (row b*SEQ per batch element) at the end -----
    @pl.when(layer == pl.num_programs(0) - 1)
    def _():
        for b in range(BATCH):
            cls_ref[b:b + 1, :] = out[b * SEQ:b * SEQ + 1, :]


def encoder_call(ids2d, bias2, econst, stacked):
    """One pallas_call for embedding + encoder stack + CLS extraction."""
    def const_spec(arr):
        return pl.BlockSpec(arr.shape, lambda l, n=arr.ndim: (0,) * n)

    def layer_spec(arr):
        return pl.BlockSpec((1,) + arr.shape[1:],
                            lambda l, n=arr.ndim: (l,) + (0,) * (n - 1))

    const_inputs = [ids2d, econst["pos_type"], econst["emb_ln_g"],
                    econst["emb_ln_b"], econst["word_emb"],
                    econst["head_mask"], bias2]

    return pl.pallas_call(
        encoder_kernel,
        out_shape=jax.ShapeDtypeStruct((BATCH, HIDDEN), jnp.float32),
        grid_spec=pltpu.PrefetchScalarGridSpec(
            num_scalar_prefetch=0,
            grid=(NUM_LAYERS,),
            in_specs=[const_spec(a) for a in const_inputs]
                     + [layer_spec(w) for w in stacked],
            out_specs=pl.BlockSpec((BATCH, HIDDEN), lambda l: (0, 0)),
            scratch_shapes=[pltpu.VMEM((TOKENS, HIDDEN), jnp.float32)]),
        compiler_params=pltpu.CompilerParams(
            # layer axis carries the resident activation slab -> must stay sequential
            dimension_semantics=("arbitrary",)),
    )(*const_inputs, *stacked)


def init_params(key):
    """Deterministic synthetic BERT-style parameters (standard nn.Linear layouts)."""
    def normal(k, shape):
        return 0.02 * jax.random.normal(k, shape, dtype=jnp.float32)

    k_emb, k_layers = jax.random.split(key)
    ek = jax.random.split(k_emb, 3)
    word_emb = normal(ek[0], (VOCAB, HIDDEN))
    pos_emb = normal(ek[1], (SEQ, HIDDEN))
    type_emb = normal(ek[2], (2, HIDDEN))
    emb_ln_g = jnp.ones((HIDDEN,), jnp.float32)
    emb_ln_b = jnp.zeros((HIDDEN,), jnp.float32)

    layers = []
    for lk in jax.random.split(k_layers, NUM_LAYERS):
        sk = jax.random.split(lk, 6)
        layers.append(dict(
            wq=normal(sk[0], (HIDDEN, HIDDEN)), bq=jnp.zeros((HIDDEN,), jnp.float32),
            wk=normal(sk[1], (HIDDEN, HIDDEN)), bk=jnp.zeros((HIDDEN,), jnp.float32),
            wv=normal(sk[2], (HIDDEN, HIDDEN)), bv=jnp.zeros((HIDDEN,), jnp.float32),
            wo=normal(sk[3], (HIDDEN, HIDDEN)), bo=jnp.zeros((HIDDEN,), jnp.float32),
            w1=normal(sk[4], (HIDDEN, FFN)), b1=jnp.zeros((FFN,), jnp.float32),
            w2=normal(sk[5], (FFN, HIDDEN)), b2=jnp.zeros((HIDDEN,), jnp.float32),
            ln1g=jnp.ones((HIDDEN,), jnp.float32), ln1b=jnp.zeros((HIDDEN,), jnp.float32),
            ln2g=jnp.ones((HIDDEN,), jnp.float32), ln2b=jnp.zeros((HIDDEN,), jnp.float32)))
    return (word_emb, pos_emb, type_emb, emb_ln_g, emb_ln_b), layers


def prepare_kernel_params(emb_params, layers):
    """Pack params into the kernel layouts: fused Wqkv with the softmax scale
    folded into Q, flat head-concat Wo, per-layer stacking, bf16 weights."""
    word_emb, pos_emb, type_emb, ln_g, ln_b = emb_params

    # block-diagonal head selector: mask[r, c] = (r // TOKENS == c // HEAD_DIM)
    head_mask = jnp.kron(jnp.eye(NUM_HEADS, dtype=jnp.float32),
                         jnp.ones((TOKENS, HEAD_DIM), jnp.float32))

    econst = dict(
        word_emb=word_emb,                                          # (V, H) f32
        pos_type=jnp.tile(pos_emb, (BATCH, 1)) + type_emb[0][None, :],
        emb_ln_g=ln_g.reshape(1, HIDDEN),
        emb_ln_b=ln_b.reshape(1, HIDDEN),
        head_mask=head_mask)                                        # (NH*T, H) f32

    scale = 1.0 / (HEAD_DIM ** 0.5)
    names = ["wqkv", "bqkv", "wo", "bo", "ln1g", "ln1b",
             "w1", "b1", "w2", "b2", "ln2g", "ln2b"]
    per_layer = []
    for l in layers:
        wqkv = jnp.concatenate([l["wq"] * scale, l["wk"], l["wv"]], axis=1)   # (H, 3H)
        bqkv = jnp.concatenate([l["bq"] * scale, l["bk"], l["bv"]])[None, :]  # (1, 3H)
        per_layer.append(dict(
            wqkv=wqkv.astype(jnp.bfloat16),
            bqkv=bqkv,
            wo=l["wo"].astype(jnp.bfloat16),
            bo=l["bo"][None, :],
            ln1g=l["ln1g"][None, :], ln1b=l["ln1b"][None, :],
            w1=l["w1"].astype(jnp.bfloat16), b1=l["b1"][None, :],
            w2=l["w2"].astype(jnp.bfloat16), b2=l["b2"][None, :],
            ln2g=l["ln2g"][None, :], ln2b=l["ln2b"][None, :]))
    stacked = tuple(jnp.stack([pl_[n] for pl_ in per_layer], axis=0) for n in names)
    return econst, stacked


def _make_attn_bias(attention_mask):
    """(T, T) additive bias: block-diagonal over batch + padding key mask."""
    batch_id = jnp.repeat(jnp.arange(BATCH), SEQ)                   # (T,)
    same_batch = batch_id[:, None] == batch_id[None, :]
    key_valid = attention_mask.reshape(TOKENS) > 0
    return jnp.where(same_batch & key_valid[None, :], 0.0, NEG_INF).astype(jnp.float32)


def biomed_encoder_forward(token_ids, attention_mask, econst, stacked):
    """Returns last_hidden_state[:, 0, :] — same semantics as the PyTorch module."""
    ids2d = token_ids.reshape(TOKENS, 1)
    # per-(head,query)-row additive bias, laid out to match the (NH*T, T) scores
    bias2 = jnp.tile(_make_attn_bias(attention_mask), (NUM_HEADS, 1))
    return encoder_call(ids2d, bias2, econst, stacked)               # (B, H) CLS


def reference_forward(token_ids, attention_mask, emb_params, layers):
    """Pure-JAX f32 reference with standard (unpacked, unscaled) MHA layouts."""
    word_emb, pos_emb, type_emb, ln_g, ln_b = emb_params

    def ln(z, g, b):
        mu = z.mean(-1, keepdims=True)
        va = ((z - mu) ** 2).mean(-1, keepdims=True)
        return (z - mu) * jax.lax.rsqrt(va + EPS) * g + b

    hidden = word_emb[token_ids] + pos_emb[None] + type_emb[0][None, None]
    x = ln(hidden, ln_g, ln_b).reshape(TOKENS, HIDDEN)
    bias = _make_attn_bias(attention_mask)

    for l in layers:
        q = x @ l["wq"] + l["bq"]
        k = x @ l["wk"] + l["bk"]
        v = x @ l["wv"] + l["bv"]
        heads = []
        for h in range(NUM_HEADS):
            sl = slice(h * HEAD_DIM, (h + 1) * HEAD_DIM)
            s = q[:, sl] @ k[:, sl].T / HEAD_DIM ** 0.5 + bias
            p = jax.nn.softmax(s, axis=-1)
            heads.append(p @ v[:, sl])
        ctx = jnp.concatenate(heads, axis=-1)
        attn = ctx @ l["wo"] + l["bo"]
        h1 = ln(x + attn, l["ln1g"], l["ln1b"])
        ff = jax.nn.gelu(h1 @ l["w1"] + l["b1"], approximate=True)
        x = ln(h1 + ff @ l["w2"] + l["b2"], l["ln2g"], l["ln2b"])
    return x.reshape(BATCH, SEQ, HIDDEN)[:, 0, :]


if __name__ == "__main__":
    key = jax.random.PRNGKey(0)
    pkey, tkey = jax.random.split(key)

    emb_params, layers = init_params(pkey)
    econst, stacked = prepare_kernel_params(emb_params, layers)

    # TODO(synk): the HuggingFace tokenizer + pretrained checkpoint have no
    # Pallas equivalent; synthetic token ids and an all-ones attention_mask
    # stand in for tokenized text.
    token_ids = jax.random.randint(tkey, (BATCH, SEQ), 0, VOCAB, dtype=jnp.int32)
    attention_mask = jnp.ones((BATCH, SEQ), jnp.int32)

    fwd = jax.jit(biomed_encoder_forward)
    cls = jax.block_until_ready(fwd(token_ids, attention_mask, econst, stacked))
    assert cls.shape == (BATCH, HIDDEN)
    assert bool(jnp.all(jnp.isfinite(cls)))

    ref = reference_forward(token_ids, attention_mask, emb_params, layers)
    max_err = float(jnp.max(jnp.abs(cls - ref)))
    assert max_err < 5e-2, f"kernel vs reference max abs err = {max_err}"

    print("KERNEL_OK")
</pallas_src>

<mosaic_0001>
module attributes {stable_mosaic.version = 11 : i64} {
  func.func @encoder_kernel(%arg0: i32, %arg1: memref<32x1xi32, #tpu.memory_space<vmem>>, %arg2: memref<32x128xf32, #tpu.memory_space<vmem>>, %arg3: memref<1x128xf32, #tpu.memory_space<vmem>>, %arg4: memref<1x128xf32, #tpu.memory_space<vmem>>, %arg5: memref<128x128xf32, #tpu.memory_space<vmem>>, %arg6: memref<128x128xf32, #tpu.memory_space<vmem>>, %arg7: memref<128x32xf32, #tpu.memory_space<vmem>>, %arg8: memref<1x128x384xbf16, #tpu.memory_space<vmem>>, %arg9: memref<1x1x384xf32, #tpu.memory_space<vmem>>, %arg10: memref<1x128x128xbf16, #tpu.memory_space<vmem>>, %arg11: memref<1x1x128xf32, #tpu.memory_space<vmem>>, %arg12: memref<1x1x128xf32, #tpu.memory_space<vmem>>, %arg13: memref<1x1x128xf32, #tpu.memory_space<vmem>>, %arg14: memref<1x128x512xbf16, #tpu.memory_space<vmem>>, %arg15: memref<1x1x512xf32, #tpu.memory_space<vmem>>, %arg16: memref<1x512x128xbf16, #tpu.memory_space<vmem>>, %arg17: memref<1x1x128xf32, #tpu.memory_space<vmem>>, %arg18: memref<1x1x128xf32, #tpu.memory_space<vmem>>, %arg19: memref<1x1x128xf32, #tpu.memory_space<vmem>>, %arg20: memref<2x128xf32, #tpu.memory_space<vmem>>, %arg21: memref<32x128xf32, #tpu.memory_space<vmem>>) attributes {dimension_semantics = [#tpu.dimension_semantics<arbitrary>], iteration_bounds = array<i64: 2>, scalar_prefetch = 0 : i64, scratch_operands = 1 : i64, tpu.core_type = #tpu.core_type<tc>, window_params = [{pipeline_mode = #tpu.pipeline_mode<synchronous>, transform_indices = @transform_0, window_bounds = array<i64: 32, 1>}, {pipeline_mode = #tpu.pipeline_mode<synchronous>, transform_indices = @transform_1, window_bounds = array<i64: 32, 128>}, {pipeline_mode = #tpu.pipeline_mode<synchronous>, transform_indices = @transform_2, window_bounds = array<i64: 1, 128>}, {pipeline_mode = #tpu.pipeline_mode<synchronous>, transform_indices = @transform_3, window_bounds = array<i64: 1, 128>}, {pipeline_mode = #tpu.pipeline_mode<synchronous>, transform_indices = @transform_4, window_bounds = array<i64: 128, 128>}, {pipeline_mode = #tpu.pipeline_mode<synchronous>, transform_indices = @transform_5, window_bounds = array<i64: 128, 128>}, {pipeline_mode = #tpu.pipeline_mode<synchronous>, transform_indices = @transform_6, window_bounds = array<i64: 128, 32>}, {transform_indices = @transform_7, window_bounds = array<i64: 1, 128, 384>}, {transform_indices = @transform_8, window_bounds = array<i64: 1, 1, 384>}, {transform_indices = @transform_9, window_bounds = array<i64: 1, 128, 128>}, {transform_indices = @transform_10, window_bounds = array<i64: 1, 1, 128>}, {transform_indices = @transform_11, window_bounds = array<i64: 1, 1, 128>}, {transform_indices = @transform_12, window_bounds = array<i64: 1, 1, 128>}, {transform_indices = @transform_13, window_bounds = array<i64: 1, 128, 512>}, {transform_indices = @transform_14, window_bounds = array<i64: 1, 1, 512>}, {transform_indices = @transform_15, window_bounds = array<i64: 1, 512, 128>}, {transform_indices = @transform_16, window_bounds = array<i64: 1, 1, 128>}, {transform_indices = @transform_17, window_bounds = array<i64: 1, 1, 128>}, {transform_indices = @transform_18, window_bounds = array<i64: 1, 1, 128>}, {pipeline_mode = #tpu.pipeline_mode<synchronous>, transform_indices = @transform_19, window_bounds = array<i64: 2, 128>}]} {
    %c0_i32 = arith.constant 0 : i32
    %0 = arith.cmpi eq, %arg0, %c0_i32 : i32
    %1 = arith.extui %0 : i1 to i32
    %c0_i32_0 = arith.constant 0 : i32
    %2 = arith.cmpi ne, %1, %c0_i32_0 : i32
    scf.if %2 {
      %c0_68 = arith.constant 0 : index
      %c0_69 = arith.constant 0 : index
      %143 = vector.load %arg1[%c0_68, %c0_69] : memref<32x1xi32, #tpu.memory_space<vmem>>, vector<32x1xi32>
      %144 = tpu.iota {dimensions = array<i32: 1>} : vector<32x128xi32>
      %145 = vector.broadcast %143 : vector<32x1xi32> to vector<32x128xi32>
      %146 = arith.cmpi eq, %144, %145 : vector<32x128xi32>
      %147 = arith.extui %146 : vector<32x128xi1> to vector<32x128xi32>
      %148 = arith.sitofp %147 : vector<32x128xi32> to vector<32x128xf32>
      %c0_70 = arith.constant 0 : index
      %c0_71 = arith.constant 0 : index
      %149 = vector.load %arg5[%c0_70, %c0_71] : memref<128x128xf32, #tpu.memory_space<vmem>>, vector<128x128xf32>
      %cst_72 = arith.constant dense<0.000000e+00> : vector<32x128xf32>
      %150 = tpu.matmul %148, %149, %cst_72 {dimension_numbers = #tpu.dot_dimension_numbers<[1], [0], [0], [1], [0, 0, 1, 1], [], []>} : vector<32x128xf32>, vector<128x128xf32>, vector<32x128xf32> -> vector<32x128xf32>
      %c0_73 = arith.constant 0 : index
      %c0_74 = arith.constant 0 : index
      %151 = vector.load %arg2[%c0_73, %c0_74] : memref<32x128xf32, #tpu.memory_space<vmem>>, vector<32x128xf32>
      %152 = arith.addf %150, %151 : vector<32x128xf32>
      %c0_75 = arith.constant 0 : index
      %c0_76 = arith.constant 0 : index
      %153 = vector.load %arg3[%c0_75, %c0_76] : memref<1x128xf32, #tpu.memory_space<vmem>>, vector<1x128xf32>
      %c0_77 = arith.constant 0 : index
      %c0_78 = arith.constant 0 : index
      %154 = vector.load %arg4[%c0_77, %c0_78] : memref<1x128xf32, #tpu.memory_space<vmem>>, vector<1x128xf32>
      %cst_79 = arith.constant dense<0.000000e+00> : vector<32xf32>
      %155 = vector.multi_reduction <add>, %152, %cst_79 [1] : vector<32x128xf32> to vector<32xf32>
      %156 = vector.shape_cast %155 : vector<32xf32> to vector<32x1xf32>
      %cst_80 = arith.constant 1.280000e+02 : f32
      %157 = vector.broadcast %cst_80 : f32 to vector<32x1xf32>
      %158 = arith.divf %156, %157 : vector<32x1xf32>
      %159 = arith.mulf %152, %152 : vector<32x128xf32>
      %cst_81 = arith.constant dense<0.000000e+00> : vector<32xf32>
      %160 = vector.multi_reduction <add>, %159, %cst_81 [1] : vector<32x128xf32> to vector<32xf32>
      %161 = vector.shape_cast %160 : vector<32xf32> to vector<32x1xf32>
      %cst_82 = arith.constant 1.280000e+02 : f32
      %162 = vector.broadcast %cst_82 : f32 to vector<32x1xf32>
      %163 = arith.divf %161, %162 : vector<32x1xf32>
      %164 = arith.mulf %158, %158 : vector<32x1xf32>
      %165 = arith.subf %163, %164 : vector<32x1xf32>
      %cst_83 = arith.constant 0.000000e+00 : f32
      %166 = vector.broadcast %cst_83 : f32 to vector<32x1xf32>
      %167 = arith.maximumf %165, %166 : vector<32x1xf32>
      %168 = vector.broadcast %158 : vector<32x1xf32> to vector<32x128xf32>
      %169 = arith.subf %152, %168 : vector<32x128xf32>
      %cst_84 = arith.constant 9.99999996E-13 : f32
      %170 = vector.broadcast %cst_84 : f32 to vector<32x1xf32>
      %171 = arith.addf %167, %170 : vector<32x1xf32>
      %172 = math.rsqrt %171 : vector<32x1xf32>
      %173 = vector.broadcast %172 : vector<32x1xf32> to vector<32x128xf32>
      %174 = arith.mulf %169, %173 : vector<32x128xf32>
      %175 = vector.broadcast %153 : vector<1x128xf32> to vector<32x128xf32>
      %176 = arith.mulf %174, %175 : vector<32x128xf32>
      %177 = vector.broadcast %154 : vector<1x128xf32> to vector<32x128xf32>
      %178 = arith.addf %176, %177 : vector<32x128xf32>
      %c0_85 = arith.constant 0 : index
      %c0_86 = arith.constant 0 : index
      %179 = vector.load %arg21[%c0_85, %c0_86] : memref<32x128xf32, #tpu.memory_space<vmem>>, vector<32x128xf32>
      tpu.vector_store %arg21[%c0_85, %c0_86], %178 {strides = array<i32>} : memref<32x128xf32, #tpu.memory_space<vmem>>, vector<32x128xf32>,
    } else {
    }
    %c0 = arith.constant 0 : index
    %c0_1 = arith.constant 0 : index
    %3 = vector.load %arg21[%c0, %c0_1] : memref<32x128xf32, #tpu.memory_space<vmem>>, vector<32x128xf32>
    %4 = arith.truncf %3 : vector<32x128xf32> to vector<32x128xbf16>
    %c0_2 = arith.constant 0 : index
    %c0_3 = arith.constant 0 : index
    %c0_4 = arith.constant 0 : index
    %5 = vector.load %arg8[%c0_2, %c0_3, %c0_4] : memref<1x128x384xbf16, #tpu.memory_space<vmem>>, vector<1x128x384xbf16>
    %6 = vector.shape_cast %5 : vector<1x128x384xbf16> to vector<128x384xbf16>
    %cst = arith.constant dense<0.000000e+00> : vector<32x384xf32>
    %7 = tpu.matmul %4, %6, %cst {dimension_numbers = #tpu.dot_dimension_numbers<[1], [0], [0], [1], [0, 0, 1, 1], [], []>} : vector<32x128xbf16>, vector<128x384xbf16>, vector<32x384xf32> -> vector<32x384xf32>
    %c0_5 = arith.constant 0 : index
    %c0_6 = arith.constant 0 : index
    %c0_7 = arith.constant 0 : index
    %8 = vector.load %arg9[%c0_5, %c0_6, %c0_7] : memref<1x1x384xf32, #tpu.memory_space<vmem>>, vector<1x1x384xf32>
    %9 = vector.shape_cast %8 : vector<1x1x384xf32> to vector<1x384xf32>
    %10 = vector.broadcast %9 : vector<1x384xf32> to vector<32x384xf32>
    %11 = arith.addf %7, %10 : vector<32x384xf32>
    %12 = arith.truncf %11 : vector<32x384xf32> to vector<32x384xbf16>
    %13 = vector.extract_strided_slice %12 {offsets = [0, 0], sizes = [32, 128], strides = [1, 1]} : vector<32x384xbf16> to vector<32x128xbf16>
    %14 = vector.extract_strided_slice %12 {offsets = [0, 128], sizes = [32, 128], strides = [1, 1]} : vector<32x384xbf16> to vector<32x128xbf16>
    %15 = vector.extract_strided_slice %12 {offsets = [0, 256], sizes = [32, 128], strides = [1, 1]} : vector<32x384xbf16> to vector<32x128xbf16>
    %c0_8 = arith.constant 0 : index
    %c0_9 = arith.constant 0 : index
    %16 = vector.load %arg6[%c0_8, %c0_9] : memref<128x128xf32, #tpu.memory_space<vmem>>, vector<128x128xf32>
    %17 = tpu.concatenate %13, %13, %13, %13 in 0 : vector<32x128xbf16>, vector<32x128xbf16>, vector<32x128xbf16>, vector<32x128xbf16> -> vector<128x128xbf16>
    %18 = arith.truncf %16 : vector<128x128xf32> to vector<128x128xbf16>
    %19 = arith.mulf %17, %18 : vector<128x128xbf16>
    %20 = tpu.transpose %14, [1, 0] : vector<32x128xbf16> -> vector<128x32xbf16>
    %cst_10 = arith.constant dense<0.000000e+00> : vector<128x32xf32>
    %21 = tpu.matmul %19, %20, %cst_10 {dimension_numbers = #tpu.dot_dimension_numbers<[1], [0], [0], [1], [0, 0, 1, 1], [], []>} : vector<128x128xbf16>, vector<128x32xbf16>, vector<128x32xf32> -> vector<128x32xf32>
    %c0_11 = arith.constant 0 : index
    %c0_12 = arith.constant 0 : index
    %22 = vector.load %arg7[%c0_11, %c0_12] : memref<128x32xf32, #tpu.memory_space<vmem>>, vector<128x32xf32>
    %23 = arith.addf %21, %22 : vector<128x32xf32>
    %cst_13 = arith.constant dense<0xFF800000> : vector<128xf32>
    %24 = vector.multi_reduction <maximumf>, %23, %cst_13 [1] : vector<128x32xf32> to vector<128xf32>
    %25 = vector.shape_cast %24 : vector<128xf32> to vector<128x1xf32>
    %26 = vector.broadcast %25 : vector<128x1xf32> to vector<128x32xf32>
    %27 = arith.subf %23, %26 : vector<128x32xf32>
    %28 = math.exp %27 : vector<128x32xf32>
    %cst_14 = arith.constant dense<0.000000e+00> : vector<128xf32>
    %29 = vector.multi_reduction <add>, %28, %cst_14 [1] : vector<128x32xf32> to vector<128xf32>
    %30 = vector.shape_cast %29 : vector<128xf32> to vector<128x1xf32>
    %31 = tpu.reciprocal %30 {approx = true} : vector<128x1xf32> -> vector<128x1xf32>
    %32 = vector.broadcast %31 : vector<128x1xf32> to vector<128x32xf32>
    %33 = arith.mulf %28, %32 : vector<128x32xf32>
    %34 = arith.truncf %33 : vector<128x32xf32> to vector<128x32xbf16>
    %cst_15 = arith.constant dense<0.000000e+00> : vector<128x128xf32>
    %35 = tpu.matmul %34, %15, %cst_15 {dimension_numbers = #tpu.dot_dimension_numbers<[1], [0], [0], [1], [0, 0, 1, 1], [], []>} : vector<128x32xbf16>, vector<32x128xbf16>, vector<128x128xf32> -> vector<128x128xf32>
    %36 = arith.mulf %35, %16 : vector<128x128xf32>
    %37 = vector.extract_strided_slice %36 {offsets = [0, 0], sizes = [32, 128], strides = [1, 1]} : vector<128x128xf32> to vector<32x128xf32>
    %38 = vector.extract_strided_slice %36 {offsets = [32, 0], sizes = [32, 128], strides = [1, 1]} : vector<128x128xf32> to vector<32x128xf32>
    %39 = arith.addf %37, %38 : vector<32x128xf32>
    %40 = vector.extract_strided_slice %36 {offsets = [64, 0], sizes = [32, 128], strides = [1, 1]} : vector<128x128xf32> to vector<32x128xf32>
    %41 = arith.addf %39, %40 : vector<32x128xf32>
    %42 = vector.extract_strided_slice %36 {offsets = [96, 0], sizes = [32, 128], strides = [1, 1]} : vector<128x128xf32> to vector<32x128xf32>
    %43 = arith.addf %41, %42 : vector<32x128xf32>
    %44 = arith.truncf %43 : vector<32x128xf32> to vector<32x128xbf16>
    %c0_16 = arith.constant 0 : index
    %c0_17 = arith.constant 0 : index
    %c0_18 = arith.constant 0 : index
    %45 = vector.load %arg10[%c0_16, %c0_17, %c0_18] : memref<1x128x128xbf16, #tpu.memory_space<vmem>>, vector<1x128x128xbf16>
    %46 = vector.shape_cast %45 : vector<1x128x128xbf16> to vector<128x128xbf16>
    %cst_19 = arith.constant dense<0.000000e+00> : vector<32x128xf32>
    %47 = tpu.matmul %44, %46, %cst_19 {dimension_numbers = #tpu.dot_dimension_numbers<[1], [0], [0], [1], [0, 0, 1, 1], [], []>} : vector<32x128xbf16>, vector<128x128xbf16>, vector<32x128xf32> -> vector<32x128xf32>
    %c0_20 = arith.constant 0 : index
    %c0_21 = arith.constant 0 : index
    %c0_22 = arith.constant 0 : index
    %48 = vector.load %arg11[%c0_20, %c0_21, %c0_22] : memref<1x1x128xf32, #tpu.memory_space<vmem>>, vector<1x1x128xf32>
    %49 = vector.shape_cast %48 : vector<1x1x128xf32> to vector<1x128xf32>
    %50 = vector.broadcast %49 : vector<1x128xf32> to vector<32x128xf32>
    %51 = arith.addf %47, %50 : vector<32x128xf32>
    %52 = arith.addf %3, %51 : vector<32x128xf32>
    %c0_23 = arith.constant 0 : index
    %c0_24 = arith.constant 0 : index
    %c0_25 = arith.constant 0 : index
    %53 = vector.load %arg12[%c0_23, %c0_24, %c0_25] : memref<1x1x128xf32, #tpu.memory_space<vmem>>, vector<1x1x128xf32>
    %54 = vector.shape_cast %53 : vector<1x1x128xf32> to vector<1x128xf32>
    %c0_26 = arith.constant 0 : index
    %c0_27 = arith.constant 0 : index
    %c0_28 = arith.constant 0 : index
    %55 = vector.load %arg13[%c0_26, %c0_27, %c0_28] : memref<1x1x128xf32, #tpu.memory_space<vmem>>, vector<1x1x128xf32>
    %56 = vector.shape_cast %55 : vector<1x1x128xf32> to vector<1x128xf32>
    %cst_29 = arith.constant dense<0.000000e+00> : vector<32xf32>
    %57 = vector.multi_reduction <add>, %52, %cst_29 [1] : vector<32x128xf32> to vector<32xf32>
    %58 = vector.shape_cast %57 : vector<32xf32> to vector<32x1xf32>
    %cst_30 = arith.constant 1.280000e+02 : f32
    %59 = vector.broadcast %cst_30 : f32 to vector<32x1xf32>
    %60 = arith.divf %58, %59 : vector<32x1xf32>
    %61 = arith.mulf %52, %52 : vector<32x128xf32>
    %cst_31 = arith.constant dense<0.000000e+00> : vector<32xf32>
    %62 = vector.multi_reduction <add>, %61, %cst_31 [1] : vector<32x128xf32> to vector<32xf32>
    %63 = vector.shape_cast %62 : vector<32xf32> to vector<32x1xf32>
    %cst_32 = arith.constant 1.280000e+02 : f32
    %64 = vector.broadcast %cst_32 : f32 to vector<32x1xf32>
    %65 = arith.divf %63, %64 : vector<32x1xf32>
    %66 = arith.mulf %60, %60 : vector<32x1xf32>
    %67 = arith.subf %65, %66 : vector<32x1xf32>
    %cst_33 = arith.constant 0.000000e+00 : f32
    %68 = vector.broadcast %cst_33 : f32 to vector<32x1xf32>
    %69 = arith.maximumf %67, %68 : vector<32x1xf32>
    %70 = vector.broadcast %60 : vector<32x1xf32> to vector<32x128xf32>
    %71 = arith.subf %52, %70 : vector<32x128xf32>
    %cst_34 = arith.constant 9.99999996E-13 : f32
    %72 = vector.broadcast %cst_34 : f32 to vector<32x1xf32>
    %73 = arith.addf %69, %72 : vector<32x1xf32>
    %74 = math.rsqrt %73 : vector<32x1xf32>
    %75 = vector.broadcast %74 : vector<32x1xf32> to vector<32x128xf32>
    %76 = arith.mulf %71, %75 : vector<32x128xf32>
    %77 = vector.broadcast %54 : vector<1x128xf32> to vector<32x128xf32>
    %78 = arith.mulf %76, %77 : vector<32x128xf32>
    %79 = vector.broadcast %56 : vector<1x128xf32> to vector<32x128xf32>
    %80 = arith.addf %78, %79 : vector<32x128xf32>
    %81 = arith.truncf %80 : vector<32x128xf32> to vector<32x128xbf16>
    %c0_35 = arith.constant 0 : index
    %c0_36 = arith.constant 0 : index
    %c0_37 = arith.constant 0 : index
    %82 = vector.load %arg14[%c0_35, %c0_36, %c0_37] : memref<1x128x512xbf16, #tpu.memory_space<vmem>>, vector<1x128x512xbf16>
    %83 = vector.shape_cast %82 : vector<1x128x512xbf16> to vector<128x512xbf16>
    %cst_38 = arith.constant dense<0.000000e+00> : vector<32x512xf32>
    %84 = tpu.matmul %81, %83, %cst_38 {dimension_numbers = #tpu.dot_dimension_numbers<[1], [0], [0], [1], [0, 0, 1, 1], [], []>} : vector<32x128xbf16>, vector<128x512xbf16>, vector<32x512xf32> -> vector<32x512xf32>
    %c0_39 = arith.constant 0 : index
    %c0_40 = arith.constant 0 : index
    %c0_41 = arith.constant 0 : index
    %85 = vector.load %arg15[%c0_39, %c0_40, %c0_41] : memref<1x1x512xf32, #tpu.memory_space<vmem>>, vector<1x1x512xf32>
    %86 = vector.shape_cast %85 : vector<1x1x512xf32> to vector<1x512xf32>
    %87 = vector.broadcast %86 : vector<1x512xf32> to vector<32x512xf32>
    %88 = arith.addf %84, %87 : vector<32x512xf32>
    %89 = arith.mulf %88, %88 : vector<32x512xf32>
    %90 = arith.mulf %88, %89 : vector<32x512xf32>
    %cst_42 = arith.constant 4.471500e-02 : f32
    %91 = vector.broadcast %cst_42 : f32 to vector<32x512xf32>
    %92 = arith.mulf %91, %90 : vector<32x512xf32>
    %93 = arith.addf %88, %92 : vector<32x512xf32>
    %cst_43 = arith.constant 0.797884583 : f32
    %94 = vector.broadcast %cst_43 : f32 to vector<32x512xf32>
    %95 = arith.mulf %94, %93 : vector<32x512xf32>
    %96 = math.tanh %95 : vector<32x512xf32>
    %cst_44 = arith.constant 1.000000e+00 : f32
    %97 = vector.broadcast %cst_44 : f32 to vector<32x512xf32>
    %98 = arith.addf %97, %96 : vector<32x512xf32>
    %cst_45 = arith.constant 5.000000e-01 : f32
    %99 = vector.broadcast %cst_45 : f32 to vector<32x512xf32>
    %100 = arith.mulf %99, %98 : vector<32x512xf32>
    %101 = arith.mulf %88, %100 : vector<32x512xf32>
    %102 = arith.truncf %101 : vector<32x512xf32> to vector<32x512xbf16>
    %c0_46 = arith.constant 0 : index
    %c0_47 = arith.constant 0 : index
    %c0_48 = arith.constant 0 : index
    %103 = vector.load %arg16[%c0_46, %c0_47, %c0_48] : memref<1x512x128xbf16, #tpu.memory_space<vmem>>, vector<1x512x128xbf16>
    %104 = vector.shape_cast %103 : vector<1x512x128xbf16> to vector<512x128xbf16>
    %cst_49 = arith.constant dense<0.000000e+00> : vector<32x128xf32>
    %105 = tpu.matmul %102, %104, %cst_49 {dimension_numbers = #tpu.dot_dimension_numbers<[1], [0], [0], [1], [0, 0, 1, 1], [], []>} : vector<32x512xbf16>, vector<512x128xbf16>, vector<32x128xf32> -> vector<32x128xf32>
    %c0_50 = arith.constant 0 : index
    %c0_51 = arith.constant 0 : index
    %c0_52 = arith.constant 0 : index
    %106 = vector.load %arg17[%c0_50, %c0_51, %c0_52] : memref<1x1x128xf32, #tpu.memory_space<vmem>>, vector<1x1x128xf32>
    %107 = vector.shape_cast %106 : vector<1x1x128xf32> to vector<1x128xf32>
    %108 = vector.broadcast %107 : vector<1x128xf32> to vector<32x128xf32>
    %109 = arith.addf %105, %108 : vector<32x128xf32>
    %110 = arith.addf %80, %109 : vector<32x128xf32>
    %c0_53 = arith.constant 0 : index
    %c0_54 = arith.constant 0 : index
    %c0_55 = arith.constant 0 : index
    %111 = vector.load %arg18[%c0_53, %c0_54, %c0_55] : memref<1x1x128xf32, #tpu.memory_space<vmem>>, vector<1x1x128xf32>
    %112 = vector.shape_cast %111 : vector<1x1x128xf32> to vector<1x128xf32>
    %c0_56 = arith.constant 0 : index
    %c0_57 = arith.constant 0 : index
    %c0_58 = arith.constant 0 : index
    %113 = vector.load %arg19[%c0_56, %c0_57, %c0_58] : memref<1x1x128xf32, #tpu.memory_space<vmem>>, vector<1x1x128xf32>
    %114 = vector.shape_cast %113 : vector<1x1x128xf32> to vector<1x128xf32>
    %cst_59 = arith.constant dense<0.000000e+00> : vector<32xf32>
    %115 = vector.multi_reduction <add>, %110, %cst_59 [1] : vector<32x128xf32> to vector<32xf32>
    %116 = vector.shape_cast %115 : vector<32xf32> to vector<32x1xf32>
    %cst_60 = arith.constant 1.280000e+02 : f32
    %117 = vector.broadcast %cst_60 : f32 to vector<32x1xf32>
    %118 = arith.divf %116, %117 : vector<32x1xf32>
    %119 = arith.mulf %110, %110 : vector<32x128xf32>
    %cst_61 = arith.constant dense<0.000000e+00> : vector<32xf32>
    %120 = vector.multi_reduction <add>, %119, %cst_61 [1] : vector<32x128xf32> to vector<32xf32>
    %121 = vector.shape_cast %120 : vector<32xf32> to vector<32x1xf32>
    %cst_62 = arith.constant 1.280000e+02 : f32
    %122 = vector.broadcast %cst_62 : f32 to vector<32x1xf32>
    %123 = arith.divf %121, %122 : vector<32x1xf32>
    %124 = arith.mulf %118, %118 : vector<32x1xf32>
    %125 = arith.subf %123, %124 : vector<32x1xf32>
    %cst_63 = arith.constant 0.000000e+00 : f32
    %126 = vector.broadcast %cst_63 : f32 to vector<32x1xf32>
    %127 = arith.maximumf %125, %126 : vector<32x1xf32>
    %128 = vector.broadcast %118 : vector<32x1xf32> to vector<32x128xf32>
    %129 = arith.subf %110, %128 : vector<32x128xf32>
    %cst_64 = arith.constant 9.99999996E-13 : f32
    %130 = vector.broadcast %cst_64 : f32 to vector<32x1xf32>
    %131 = arith.addf %127, %130 : vector<32x1xf32>
    %132 = math.rsqrt %131 : vector<32x1xf32>
    %133 = vector.broadcast %132 : vector<32x1xf32> to vector<32x128xf32>
    %134 = arith.mulf %129, %133 : vector<32x128xf32>
    %135 = vector.broadcast %112 : vector<1x128xf32> to vector<32x128xf32>
    %136 = arith.mulf %134, %135 : vector<32x128xf32>
    %137 = vector.broadcast %114 : vector<1x128xf32> to vector<32x128xf32>
    %138 = arith.addf %136, %137 : vector<32x128xf32>
    %c0_65 = arith.constant 0 : index
    %c0_66 = arith.constant 0 : index
    %139 = vector.load %arg21[%c0_65, %c0_66] : memref<32x128xf32, #tpu.memory_space<vmem>>, vector<32x128xf32>
    tpu.vector_store %arg21[%c0_65, %c0_66], %138 {strides = array<i32>} : memref<32x128xf32, #tpu.memory_space<vmem>>, vector<32x128xf32>,
    %c1_i32 = arith.constant 1 : i32
    %140 = arith.cmpi eq, %arg0, %c1_i32 : i32
    %141 = arith.extui %140 : i1 to i32
    %c0_i32_67 = arith.constant 0 : i32
    %142 = arith.cmpi ne, %141, %c0_i32_67 : i32
    scf.if %142 {
      %143 = vector.extract_strided_slice %138 {offsets = [0, 0], sizes = [1, 128], strides = [1, 1]} : vector<32x128xf32> to vector<1x128xf32>
      %c0_68 = arith.constant 0 : index
      %c0_69 = arith.constant 0 : index
      %144 = vector.load %arg20[%c0_68, %c0_69] : memref<2x128xf32, #tpu.memory_space<vmem>>, vector<1x128xf32>
      tpu.vector_store %arg20[%c0_68, %c0_69], %143 {strides = array<i32>} : memref<2x128xf32, #tpu.memory_space<vmem>>, vector<1x128xf32>,
      %145 = vector.extract_strided_slice %138 {offsets = [16, 0], sizes = [1, 128], strides = [1, 1]} : vector<32x128xf32> to vector<1x128xf32>
      %c1 = arith.constant 1 : index
      %c0_70 = arith.constant 0 : index
      %146 = vector.load %arg20[%c1, %c0_70] : memref<2x128xf32, #tpu.memory_space<vmem>>, vector<1x128xf32>
      tpu.vector_store %arg20[%c1, %c0_70], %145 {strides = array<i32>} : memref<2x128xf32, #tpu.memory_space<vmem>>, vector<1x128xf32>,
    } else {
    }
    return
  }
  func.func @transform_0(%arg0: i32) -> (i32, i32) {
    %c0_i32 = arith.constant 0 : i32
    %c0_i32_0 = arith.constant 0 : i32
    %c0_i32_1 = arith.constant 0 : i32
    return %c0_i32, %c0_i32_0 : i32, i32
  }
  func.func @transform_1(%arg0: i32) -> (i32, i32) {
    %c0_i32 = arith.constant 0 : i32
    %c0_i32_0 = arith.constant 0 : i32
    %c0_i32_1 = arith.constant 0 : i32
    return %c0_i32, %c0_i32_0 : i32, i32
  }
  func.func @transform_2(%arg0: i32) -> (i32, i32) {
    %c0_i32 = arith.constant 0 : i32
    %c0_i32_0 = arith.constant 0 : i32
    %c0_i32_1 = arith.constant 0 : i32
    return %c0_i32, %c0_i32_0 : i32, i32
  }
  func.func @transform_3(%arg0: i32) -> (i32, i32) {
    %c0_i32 = arith.constant 0 : i32
    %c0_i32_0 = arith.constant 0 : i32
    %c0_i32_1 = arith.constant 0 : i32
    return %c0_i32, %c0_i32_0 : i32, i32
  }
  func.func @transform_4(%arg0: i32) -> (i32, i32) {
    %c0_i32 = arith.constant 0 : i32
    %c0_i32_0 = arith.constant 0 : i32
    %c0_i32_1 = arith.constant 0 : i32
    return %c0_i32, %c0_i32_0 : i32, i32
  }
  func.func @transform_5(%arg0: i32) -> (i32, i32) {
    %c0_i32 = arith.constant 0 : i32
    %c0_i32_0 = arith.constant 0 : i32
    %c0_i32_1 = arith.constant 0 : i32
    return %c0_i32, %c0_i32_0 : i32, i32
  }
  func.func @transform_6(%arg0: i32) -> (i32, i32) {
    %c0_i32 = arith.constant 0 : i32
    %c0_i32_0 = arith.constant 0 : i32
    %c0_i32_1 = arith.constant 0 : i32
    return %c0_i32, %c0_i32_0 : i32, i32
  }
  func.func @transform_7(%arg0: i32) -> (i32, i32, i32) {
    %c0_i32 = arith.constant 0 : i32
    %c0_i32_0 = arith.constant 0 : i32
    %c0_i32_1 = arith.constant 0 : i32
    return %arg0, %c0_i32, %c0_i32_0 : i32, i32, i32
  }
  func.func @transform_8(%arg0: i32) -> (i32, i32, i32) {
    %c0_i32 = arith.constant 0 : i32
    %c0_i32_0 = arith.constant 0 : i32
    %c0_i32_1 = arith.constant 0 : i32
    return %arg0, %c0_i32, %c0_i32_0 : i32, i32, i32
  }
  func.func @transform_9(%arg0: i32) -> (i32, i32, i32) {
    %c0_i32 = arith.constant 0 : i32
    %c0_i32_0 = arith.constant 0 : i32
    %c0_i32_1 = arith.constant 0 : i32
    return %arg0, %c0_i32, %c0_i32_0 : i32, i32, i32
  }
  func.func @transform_10(%arg0: i32) -> (i32, i32, i32) {
    %c0_i32 = arith.constant 0 : i32
    %c0_i32_0 = arith.constant 0 : i32
    %c0_i32_1 = arith.constant 0 : i32
    return %arg0, %c0_i32, %c0_i32_0 : i32, i32, i32
  }
  func.func @transform_11(%arg0: i32) -> (i32, i32, i32) {
    %c0_i32 = arith.constant 0 : i32
    %c0_i32_0 = arith.constant 0 : i32
    %c0_i32_1 = arith.constant 0 : i32
    return %arg0, %c0_i32, %c0_i32_0 : i32, i32, i32
  }
  func.func @transform_12(%arg0: i32) -> (i32, i32, i32) {
    %c0_i32 = arith.constant 0 : i32
    %c0_i32_0 = arith.constant 0 : i32
    %c0_i32_1 = arith.constant 0 : i32
    return %arg0, %c0_i32, %c0_i32_0 : i32, i32, i32
  }
  func.func @transform_13(%arg0: i32) -> (i32, i32, i32) {
    %c0_i32 = arith.constant 0 : i32
    %c0_i32_0 = arith.constant 0 : i32
    %c0_i32_1 = arith.constant 0 : i32
    return %arg0, %c0_i32, %c0_i32_0 : i32, i32, i32
  }
  func.func @transform_14(%arg0: i32) -> (i32, i32, i32) {
    %c0_i32 = arith.constant 0 : i32
    %c0_i32_0 = arith.constant 0 : i32
    %c0_i32_1 = arith.constant 0 : i32
    return %arg0, %c0_i32, %c0_i32_0 : i32, i32, i32
  }
  func.func @transform_15(%arg0: i32) -> (i32, i32, i32) {
    %c0_i32 = arith.constant 0 : i32
    %c0_i32_0 = arith.constant 0 : i32
    %c0_i32_1 = arith.constant 0 : i32
    return %arg0, %c0_i32, %c0_i32_0 : i32, i32, i32
  }
  func.func @transform_16(%arg0: i32) -> (i32, i32, i32) {
    %c0_i32 = arith.constant 0 : i32
    %c0_i32_0 = arith.constant 0 : i32
    %c0_i32_1 = arith.constant 0 : i32
    return %arg0, %c0_i32, %c0_i32_0 : i32, i32, i32
  }
  func.func @transform_17(%arg0: i32) -> (i32, i32, i32) {
    %c0_i32 = arith.constant 0 : i32
    %c0_i32_0 = arith.constant 0 : i32
    %c0_i32_1 = arith.constant 0 : i32
    return %arg0, %c0_i32, %c0_i32_0 : i32, i32, i32
  }
  func.func @transform_18(%arg0: i32) -> (i32, i32, i32) {
    %c0_i32 = arith.constant 0 : i32
    %c0_i32_0 = arith.constant 0 : i32
    %c0_i32_1 = arith.constant 0 : i32
    return %arg0, %c0_i32, %c0_i32_0 : i32, i32, i32
  }
  func.func @transform_19(%arg0: i32) -> (i32, i32) {
    %c0_i32 = arith.constant 0 : i32
    %c0_i32_0 = arith.constant 0 : i32
    %c0_i32_1 = arith.constant 0 : i32
    return %c0_i32, %c0_i32_0 : i32, i32
  }
}

</mosaic_0001>

<llo_original>
// kernel: biomed_encoder_forward.1
$region0: #{biomed_encoder_forward.1}
  #allocation0 [shape = 'u32[]', space=smem, size = 0x4, offset = 0x4, fixed_abs, tag = 'smem constant byte address 0x4 - core index']
  #allocation1 [shape = 'u32[144,128]{1,0:T(1,128)}', space=vmem, size = 0x12000, scoped, tag = 'internal scratch']
  #allocation2 [shape = 'f32[32,128]{1,0:T(8,128)}', space=vmem, size = 0x4000, scoped, tag = 'scratch operand']
  %s0 = inlined_call_operand.vmem [shape: s32[32,1], index: 0, kind: input, shape index: {}]
  %s1 = inlined_call_operand.vmem [shape: f32[32,128], index: 1, kind: input, shape index: {}]
  %s2 = inlined_call_operand.vmem [shape: f32[1,128], index: 2, kind: input, shape index: {}]
  %s3 = inlined_call_operand.vmem [shape: f32[1,128], index: 3, kind: input, shape index: {}]
  %s4 = inlined_call_operand.vmem [shape: f32[128,128], index: 4, kind: input, shape index: {}]
  %s5 = inlined_call_operand.vmem [shape: f32[128,128], index: 5, kind: input, shape index: {}]
  %s6 = inlined_call_operand.vmem [shape: f32[128,32], index: 6, kind: input, shape index: {}]
  %s7 = inlined_call_operand.hbm [shape: bf16[2,128,384], index: 7, kind: input, shape index: {}]
  %s8 = inlined_call_operand.hbm [shape: f32[2,1,384], index: 8, kind: input, shape index: {}]
  %s9 = inlined_call_operand.hbm [shape: bf16[2,128,128], index: 9, kind: input, shape index: {}]
  %s10 = inlined_call_operand.hbm [shape: f32[2,1,128], index: 10, kind: input, shape index: {}]
  %s11 = inlined_call_operand.hbm [shape: f32[2,1,128], index: 11, kind: input, shape index: {}]
  %s12 = inlined_call_operand.hbm [shape: f32[2,1,128], index: 12, kind: input, shape index: {}]
  %s13 = inlined_call_operand.hbm [shape: bf16[2,128,512], index: 13, kind: input, shape index: {}]
  %s14 = inlined_call_operand.hbm [shape: f32[2,1,512], index: 14, kind: input, shape index: {}]
  %s15 = inlined_call_operand.hbm [shape: bf16[2,512,128], index: 15, kind: input, shape index: {}]
  %s16 = inlined_call_operand.hbm [shape: f32[2,1,128], index: 16, kind: input, shape index: {}]
  %s17 = inlined_call_operand.hbm [shape: f32[2,1,128], index: 17, kind: input, shape index: {}]
  %s18 = inlined_call_operand.hbm [shape: f32[2,1,128], index: 18, kind: input, shape index: {}]
  %s19 = inlined_call_operand.hbm [shape: f32[2,128], index: 19, kind: output, shape index: {}]
  %s20 = sld [smem:[#allocation0]]
  $region165: #{biomed_encoder_forward.1} parent=0
    _
  %s22 = ssub.s32 1, %s20
  %s23 = scalar_select 0, %s22, %s20
  $region1: #{biomed_encoder_forward.1} parent=0
    #allocation3 [shape = 'u8[196608]{0}', space=vmem, size = 0x30000, scoped, tag = 'input window, operand 7']
    #allocation4 [shape = 's32[2]{0}', space=sflag, size = 0x8, scoped, tag = 'scoped memory for biomed_encoder_forward.1']
    #allocation5 [shape = 's32[2]{0}', space=sflag, size = 0x8, scoped, tag = 'scoped memory for biomed_encoder_forward.1']
    #allocation6 [shape = 'u8[3072]{0}', space=vmem, size = 0xc00, scoped, tag = 'input window, operand 8']
    #allocation7 [shape = 's32[2]{0}', space=sflag, size = 0x8, scoped, tag = 'scoped memory for biomed_encoder_forward.1']
    #allocation8 [shape = 'u8[65536]{0}', space=vmem, size = 0x10000, scoped, tag = 'input window, operand 9']
    #allocation9 [shape = 'u8[1024]{0}', space=vmem, size = 0x400, scoped, tag = 'input window, operand 10']
    #allocation10 [shape = 's32[2]{0}', space=sflag, size = 0x8, scoped, tag = 'scoped memory for biomed_encoder_forward.1']
    #allocation11 [shape = 'u8[1024]{0}', space=vmem, size = 0x400, scoped, tag = 'input window, operand 11']
    #allocation12 [shape = 'u8[1024]{0}', space=vmem, size = 0x400, scoped, tag = 'input window, operand 12']
    #allocation13 [shape = 's32[2]{0}', space=sflag, size = 0x8, scoped, tag = 'scoped memory for biomed_encoder_forward.1']
    #allocation14 [shape = 'u8[262144]{0}', space=vmem, size = 0x40000, scoped, tag = 'input window, operand 13']
    #allocation15 [shape = 'u8[4096]{0}', space=vmem, size = 0x1000, scoped, tag = 'input window, operand 14']
    #allocation16 [shape = 's32[2]{0}', space=sflag, size = 0x8, scoped, tag = 'scoped memory for biomed_encoder_forward.1']
    #allocation17 [shape = 'u8[262144]{0}', space=vmem, size = 0x40000, scoped, tag = 'input window, operand 15']
    #allocation18 [shape = 'u8[1024]{0}', space=vmem, size = 0x400, scoped, tag = 'input window, operand 16']
    #allocation19 [shape = 's32[2]{0}', space=sflag, size = 0x8, scoped, tag = 'scoped memory for biomed_encoder_forward.1']
    #allocation20 [shape = 'u8[1024]{0}', space=vmem, size = 0x400, scoped, tag = 'input window, operand 17']
    #allocation21 [shape = 'u8[1024]{0}', space=vmem, size = 0x400, scoped, tag = 'input window, operand 18']
    #allocation22 [shape = 's32[2]{0}', space=sflag, size = 0x8, scoped, tag = 'scoped memory for biomed_encoder_forward.1']
    #allocation23 [shape = 'u8[1024]{0}', space=vmem, size = 0x400, scoped, tag = 'output window, operand 0, single buffered']
    %24 = vsyncpa [#allocation4], 0
    %s25 = scalar_lea.sflag [#allocation4], 1
    %26 = vsyncpa %s25, 0
    %27 = vsyncpa [#allocation7], 0
    %s28 = scalar_lea.sflag [#allocation7], 1
    %29 = vsyncpa %s28, 0
    %30 = vsyncpa [#allocation10], 0
    %s31 = scalar_lea.sflag [#allocation10], 1
    %32 = vsyncpa %s31, 0
    %33 = vsyncpa [#allocation13], 0
    %s34 = scalar_lea.sflag [#allocation13], 1
    %35 = vsyncpa %s34, 0
    %36 = vsyncpa [#allocation16], 0
    %s37 = scalar_lea.sflag [#allocation16], 1
    %38 = vsyncpa %s37, 0
    %39 = vsyncpa [#allocation19], 0
    %s40 = scalar_lea.sflag [#allocation19], 1
    %41 = vsyncpa %s40, 0
    %42 = vsyncpa [#allocation22], 0
    %s43 = scalar_lea.sflag [#allocation22], 1
    %44 = vsyncpa %s43, 0
    %45 = vsyncpa [#allocation5], 0
    loop: start=0, step=1, limit=4
    $region2: #{biomed_encoder_forward.1} parent=1 // loop_pre_header
      _
    $region3: #{biomed_encoder_forward.1} parent=1 // loop_header
      %s47 = sphi 0, %s51
      %p48 = scmp.ge.s32.totalorder %s47, 4
      %s55 = sphi 0, %s55
      %s57 = sphi 0, %s55
      %s58 = sphi 0, %s57
      %s72 = sphi 0, %s58
      %s76 = sphi 0, %s76
      %s78 = sphi 0, %s76
      %s79 = sphi 0, %s78
      %s93 = sphi 0, %s79
      %s97 = sphi 0, %s97
      %s99 = sphi 0, %s97
      %s100 = sphi 0, %s99
      %s114 = sphi 0, %s100
      %s118 = sphi 0, %s118
      %s120 = sphi 0, %s118
      %s121 = sphi 0, %s120
      %s135 = sphi 0, %s121
      %s139 = sphi 0, %s139
      %s141 = sphi 0, %s139
      %s142 = sphi 0, %s141
      %s156 = sphi 0, %s142
      %s160 = sphi 0, %s160
      %s162 = sphi 0, %s160
      %s163 = sphi 0, %s162
      %s177 = sphi 0, %s163
      %s181 = sphi 0, %s181
      %s183 = sphi 0, %s181
      %s184 = sphi 0, %s183
      %s198 = sphi 0, %s184
      %s204 = sphi 0, %s206
      %s207 = sphi 0, %s204
      %s208 = sphi 0, %s207
      %s224 = sphi 0, %s208
      %s230 = sphi 0, %s232
      %s233 = sphi 0, %s230
      %s234 = sphi 0, %s233
      %s250 = sphi 0, %s234
      %s256 = sphi 0, %s258
      %s259 = sphi 0, %s256
      %s260 = sphi 0, %s259
      %s276 = sphi 0, %s260
      %s282 = sphi 0, %s284
      %s285 = sphi 0, %s282
      %s286 = sphi 0, %s285
      %s302 = sphi 0, %s286
      %s308 = sphi 0, %s310
      %s311 = sphi 0, %s308
      %s312 = sphi 0, %s311
      %s328 = sphi 0, %s312
      %s334 = sphi 0, %s336
      %s337 = sphi 0, %s334
      %s338 = sphi 0, %s337
      %s354 = sphi 0, %s338
      %s360 = sphi 0, %s362
      %s363 = sphi 0, %s360
      %s364 = sphi 0, %s363
      %s380 = sphi 0, %s364
      %s386 = sphi 0, %s388
      %s389 = sphi 0, %s386
      %s390 = sphi 0, %s389
      %s406 = sphi 0, %s390
      %s412 = sphi 0, %s414
      %s415 = sphi 0, %s412
      %s416 = sphi 0, %s415
      %s432 = sphi 0, %s416
      %s438 = sphi 0, %s440
      %s441 = sphi 0, %s438
      %s442 = sphi 0, %s441
      %s458 = sphi 0, %s442
      %s464 = sphi 0, %s466
      %s467 = sphi 0, %s464
      %s468 = sphi 0, %s467
      %s484 = sphi 0, %s468
      %s490 = sphi 0, %s492
      %s493 = sphi 0, %s490
      %s494 = sphi 0, %s493
      %s510 = sphi 0, %s494
      %s514 = sphi 0, %s514
      %s516 = sphi 0, %s514
      %s517 = sphi 0, %s516
      %s531 = sphi 0, %s517
    $region4: #{biomed_encoder_forward.1} parent=1 // loop_header_branch
      %50 = sbr.rel (%p48) target = $region8
    $region5: #{biomed_encoder_forward.1} parent=1 // loop_body
      %s52 = ssub.s32 %s47, 1
      %s53 = ssub.s32 %s47, 2
      %s54 = sadd.s32 %s47, 1
      %s56 = sadd.s32 %s55, 1
      %p59 = scmp.eq.s32.totalorder %s47, 1
      %p60 = scmp.ne.s32.totalorder %s55, %s57
      %p61 = scmp.eq.s32.totalorder %s47, 0
      %p62 = por %p60, %p61
      %p63 = scmp.ne.s32.totalorder %s55, %s57
      %p64 = scmp.eq.s32.totalorder %s52, 1
      %p65 = por %p63, %p64
      %p66 = scmp.ne.s32.totalorder %s57, %s58
      %p67 = scmp.eq.s32.totalorder %s52, 0
      %p68 = por %p66, %p67
      %p69 = scmp.ne.s32.totalorder %s57, %s58
      %p70 = scmp.eq.s32.totalorder %s53, 1
      %p71 = por %p69, %p70
      %p73 = scmp.ne.s32.totalorder %s58, %s72
      %p74 = scmp.eq.s32.totalorder %s53, 0
      %p75 = por %p73, %p74
      %s77 = sadd.s32 %s76, 1
      %p80 = scmp.eq.s32.totalorder %s47, 1
      %p81 = scmp.ne.s32.totalorder %s76, %s78
      %p82 = scmp.eq.s32.totalorder %s47, 0
      %p83 = por %p81, %p82
      %p84 = scmp.ne.s32.totalorder %s76, %s78
      %p85 = scmp.eq.s32.totalorder %s52, 1
      %p86 = por %p84, %p85
      %p87 = scmp.ne.s32.totalorder %s78, %s79
      %p88 = scmp.eq.s32.totalorder %s52, 0
      %p89 = por %p87, %p88
      %p90 = scmp.ne.s32.totalorder %s78, %s79
      %p91 = scmp.eq.s32.totalorder %s53, 1
      %p92 = por %p90, %p91
      %p94 = scmp.ne.s32.totalorder %s79, %s93
      %p95 = scmp.eq.s32.totalorder %s53, 0
      %p96 = por %p94, %p95
      %s98 = sadd.s32 %s97, 1
      %p101 = scmp.eq.s32.totalorder %s47, 1
      %p102 = scmp.ne.s32.totalorder %s97, %s99
      %p103 = scmp.eq.s32.totalorder %s47, 0
      %p104 = por %p102, %p103
      %p105 = scmp.ne.s32.totalorder %s97, %s99
      %p106 = scmp.eq.s32.totalorder %s52, 1
      %p107 = por %p105, %p106
      %p108 = scmp.ne.s32.totalorder %s99, %s100
      %p109 = scmp.eq.s32.totalorder %s52, 0
      %p110 = por %p108, %p109
      %p111 = scmp.ne.s32.totalorder %s99, %s100
      %p112 = scmp.eq.s32.totalorder %s53, 1
      %p113 = por %p111, %p112
      %p115 = scmp.ne.s32.totalorder %s100, %s114
      %p116 = scmp.eq.s32.totalorder %s53, 0
      %p117 = por %p115, %p116
      %s119 = sadd.s32 %s118, 1
      %p122 = scmp.eq.s32.totalorder %s47, 1
      %p123 = scmp.ne.s32.totalorder %s118, %s120
      %p124 = scmp.eq.s32.totalorder %s47, 0
      %p125 = por %p123, %p124
      %p126 = scmp.ne.s32.totalorder %s118, %s120
      %p127 = scmp.eq.s32.totalorder %s52, 1
      %p128 = por %p126, %p127
      %p129 = scmp.ne.s32.totalorder %s120, %s121
      %p130 = scmp.eq.s32.totalorder %s52, 0
      %p131 = por %p129, %p130
      %p132 = scmp.ne.s32.totalorder %s120, %s121
      %p133 = scmp.eq.s32.totalorder %s53, 1
      %p134 = por %p132, %p133
      %p136 = scmp.ne.s32.totalorder %s121, %s135
      %p137 = scmp.eq.s32.totalorder %s53, 0
      %p138 = por %p136, %p137
      %s140 = sadd.s32 %s139, 1
      %p143 = scmp.eq.s32.totalorder %s47, 1
      %p144 = scmp.ne.s32.totalorder %s139, %s141
      %p145 = scmp.eq.s32.totalorder %s47, 0
      %p146 = por %p144, %p145
      %p147 = scmp.ne.s32.totalorder %s139, %s141
      %p148 = scmp.eq.s32.totalorder %s52, 1
      %p149 = por %p147, %p148
      %p150 = scmp.ne.s32.totalorder %s141, %s142
      %p151 = scmp.eq.s32.totalorder %s52, 0
      %p152 = por %p150, %p151
      %p153 = scmp.ne.s32.totalorder %s141, %s142
      %p154 = scmp.eq.s32.totalorder %s53, 1
      %p155 = por %p153, %p154
      %p157 = scmp.ne.s32.totalorder %s142, %s156
      %p158 = scmp.eq.s32.totalorder %s53, 0
      %p159 = por %p157, %p158
      %s161 = sadd.s32 %s160, 1
      %p164 = scmp.eq.s32.totalorder %s47, 1
      %p165 = scmp.ne.s32.totalorder %s160, %s162
      %p166 = scmp.eq.s32.totalorder %s47, 0
      %p167 = por %p165, %p166
      %p168 = scmp.ne.s32.totalorder %s160, %s162
      %p169 = scmp.eq.s32.totalorder %s52, 1
      %p170 = por %p168, %p169
      %p171 = scmp.ne.s32.totalorder %s162, %s163
      %p172 = scmp.eq.s32.totalorder %s52, 0
      %p173 = por %p171, %p172
      %p174 = scmp.ne.s32.totalorder %s162, %s163
      %p175 = scmp.eq.s32.totalorder %s53, 1
      %p176 = por %p174, %p175
      %p178 = scmp.ne.s32.totalorder %s163, %s177
      %p179 = scmp.eq.s32.totalorder %s53, 0
      %p180 = por %p178, %p179
      %s182 = sadd.s32 %s181, 1
      %p185 = scmp.eq.s32.totalorder %s47, 1
      %p186 = scmp.ne.s32.totalorder %s181, %s183
      %p187 = scmp.eq.s32.totalorder %s47, 0
      %p188 = por %p186, %p187
      %p189 = scmp.ne.s32.totalorder %s181, %s183
      %p190 = scmp.eq.s32.totalorder %s52, 1
      %p191 = por %p189, %p190
      %p192 = scmp.ne.s32.totalorder %s183, %s184
      %p193 = scmp.eq.s32.totalorder %s52, 0
      %p194 = por %p192, %p193
      %p195 = scmp.ne.s32.totalorder %s183, %s184
      %p196 = scmp.eq.s32.totalorder %s53, 1
      %p197 = por %p195, %p196
      %p199 = scmp.ne.s32.totalorder %s184, %s198
      %p200 = scmp.eq.s32.totalorder %s53, 0
      %p201 = por %p199, %p200
      %s202 = ssub.s32 %s47, %s54
      %p203 = scmp.eq.s32.totalorder %s202, 0
      %s205 = sadd.s32 %s204, 1
      %s206 = scalar_select %p203, %s204, %s205
      %p209 = pneg %p203
      %p210 = scmp.eq.s32.totalorder %s47, 1
      %p211 = por %p209, %p210
      %p212 = scmp.ne.s32.totalorder %s204, %s207
      %p213 = scmp.eq.s32.totalorder %s47, 0
      %p214 = por %p212, %p213
      %p215 = scmp.ne.s32.totalorder %s204, %s207
      %p216 = scmp.eq.s32.totalorder %s52, 1
      %p217 = por %p215, %p216
      %p218 = scmp.ne.s32.totalorder %s207, %s208
      %p219 = scmp.eq.s32.totalorder %s52, 0
      %p220 = por %p218, %p219
      %p221 = scmp.ne.s32.totalorder %s207, %s208
      %p222 = scmp.eq.s32.totalorder %s53, 1
      %p223 = por %p221, %p222
      %p225 = scmp.ne.s32.totalorder %s208, %s224
      %p226 = scmp.eq.s32.totalorder %s53, 0
      %p227 = por %p225, %p226
      %s228 = ssub.s32 %s47, %s54
      %p229 = scmp.eq.s32.totalorder %s228, 0
      %s231 = sadd.s32 %s230, 1
      %s232 = scalar_select %p229, %s230, %s231
      %p235 = pneg %p229
      %p236 = scmp.eq.s32.totalorder %s47, 1
      %p237 = por %p235, %p236
      %p238 = scmp.ne.s32.totalorder %s230, %s233
      %p239 = scmp.eq.s32.totalorder %s47, 0
      %p240 = por %p238, %p239
      %p241 = scmp.ne.s32.totalorder %s230, %s233
      %p242 = scmp.eq.s32.totalorder %s52, 1
      %p243 = por %p241, %p242
      %p244 = scmp.ne.s32.totalorder %s233, %s234
      %p245 = scmp.eq.s32.totalorder %s52, 0
      %p246 = por %p244, %p245
      %p247 = scmp.ne.s32.totalorder %s233, %s234
      %p248 = scmp.eq.s32.totalorder %s53, 1
      %p249 = por %p247, %p248
      %p251 = scmp.ne.s32.totalorder %s234, %s250
      %p252 = scmp.eq.s32.totalorder %s53, 0
      %p253 = por %p251, %p252
      %s254 = ssub.s32 %s47, %s54
      %p255 = scmp.eq.s32.totalorder %s254, 0
      %s257 = sadd.s32 %s256, 1
      %s258 = scalar_select %p255, %s256, %s257
      %p261 = pneg %p255
      %p262 = scmp.eq.s32.totalorder %s47, 1
      %p263 = por %p261, %p262
      %p264 = scmp.ne.s32.totalorder %s256, %s259
      %p265 = scmp.eq.s32.totalorder %s47, 0
      %p266 = por %p264, %p265
      %p267 = scmp.ne.s32.totalorder %s256, %s259
      %p268 = scmp.eq.s32.totalorder %s52, 1
      %p269 = por %p267, %p268
      %p270 = scmp.ne.s32.totalorder %s259, %s260
      %p271 = scmp.eq.s32.totalorder %s52, 0
      %p272 = por %p270, %p271
      %p273 = scmp.ne.s32.totalorder %s259, %s260
      %p274 = scmp.eq.s32.totalorder %s53, 1
      %p275 = por %p273, %p274
      %p277 = scmp.ne.s32.totalorder %s260, %s276
      %p278 = scmp.eq.s32.totalorder %s53, 0
      %p279 = por %p277, %p278
      %s280 = ssub.s32 %s47, %s54
      %p281 = scmp.eq.s32.totalorder %s280, 0
      %s283 = sadd.s32 %s282, 1
      %s284 = scalar_select %p281, %s282, %s283
      %p287 = pneg %p281
      %p288 = scmp.eq.s32.totalorder %s47, 1
      %p289 = por %p287, %p288
      %p290 = scmp.ne.s32.totalorder %s282, %s285
      %p291 = scmp.eq.s32.totalorder %s47, 0
      %p292 = por %p290, %p291
      %p293 = scmp.ne.s32.totalorder %s282, %s285
      %p294 = scmp.eq.s32.totalorder %s52, 1
      %p295 = por %p293, %p294
      %p296 = scmp.ne.s32.totalorder %s285, %s286
      %p297 = scmp.eq.s32.totalorder %s52, 0
      %p298 = por %p296, %p297
      %p299 = scmp.ne.s32.totalorder %s285, %s286
      %p300 = scmp.eq.s32.totalorder %s53, 1
      %p301 = por %p299, %p300
      %p303 = scmp.ne.s32.totalorder %s286, %s302
      %p304 = scmp.eq.s32.totalorder %s53, 0
      %p305 = por %p303, %p304
      %s306 = ssub.s32 %s47, %s54
      %p307 = scmp.eq.s32.totalorder %s306, 0
      %s309 = sadd.s32 %s308, 1
      %s310 = scalar_select %p307, %s308, %s309
      %p313 = pneg %p307
      %p314 = scmp.eq.s32.totalorder %s47, 1
      %p315 = por %p313, %p314
      %p316 = scmp.ne.s32.totalorder %s308, %s311
      %p317 = scmp.eq.s32.totalorder %s47, 0
      %p318 = por %p316, %p317
      %p319 = scmp.ne.s32.totalorder %s308, %s311
      %p320 = scmp.eq.s32.totalorder %s52, 1
      %p321 = por %p319, %p320
      %p322 = scmp.ne.s32.totalorder %s311, %s312
      %p323 = scmp.eq.s32.totalorder %s52, 0
      %p324 = por %p322, %p323
      %p325 = scmp.ne.s32.totalorder %s311, %s312
      %p326 = scmp.eq.s32.totalorder %s53, 1
      %p327 = por %p325, %p326
      %p329 = scmp.ne.s32.totalorder %s312, %s328
      %p330 = scmp.eq.s32.totalorder %s53, 0
      %p331 = por %p329, %p330
      %s332 = ssub.s32 %s47, %s54
      %p333 = scmp.eq.s32.totalorder %s332, 0
      %s335 = sadd.s32 %s334, 1
      %s336 = scalar_select %p333, %s334, %s335
      %p339 = pneg %p333
      %p340 = scmp.eq.s32.totalorder %s47, 1
      %p341 = por %p339, %p340
      %p342 = scmp.ne.s32.totalorder %s334, %s337
      %p343 = scmp.eq.s32.totalorder %s47, 0
      %p344 = por %p342, %p343
      %p345 = scmp.ne.s32.totalorder %s334, %s337
      %p346 = scmp.eq.s32.totalorder %s52, 1
      %p347 = por %p345, %p346
      %p348 = scmp.ne.s32.totalorder %s337, %s338
      %p349 = scmp.eq.s32.totalorder %s52, 0
      %p350 = por %p348, %p349
      %p351 = scmp.ne.s32.totalorder %s337, %s338
      %p352 = scmp.eq.s32.totalorder %s53, 1
      %p353 = por %p351, %p352
      %p355 = scmp.ne.s32.totalorder %s338, %s354
      %p356 = scmp.eq.s32.totalorder %s53, 0
      %p357 = por %p355, %p356
      %s358 = ssub.s32 %s47, %s54
      %p359 = scmp.eq.s32.totalorder %s358, 0
      %s361 = sadd.s32 %s360, 1
      %s362 = scalar_select %p359, %s360, %s361
      %p365 = pneg %p359
      %p366 = scmp.eq.s32.totalorder %s47, 1
      %p367 = por %p365, %p366
      %p368 = scmp.ne.s32.totalorder %s360, %s363
      %p369 = scmp.eq.s32.totalorder %s47, 0
      %p370 = por %p368, %p369
      %p371 = scmp.ne.s32.totalorder %s360, %s363
      %p372 = scmp.eq.s32.totalorder %s52, 1
      %p373 = por %p371, %p372
      %p374 = scmp.ne.s32.totalorder %s363, %s364
      %p375 = scmp.eq.s32.totalorder %s52, 0
      %p376 = por %p374, %p375
      %p377 = scmp.ne.s32.totalorder %s363, %s364
      %p378 = scmp.eq.s32.totalorder %s53, 1
      %p379 = por %p377, %p378
      %p381 = scmp.ne.s32.totalorder %s364, %s380
      %p382 = scmp.eq.s32.totalorder %s53, 0
      %p383 = por %p381, %p382
      %s384 = ssub.s32 %s47, %s54
      %p385 = scmp.eq.s32.totalorder %s384, 0
      %s387 = sadd.s32 %s386, 1
      %s388 = scalar_select %p385, %s386, %s387
      %p391 = pneg %p385
      %p392 = scmp.eq.s32.totalorder %s47, 1
      %p393 = por %p391, %p392
      %p394 = scmp.ne.s32.totalorder %s386, %s389
      %p395 = scmp.eq.s32.totalorder %s47, 0
      %p396 = por %p394, %p395
      %p397 = scmp.ne.s32.totalorder %s386, %s389
      %p398 = scmp.eq.s32.totalorder %s52, 1
      %p399 = por %p397, %p398
      %p400 = scmp.ne.s32.totalorder %s389, %s390
      %p401 = scmp.eq.s32.totalorder %s52, 0
      %p402 = por %p400, %p401
      %p403 = scmp.ne.s32.totalorder %s389, %s390
      %p404 = scmp.eq.s32.totalorder %s53, 1
      %p405 = por %p403, %p404
      %p407 = scmp.ne.s32.totalorder %s390, %s406
      %p408 = scmp.eq.s32.totalorder %s53, 0
      %p409 = por %p407, %p408
      %s410 = ssub.s32 %s47, %s54
      %p411 = scmp.eq.s32.totalorder %s410, 0
      %s413 = sadd.s32 %s412, 1
      %s414 = scalar_select %p411, %s412, %s413
      %p417 = pneg %p411
      %p418 = scmp.eq.s32.totalorder %s47, 1
      %p419 = por %p417, %p418
      %p420 = scmp.ne.s32.totalorder %s412, %s415
      %p421 = scmp.eq.s32.totalorder %s47, 0
      %p422 = por %p420, %p421
      %p423 = scmp.ne.s32.totalorder %s412, %s415
      %p424 = scmp.eq.s32.totalorder %s52, 1
      %p425 = por %p423, %p424
      %p426 = scmp.ne.s32.totalorder %s415, %s416
      %p427 = scmp.eq.s32.totalorder %s52, 0
      %p428 = por %p426, %p427
      %p429 = scmp.ne.s32.totalorder %s415, %s416
      %p430 = scmp.eq.s32.totalorder %s53, 1
      %p431 = por %p429, %p430
      %p433 = scmp.ne.s32.totalorder %s416, %s432
      %p434 = scmp.eq.s32.totalorder %s53, 0
      %p435 = por %p433, %p434
      %s436 = ssub.s32 %s47, %s54
      %p437 = scmp.eq.s32.totalorder %s436, 0
      %s439 = sadd.s32 %s438, 1
      %s440 = scalar_select %p437, %s438, %s439
      %p443 = pneg %p437
      %p444 = scmp.eq.s32.totalorder %s47, 1
      %p445 = por %p443, %p444
      %p446 = scmp.ne.s32.totalorder %s438, %s441
      %p447 = scmp.eq.s32.totalorder %s47, 0
      %p448 = por %p446, %p447
      %p449 = scmp.ne.s32.totalorder %s438, %s441
      %p450 = scmp.eq.s32.totalorder %s52, 1
      %p451 = por %p449, %p450
      %p452 = scmp.ne.s32.totalorder %s441, %s442
      %p453 = scmp.eq.s32.totalorder %s52, 0
      %p454 = por %p452, %p453
      %p455 = scmp.ne.s32.totalorder %s441, %s442
      %p456 = scmp.eq.s32.totalorder %s53, 1
      %p457 = por %p455, %p456
      %p459 = scmp.ne.s32.totalorder %s442, %s458
      %p460 = scmp.eq.s32.totalorder %s53, 0
      %p461 = por %p459, %p460
      %s462 = ssub.s32 %s47, %s54
      %p463 = scmp.eq.s32.totalorder %s462, 0
      %s465 = sadd.s32 %s464, 1
      %s466 = scalar_select %p463, %s464, %s465
      %p469 = pneg %p463
      %p470 = scmp.eq.s32.totalorder %s47, 1
      %p471 = por %p469, %p470
      %p472 = scmp.ne.s32.totalorder %s464, %s467
      %p473 = scmp.eq.s32.totalorder %s47, 0
      %p474 = por %p472, %p473
      %p475 = scmp.ne.s32.totalorder %s464, %s467
      %p476 = scmp.eq.s32.totalorder %s52, 1
      %p477 = por %p475, %p476
      %p478 = scmp.ne.s32.totalorder %s467, %s468
      %p479 = scmp.eq.s32.totalorder %s52, 0
      %p480 = por %p478, %p479
      %p481 = scmp.ne.s32.totalorder %s467, %s468
      %p482 = scmp.eq.s32.totalorder %s53, 1
      %p483 = por %p481, %p482
      %p485 = scmp.ne.s32.totalorder %s468, %s484
      %p486 = scmp.eq.s32.totalorder %s53, 0
      %p487 = por %p485, %p486
      %s488 = ssub.s32 %s47, %s54
      %p489 = scmp.eq.s32.totalorder %s488, 0
      %s491 = sadd.s32 %s490, 1
      %s492 = scalar_select %p489, %s490, %s491
      %p495 = pneg %p489
      %p496 = scmp.eq.s32.totalorder %s47, 1
      %p497 = por %p495, %p496
      %p498 = scmp.ne.s32.totalorder %s490, %s493
      %p499 = scmp.eq.s32.totalorder %s47, 0
      %p500 = por %p498, %p499
      %p501 = scmp.ne.s32.totalorder %s490, %s493
      %p502 = scmp.eq.s32.totalorder %s52, 1
      %p503 = por %p501, %p502
      %p504 = scmp.ne.s32.totalorder %s493, %s494
      %p505 = scmp.eq.s32.totalorder %s52, 0
      %p506 = por %p504, %p505
      %p507 = scmp.ne.s32.totalorder %s493, %s494
      %p508 = scmp.eq.s32.totalorder %s53, 1
      %p509 = por %p507, %p508
      %p511 = scmp.ne.s32.totalorder %s494, %s510
      %p512 = scmp.eq.s32.totalorder %s53, 0
      %p513 = por %p511, %p512
      %s515 = sadd.s32 %s514, 1
      %p518 = scmp.eq.s32.totalorder %s47, 1
      %p519 = scmp.ne.s32.totalorder %s514, %s516
      %p520 = scmp.eq.s32.totalorder %s47, 0
      %p521 = por %p519, %p520
      %p522 = scmp.ne.s32.totalorder %s514, %s516
      %p523 = scmp.eq.s32.totalorder %s52, 1
      %p524 = por %p522, %p523
      %p525 = scmp.ne.s32.totalorder %s516, %s517
      %p526 = scmp.eq.s32.totalorder %s52, 0
      %p527 = por %p525, %p526
      %p528 = scmp.ne.s32.totalorder %s516, %s517
      %p529 = scmp.eq.s32.totalorder %s53, 1
      %p530 = por %p528, %p529
      %p532 = scmp.ne.s32.totalorder %s517, %s531
      %p533 = scmp.eq.s32.totalorder %s53, 0
      %p534 = por %p532, %p533
      %p535 = scmp.le.s32.totalorder 1, %s47
      %p536 = scmp.lt.s32.totalorder %s47, 3
      %p537 = pnand %p535, %p536
      %p538 = pneg %p537
      // Predicated region
      $region9: #{biomed_encoder_forward.1} parent=5 // pred_check
        _
      $region10: #{biomed_encoder_forward.1} parent=5 // pred_check_branch
        %540 = sbr.rel (%p537) target = $region12
      $region11: #{biomed_encoder_forward.1} parent=5 // pred_region
        %s541 = ssub.s32 %s47, 1
        // Predicated region
        $region13: #{biomed_encoder_forward.1} parent=11 // pred_check
          %p542 = pneg %p68
        $region14: #{biomed_encoder_forward.1} parent=11 // pred_check_branch
          %544 = sbr.rel (%p542) target = $region16
        $region15: #{biomed_encoder_forward.1} parent=11 // pred_region
          _
        $region16: #{biomed_encoder_forward.1} parent=11 // pred_fallthru
          _
        // Predicated region
        $region17: #{biomed_encoder_forward.1} parent=11 // pred_check
          %p545 = pneg %p89
        $region18: #{biomed_encoder_forward.1} parent=11 // pred_check_branch
          %547 = sbr.rel (%p545) target = $region20
        $region19: #{biomed_encoder_forward.1} parent=11 // pred_region
          _
        $region20: #{biomed_encoder_forward.1} parent=11 // pred_fallthru
          _
        // Predicated region
        $region21: #{biomed_encoder_forward.1} parent=11 // pred_check
          %p548 = pneg %p110
        $region22: #{biomed_encoder_forward.1} parent=11 // pred_check_branch
          %550 = sbr.rel (%p548) target = $region24
        $region23: #{biomed_encoder_forward.1} parent=11 // pred_region
          _
        $region24: #{biomed_encoder_forward.1} parent=11 // pred_fallthru
          _
        // Predicated region
        $region25: #{biomed_encoder_forward.1} parent=11 // pred_check
          %p551 = pneg %p131
        $region26: #{biomed_encoder_forward.1} parent=11 // pred_check_branch
          %553 = sbr.rel (%p551) target = $region28
        $region27: #{biomed_encoder_forward.1} parent=11 // pred_region
          _
        $region28: #{biomed_encoder_forward.1} parent=11 // pred_fallthru
          _
        // Predicated region
        $region29: #{biomed_encoder_forward.1} parent=11 // pred_check
          %p554 = pneg %p152
        $region30: #{biomed_encoder_forward.1} parent=11 // pred_check_branch
          %556 = sbr.rel (%p554) target = $region32
        $region31: #{biomed_encoder_forward.1} parent=11 // pred_region
          _
        $region32: #{biomed_encoder_forward.1} parent=11 // pred_fallthru
          _
        // Predicated region
        $region33: #{biomed_encoder_forward.1} parent=11 // pred_check
          %p557 = pneg %p173
        $region34: #{biomed_encoder_forward.1} parent=11 // pred_check_branch
          %559 = sbr.rel (%p557) target = $region36
        $region35: #{biomed_encoder_forward.1} parent=11 // pred_region
          _
        $region36: #{biomed_encoder_forward.1} parent=11 // pred_fallthru
          _
        // Predicated region
        $region37: #{biomed_encoder_forward.1} parent=11 // pred_check
          %p560 = pneg %p194
        $region38: #{biomed_encoder_forward.1} parent=11 // pred_check_branch
          %562 = sbr.rel (%p560) target = $region40
        $region39: #{biomed_encoder_forward.1} parent=11 // pred_region
          _
        $region40: #{biomed_encoder_forward.1} parent=11 // pred_fallthru
          _
      $region12: #{biomed_encoder_forward.1} parent=5 // pred_fallthru
        _
      %p563 = scmp.lt.s32.totalorder %s47, 2
      // Predicated region
      $region41: #{biomed_encoder_forward.1} parent=5 // pred_check
        %p564 = pneg %p563
      $region42: #{biomed_encoder_forward.1} parent=5 // pred_check_branch
        %566 = sbr.rel (%p564) target = $region44
      $region43: #{biomed_encoder_forward.1} parent=5 // pred_region
        // Predicated region
        $region45: #{biomed_encoder_forward.1} parent=43 // pred_check
          %p567 = pneg %p214
        $region46: #{biomed_encoder_forward.1} parent=43 // pred_check_branch
          %569 = sbr.rel (%p567) target = $region48
        $region47: #{biomed_encoder_forward.1} parent=43 // pred_region
          %s570 = sand.u32 %s204, 1
          %s571 = scalar_lea.sflag [#allocation4], %s570
          %s572 = sand.u32 %s204, 1
          %s573 = smul.addr %s572, 192
          %s574 = scalar_lea.vmem [#allocation3], %s573
          %s576 = ssub.s32 3072, 3072
          %577 = vsyncadd %s571, %s576
          %s578 = smul.addr %s47, 48
          %s579 = smul.addr %s578, 64
          %s580 = scalar_lea.hbm %s7, %s579
          %s581 = sshll.u32 %s574, 4
          %s582 = int_to_ptr.vmem [resolvable:$true] %s581
          %587 = dma.hbm_to_vmem [thread:$0]  %s580, 3072, %s582, %s571, 192, 192, 12
        $region48: #{biomed_encoder_forward.1} parent=43 // pred_fallthru
          _
        // Predicated region
        $region49: #{biomed_encoder_forward.1} parent=43 // pred_check
          %p588 = pneg %p240
        $region50: #{biomed_encoder_forward.1} parent=43 // pred_check_branch
          %590 = sbr.rel (%p588) target = $region52
        $region51: #{biomed_encoder_forward.1} parent=43 // pred_region
          %s591 = sand.u32 %s47, 1
          %s592 = scalar_lea.sflag [#allocation7], %s591
          %s593 = sand.u32 %s230, 1
          %s594 = smul.addr %s593, 3
          %s595 = scalar_lea.vmem [#allocation6], %s594
          %s597 = ssub.s32 48, 48
          %598 = vsyncadd %s592, %s597
          %s599 = smul.addr %s47, 3
          %s600 = smul.addr %s599, 16
          %s601 = scalar_lea.hbm %s8, %s600
          %s603 = sshll.u32 %s595, 4
          %s604 = int_to_ptr.vmem [resolvable:$true] %s603
          %606 = dma.hbm_to_vmem [thread:$0]  %s601, 48, %s604, %s592
        $region52: #{biomed_encoder_forward.1} parent=43 // pred_fallthru
          _
        // Predicated region
        $region53: #{biomed_encoder_forward.1} parent=43 // pred_check
          %p607 = pneg %p266
        $region54: #{biomed_encoder_forward.1} parent=43 // pred_check_branch
          %609 = sbr.rel (%p607) target = $region56
        $region55: #{biomed_encoder_forward.1} parent=43 // pred_region
          %s610 = sand.u32 %s47, 1
          %s611 = scalar_lea.sflag [#allocation7], %s610
          %s612 = sand.u32 %s256, 1
          %s613 = smul.addr %s612, 64
          %s614 = scalar_lea.vmem [#allocation8], %s613
          %s616 = ssub.s32 1024, 1024
          %617 = vsyncadd %s611, %s616
          %s618 = smul.addr %s47, 16
          %s619 = smul.addr %s618, 64
          %s620 = scalar_lea.hbm %s9, %s619
          %s621 = sshll.u32 %s614, 4
          %s622 = int_to_ptr.vmem [resolvable:$true] %s621
          %627 = dma.hbm_to_vmem [thread:$0]  %s620, 1024, %s622, %s611, 64, 64, 4
        $region56: #{biomed_encoder_forward.1} parent=43 // pred_fallthru
          _
        // Predicated region
        $region57: #{biomed_encoder_forward.1} parent=43 // pred_check
          %p628 = pneg %p292
        $region58: #{biomed_encoder_forward.1} parent=43 // pred_check_branch
          %630 = sbr.rel (%p628) target = $region60
        $region59: #{biomed_encoder_forward.1} parent=43 // pred_region
          %s631 = sand.u32 %s47, 1
          %s632 = scalar_lea.sflag [#allocation10], %s631
          %s633 = sand.u32 %s282, 1
          %s634 = scalar_lea.vmem [#allocation9], %s633
          %s636 = ssub.s32 16, 16
          %637 = vsyncadd %s632, %s636
          %s638 = smul.addr %s47, 16
          %s639 = scalar_lea.hbm %s10, %s638
          %s641 = sshll.u32 %s634, 4
          %s642 = int_to_ptr.vmem [resolvable:$true] %s641
          %644 = dma.hbm_to_vmem [thread:$0]  %s639, 16, %s642, %s632
        $region60: #{biomed_encoder_forward.1} parent=43 // pred_fallthru
          _
        // Predicated region
        $region61: #{biomed_encoder_forward.1} parent=43 // pred_check
          %p645 = pneg %p318
        $region62: #{biomed_encoder_forward.1} parent=43 // pred_check_branch
          %647 = sbr.rel (%p645) target = $region64
        $region63: #{biomed_encoder_forward.1} parent=43 // pred_region
          %s648 = sand.u32 %s47, 1
          %s649 = scalar_lea.sflag [#allocation10], %s648
          %s650 = sand.u32 %s308, 1
          %s651 = scalar_lea.vmem [#allocation11], %s650
          %s653 = ssub.s32 16, 16
          %654 = vsyncadd %s649, %s653
          %s655 = smul.addr %s47, 16
          %s656 = scalar_lea.hbm %s11, %s655
          %s658 = sshll.u32 %s651, 4
          %s659 = int_to_ptr.vmem [resolvable:$true] %s658
          %661 = dma.hbm_to_vmem [thread:$0]  %s656, 16, %s659, %s649
        $region64: #{biomed_encoder_forward.1} parent=43 // pred_fallthru
          _
        // Predicated region
        $region65: #{biomed_encoder_forward.1} parent=43 // pred_check
          %p662 = pneg %p344
        $region66: #{biomed_encoder_forward.1} parent=43 // pred_check_branch
          %664 = sbr.rel (%p662) target = $region68
        $region67: #{biomed_encoder_forward.1} parent=43 // pred_region
          %s665 = sand.u32 %s47, 1
          %s666 = scalar_lea.sflag [#allocation13], %s665
          %s667 = sand.u32 %s334, 1
          %s668 = scalar_lea.vmem [#allocation12], %s667
          %s670 = ssub.s32 16, 16
          %671 = vsyncadd %s666, %s670
          %s672 = smul.addr %s47, 16
          %s673 = scalar_lea.hbm %s12, %s672
          %s675 = sshll.u32 %s668, 4
          %s676 = int_to_ptr.vmem [resolvable:$true] %s675
          %678 = dma.hbm_to_vmem [thread:$0]  %s673, 16, %s676, %s666
        $region68: #{biomed_encoder_forward.1} parent=43 // pred_fallthru
          _
        // Predicated region
        $region69: #{biomed_encoder_forward.1} parent=43 // pred_check
          %p679 = pneg %p370
        $region70: #{biomed_encoder_forward.1} parent=43 // pred_check_branch
          %681 = sbr.rel (%p679) target = $region72
        $region71: #{biomed_encoder_forward.1} parent=43 // pred_region
          %s682 = sand.u32 %s47, 1
          %s683 = scalar_lea.sflag [#allocation13], %s682
          %s684 = sand.u32 %s360, 1
          %s685 = smul.addr %s684, 256
          %s686 = scalar_lea.vmem [#allocation14], %s685
          %s688 = ssub.s32 4096, 4096
          %689 = vsyncadd %s683, %s688
          %s690 = smul.addr %s47, 64
          %s691 = smul.addr %s690, 64
          %s692 = scalar_lea.hbm %s13, %s691
          %s693 = sshll.u32 %s686, 4
          %s694 = int_to_ptr.vmem [resolvable:$true] %s693
          %699 = dma.hbm_to_vmem [thread:$0]  %s692, 4096, %s694, %s683, 256, 256, 16
        $region72: #{biomed_encoder_forward.1} parent=43 // pred_fallthru
          _
        // Predicated region
        $region73: #{biomed_encoder_forward.1} parent=43 // pred_check
          %p700 = pneg %p396
        $region74: #{biomed_encoder_forward.1} parent=43 // pred_check_branch
          %702 = sbr.rel (%p700) target = $region76
        $region75: #{biomed_encoder_forward.1} parent=43 // pred_region
          %s703 = sand.u32 %s47, 1
          %s704 = scalar_lea.sflag [#allocation16], %s703
          %s705 = sand.u32 %s386, 1
          %s706 = smul.addr %s705, 4
          %s707 = scalar_lea.vmem [#allocation15], %s706
          %s709 = ssub.s32 64, 64
          %710 = vsyncadd %s704, %s709
          %s711 = smul.addr %s47, 4
          %s712 = smul.addr %s711, 16
          %s713 = scalar_lea.hbm %s14, %s712
          %s715 = sshll.u32 %s707, 4
          %s716 = int_to_ptr.vmem [resolvable:$true] %s715
          %718 = dma.hbm_to_vmem [thread:$0]  %s713, 64, %s716, %s704
        $region76: #{biomed_encoder_forward.1} parent=43 // pred_fallthru
          _
        // Predicated region
        $region77: #{biomed_encoder_forward.1} parent=43 // pred_check
          %p719 = pneg %p422
        $region78: #{biomed_encoder_forward.1} parent=43 // pred_check_branch
          %721 = sbr.rel (%p719) target = $region80
        $region79: #{biomed_encoder_forward.1} parent=43 // pred_region
          %s722 = sand.u32 %s47, 1
          %s723 = scalar_lea.sflag [#allocation16], %s722
          %s724 = sand.u32 %s412, 1
          %s725 = smul.addr %s724, 256
          %s726 = scalar_lea.vmem [#allocation17], %s725
          %s728 = ssub.s32 4096, 4096
          %729 = vsyncadd %s723, %s728
          %s730 = smul.addr %s47, 64
          %s731 = smul.addr %s730, 64
          %s732 = scalar_lea.hbm %s15, %s731
          %s733 = sshll.u32 %s726, 4
          %s734 = int_to_ptr.vmem [resolvable:$true] %s733
          %739 = dma.hbm_to_vmem [thread:$0]  %s732, 4096, %s734, %s723, 64, 64, 4
        $region80: #{biomed_encoder_forward.1} parent=43 // pred_fallthru
          _
        // Predicated region
        $region81: #{biomed_encoder_forward.1} parent=43 // pred_check
          %p740 = pneg %p448
        $region82: #{biomed_encoder_forward.1} parent=43 // pred_check_branch
          %742 = sbr.rel (%p740) target = $region84
        $region83: #{biomed_encoder_forward.1} parent=43 // pred_region
          %s743 = sand.u32 %s47, 1
          %s744 = scalar_lea.sflag [#allocation19], %s743
          %s745 = sand.u32 %s438, 1
          %s746 = scalar_lea.vmem [#allocation18], %s745
          %s748 = ssub.s32 16, 16
          %749 = vsyncadd %s744, %s748
          %s750 = smul.addr %s47, 16
          %s751 = scalar_lea.hbm %s16, %s750
          %s753 = sshll.u32 %s746, 4
          %s754 = int_to_ptr.vmem [resolvable:$true] %s753
          %756 = dma.hbm_to_vmem [thread:$0]  %s751, 16, %s754, %s744
        $region84: #{biomed_encoder_forward.1} parent=43 // pred_fallthru
          _
        // Predicated region
        $region85: #{biomed_encoder_forward.1} parent=43 // pred_check
          %p757 = pneg %p474
        $region86: #{biomed_encoder_forward.1} parent=43 // pred_check_branch
          %759 = sbr.rel (%p757) target = $region88
        $region87: #{biomed_encoder_forward.1} parent=43 // pred_region
          %s760 = sand.u32 %s47, 1
          %s761 = scalar_lea.sflag [#allocation19], %s760
          %s762 = sand.u32 %s464, 1
          %s763 = scalar_lea.vmem [#allocation20], %s762
          %s765 = ssub.s32 16, 16
          %766 = vsyncadd %s761, %s765
          %s767 = smul.addr %s47, 16
          %s768 = scalar_lea.hbm %s17, %s767
          %s770 = sshll.u32 %s763, 4
          %s771 = int_to_ptr.vmem [resolvable:$true] %s770
          %773 = dma.hbm_to_vmem [thread:$0]  %s768, 16, %s771, %s761
        $region88: #{biomed_encoder_forward.1} parent=43 // pred_fallthru
          _
        // Predicated region
        $region89: #{biomed_encoder_forward.1} parent=43 // pred_check
          %p774 = pneg %p500
        $region90: #{biomed_encoder_forward.1} parent=43 // pred_check_branch
          %776 = sbr.rel (%p774) target = $region92
        $region91: #{biomed_encoder_forward.1} parent=43 // pred_region
          %s777 = sand.u32 %s490, 1
          %s778 = scalar_lea.sflag [#allocation22], %s777
          %s779 = sand.u32 %s490, 1
          %s780 = scalar_lea.vmem [#allocation21], %s779
          %s782 = ssub.s32 16, 16
          %783 = vsyncadd %s778, %s782
          %s784 = smul.addr %s47, 16
          %s785 = scalar_lea.hbm %s18, %s784
          %s787 = sshll.u32 %s780, 4
          %s788 = int_to_ptr.vmem [resolvable:$true] %s787
          %790 = dma.hbm_to_vmem [thread:$0]  %s785, 16, %s788, %s778
        $region92: #{biomed_encoder_forward.1} parent=43 // pred_fallthru
          _
      $region44: #{biomed_encoder_forward.1} parent=5 // pred_fallthru
        _
      %p791 = scmp.le.s32.totalorder 1, %s47
      %p792 = scmp.lt.s32.totalorder %s47, 3
      %p793 = pnand %p791, %p792
      %p794 = pneg %p793
      // Predicated region
      $region93: #{biomed_encoder_forward.1} parent=5 // pred_check
        _
      $region94: #{biomed_encoder_forward.1} parent=5 // pred_check_branch
        %796 = sbr.rel (%p793) target = $region96
      $region95: #{biomed_encoder_forward.1} parent=5 // pred_region
        %s797 = ssub.s32 %s47, 1
        %s798 = sand.u32 %s207, 1
        %s799 = scalar_lea.sflag [#allocation4], %s798
        %s800 = sand.u32 %s207, 1
        %s801 = smul.addr %s800, 192
        %s802 = scalar_lea.vmem [#allocation3], %s801
        // Predicated region
        $region97: #{biomed_encoder_forward.1} parent=95 // pred_check
          %p803 = pneg %p220
        $region98: #{biomed_encoder_forward.1} parent=95 // pred_check_branch
          %805 = sbr.rel (%p803) target = $region100
        $region99: #{biomed_encoder_forward.1} parent=95 // pred_region
          %806 = dma.done %s799, 3072
        $region100: #{biomed_encoder_forward.1} parent=95 // pred_fallthru
          _
        %s807 = sand.u32 %s52, 1
        %s808 = scalar_lea.sflag [#allocation7], %s807
        %s809 = sand.u32 %s233, 1
        %s810 = smul.addr %s809, 3
        %s811 = scalar_lea.vmem [#allocation6], %s810
        // Predicated region
        $region101: #{biomed_encoder_forward.1} parent=95 // pred_check
          %p812 = pneg %p246
        $region102: #{biomed_encoder_forward.1} parent=95 // pred_check_branch
          %814 = sbr.rel (%p812) target = $region104
        $region103: #{biomed_encoder_forward.1} parent=95 // pred_region
          %815 = dma.done %s808, 48
        $region104: #{biomed_encoder_forward.1} parent=95 // pred_fallthru
          _
        %s816 = sand.u32 %s52, 1
        %s817 = scalar_lea.sflag [#allocation7], %s816
        %s818 = sand.u32 %s259, 1
        %s819 = smul.addr %s818, 64
        %s820 = scalar_lea.vmem [#allocation8], %s819
        // Predicated region
        $region105: #{biomed_encoder_forward.1} parent=95 // pred_check
          %p821 = pneg %p272
        $region106: #{biomed_encoder_forward.1} parent=95 // pred_check_branch
          %823 = sbr.rel (%p821) target = $region108
        $region107: #{biomed_encoder_forward.1} parent=95 // pred_region
          %824 = dma.done %s817, 1024
        $region108: #{biomed_encoder_forward.1} parent=95 // pred_fallthru
          _
        %s825 = sand.u32 %s52, 1
        %s826 = scalar_lea.sflag [#allocation10], %s825
        %s827 = sand.u32 %s285, 1
        %s828 = scalar_lea.vmem [#allocation9], %s827
        // Predicated region
        $region109: #{biomed_encoder_forward.1} parent=95 // pred_check
          %p829 = pneg %p298
        $region110: #{biomed_encoder_forward.1} parent=95 // pred_check_branch
          %831 = sbr.rel (%p829) target = $region112
        $region111: #{biomed_encoder_forward.1} parent=95 // pred_region
          %832 = dma.done %s826, 16
        $region112: #{biomed_encoder_forward.1} parent=95 // pred_fallthru
          _
        %s833 = sand.u32 %s52, 1
        %s834 = scalar_lea.sflag [#allocation10], %s833
        %s835 = sand.u32 %s311, 1
        %s836 = scalar_lea.vmem [#allocation11], %s835
        // Predicated region
        $region113: #{biomed_encoder_forward.1} parent=95 // pred_check
          %p837 = pneg %p324
        $region114: #{biomed_encoder_forward.1} parent=95 // pred_check_branch
          %839 = sbr.rel (%p837) target = $region116
        $region115: #{biomed_encoder_forward.1} parent=95 // pred_region
          %840 = dma.done %s834, 16
        $region116: #{biomed_encoder_forward.1} parent=95 // pred_fallthru
          _
        %s841 = sand.u32 %s52, 1
        %s842 = scalar_lea.sflag [#allocation13], %s841
        %s843 = sand.u32 %s337, 1
        %s844 = scalar_lea.vmem [#allocation12], %s843
        // Predicated region
        $region117: #{biomed_encoder_forward.1} parent=95 // pred_check
          %p845 = pneg %p350
        $region118: #{biomed_encoder_forward.1} parent=95 // pred_check_branch
          %847 = sbr.rel (%p845) target = $region120
        $region119: #{biomed_encoder_forward.1} parent=95 // pred_region
          %848 = dma.done %s842, 16
        $region120: #{biomed_encoder_forward.1} parent=95 // pred_fallthru
          _
        %s849 = sand.u32 %s52, 1
        %s850 = scalar_lea.sflag [#allocation13], %s849
        %s851 = sand.u32 %s363, 1
        %s852 = smul.addr %s851, 256
        %s853 = scalar_lea.vmem [#allocation14], %s852
        // Predicated region
        $region121: #{biomed_encoder_forward.1} parent=95 // pred_check
          %p854 = pneg %p376
        $region122: #{biomed_encoder_forward.1} parent=95 // pred_check_branch
          %856 = sbr.rel (%p854) target = $region124
        $region123: #{biomed_encoder_forward.1} parent=95 // pred_region
          %857 = dma.done %s850, 4096
        $region124: #{biomed_encoder_forward.1} parent=95 // pred_fallthru
          _
        %s858 = sand.u32 %s52, 1
        %s859 = scalar_lea.sflag [#allocation16], %s858
        %s860 = sand.u32 %s389, 1
        %s861 = smul.addr %s860, 4
        %s862 = scalar_lea.vmem [#allocation15], %s861
        // Predicated region
        $region125: #{biomed_encoder_forward.1} parent=95 // pred_check
          %p863 = pneg %p402
        $region126: #{biomed_encoder_forward.1} parent=95 // pred_check_branch
          %865 = sbr.rel (%p863) target = $region128
        $region127: #{biomed_encoder_forward.1} parent=95 // pred_region
          %866 = dma.done %s859, 64
        $region128: #{biomed_encoder_forward.1} parent=95 // pred_fallthru
          _
        %s867 = sand.u32 %s52, 1
        %s868 = scalar_lea.sflag [#allocation16], %s867
        %s869 = sand.u32 %s415, 1
        %s870 = smul.addr %s869, 256
        %s871 = scalar_lea.vmem [#allocation17], %s870
        // Predicated region
        $region129: #{biomed_encoder_forward.1} parent=95 // pred_check
          %p872 = pneg %p428
        $region130: #{biomed_encoder_forward.1} parent=95 // pred_check_branch
          %874 = sbr.rel (%p872) target = $region132
        $region131: #{biomed_encoder_forward.1} parent=95 // pred_region
          %875 = dma.done %s868, 4096
        $region132: #{biomed_encoder_forward.1} parent=95 // pred_fallthru
          _
        %s876 = sand.u32 %s52, 1
        %s877 = scalar_lea.sflag [#allocation19], %s876
        %s878 = sand.u32 %s441, 1
        %s879 = scalar_lea.vmem [#allocation18], %s878
        // Predicated region
        $region133: #{biomed_encoder_forward.1} parent=95 // pred_check
          %p880 = pneg %p454
        $region134: #{biomed_encoder_forward.1} parent=95 // pred_check_branch
          %882 = sbr.rel (%p880) target = $region136
        $region135: #{biomed_encoder_forward.1} parent=95 // pred_region
          %883 = dma.done %s877, 16
        $region136: #{biomed_encoder_forward.1} parent=95 // pred_fallthru
          _
        %s884 = sand.u32 %s52, 1
        %s885 = scalar_lea.sflag [#allocation19], %s884
        %s886 = sand.u32 %s467, 1
        %s887 = scalar_lea.vmem [#allocation20], %s886
        // Predicated region
        $region137: #{biomed_encoder_forward.1} parent=95 // pred_check
          %p888 = pneg %p480
        $region138: #{biomed_encoder_forward.1} parent=95 // pred_check_branch
          %890 = sbr.rel (%p888) target = $region140
        $region139: #{biomed_encoder_forward.1} parent=95 // pred_region
          %891 = dma.done %s885, 16
        $region140: #{biomed_encoder_forward.1} parent=95 // pred_fallthru
          _
        %s892 = sand.u32 %s493, 1
        %s893 = scalar_lea.sflag [#allocation22], %s892
        %s894 = sand.u32 %s493, 1
        %s895 = scalar_lea.vmem [#allocation21], %s894
        // Predicated region
        $region141: #{biomed_encoder_forward.1} parent=95 // pred_check
          %p896 = pneg %p506
        $region142: #{biomed_encoder_forward.1} parent=95 // pred_check_branch
          %898 = sbr.rel (%p896) target = $region144
        $region143: #{biomed_encoder_forward.1} parent=95 // pred_region
          %899 = dma.done %s893, 16
        $region144: #{biomed_encoder_forward.1} parent=95 // pred_fallthru
          _
        %p900 = pneg %p68
        %p901 = pneg %p65
        %p902 = pneg %p89
        %p903 = pneg %p86
        %p904 = pneg %p110
        %p905 = pneg %p107
        %p906 = pneg %p131
        %p907 = pneg %p128
        %p908 = pneg %p152
        %p909 = pneg %p149
        %p910 = pneg %p173
        %p911 = pneg %p170
        %p912 = pneg %p194
        %p913 = pneg %p191
        %s914 = sand.u32 %s207, 1
        %s915 = scalar_lea.sflag [#allocation4], %s914
        %s916 = sand.u32 %s207, 1
        %s917 = smul.addr %s916, 192
        %s918 = scalar_lea.vmem [#allocation3], %s917
        %p919 = pneg %p220
        %p920 = pneg %p217
        %s921 = sand.u32 %s52, 1
        %s922 = scalar_lea.sflag [#allocation7], %s921
        %s923 = sand.u32 %s233, 1
        %s924 = smul.addr %s923, 3
        %s925 = scalar_lea.vmem [#allocation6], %s924
        %p926 = pneg %p246
        %p927 = pneg %p243
        %s928 = sand.u32 %s52, 1
        %s929 = scalar_lea.sflag [#allocation7], %s928
        %s930 = sand.u32 %s259, 1
        %s931 = smul.addr %s930, 64
        %s932 = scalar_lea.vmem [#allocation8], %s931
        %p933 = pneg %p272
        %p934 = pneg %p269
        %s935 = sand.u32 %s52, 1
        %s936 = scalar_lea.sflag [#allocation10], %s935
        %s937 = sand.u32 %s285, 1
        %s938 = scalar_lea.vmem [#allocation9], %s937
        %p939 = pneg %p298
        %p940 = pneg %p295
        %s941 = sand.u32 %s52, 1
        %s942 = scalar_lea.sflag [#allocation10], %s941
        %s943 = sand.u32 %s311, 1
        %s944 = scalar_lea.vmem [#allocation11], %s943
        %p945 = pneg %p324
        %p946 = pneg %p321
        %s947 = sand.u32 %s52, 1
        %s948 = scalar_lea.sflag [#allocation13], %s947
        %s949 = sand.u32 %s337, 1
        %s950 = scalar_lea.vmem [#allocation12], %s949
        %p951 = pneg %p350
        %p952 = pneg %p347
        %s953 = sand.u32 %s52, 1
        %s954 = scalar_lea.sflag [#allocation13], %s953
        %s955 = sand.u32 %s363, 1
        %s956 = smul.addr %s955, 256
        %s957 = scalar_lea.vmem [#allocation14], %s956
        %p958 = pneg %p376
        %p959 = pneg %p373
        %s960 = sand.u32 %s52, 1
        %s961 = scalar_lea.sflag [#allocation16], %s960
        %s962 = sand.u32 %s389, 1
        %s963 = smul.addr %s962, 4
        %s964 = scalar_lea.vmem [#allocation15], %s963
        %p965 = pneg %p402
        %p966 = pneg %p399
        %s967 = sand.u32 %s52, 1
        %s968 = scalar_lea.sflag [#allocation16], %s967
        %s969 = sand.u32 %s415, 1
        %s970 = smul.addr %s969, 256
        %s971 = scalar_lea.vmem [#allocation17], %s970
        %p972 = pneg %p428
        %p973 = pneg %p425
        %s974 = sand.u32 %s52, 1
        %s975 = scalar_lea.sflag [#allocation19], %s974
        %s976 = sand.u32 %s441, 1
        %s977 = scalar_lea.vmem [#allocation18], %s976
        %p978 = pneg %p454
        %p979 = pneg %p451
        %s980 = sand.u32 %s52, 1
        %s981 = scalar_lea.sflag [#allocation19], %s980
        %s982 = sand.u32 %s467, 1
        %s983 = scalar_lea.vmem [#allocation20], %s982
        %p984 = pneg %p480
        %p985 = pneg %p477
        %s986 = sand.u32 %s493, 1
        %s987 = scalar_lea.sflag [#allocation22], %s986
        %s988 = sand.u32 %s493, 1
        %s989 = scalar_lea.vmem [#allocation21], %s988
        %p990 = pneg %p506
        %p991 = pneg %p503
        %p992 = pneg %p527
        %p993 = pneg %p524
        %p995 = scmp.eq.s32.totalorder %s52, 0
        // Predicated region
        $region145: #{biomed_encoder_forward.1} parent=95 // pred_check
          %p996 = pneg %p995
        $region146: #{biomed_encoder_forward.1} parent=95 // pred_check_branch
          %998 = sbr.rel (%p996) target = $region148
        $region147: #{biomed_encoder_forward.1} parent=95 // pred_region
          %v999 = vld [vmem:[%s0] sm:$0xff]
          %v1000 = vld [vmem:[%s0 + $0x8] sm:$0xff]
          %v1001 = vld [vmem:[%s0 + $0x10] sm:$0xff]
          %v1002 = vld [vmem:[%s0 + $0x18] sm:$0xff]
          %v1003 = vlaneseq
          %v1004 = vand.u32 %v1003, 127
          %1005 = vset.pattern.permute.xlu0 0
          %1006 = vperm.xlu0 %1005, %v999
          %v1007 = vpop.permute.xlu0 %1006
          %1008 = vset.pattern.permute.xlu0 0
          %1009 = vperm.xlu0 %1008, %v1000
          %v1010 = vpop.permute.xlu0 %1009
          %1011 = vset.pattern.permute.xlu0 0
          %1012 = vperm.xlu0 %1011, %v1001
          %v1013 = vpop.permute.xlu0 %1012
          %1014 = vset.pattern.permute.xlu0 0
          %1015 = vperm.xlu0 %1014, %v1002
          %v1016 = vpop.permute.xlu0 %1015
          %vm1017 = vcmp.eq.s32.totalorder %v1004, %v1007
          %vm1018 = vcmp.eq.s32.totalorder %v1004, %v1010
          %vm1019 = vcmp.eq.s32.totalorder %v1004, %v1013
          %vm1020 = vcmp.eq.s32.totalorder %v1004, %v1016
          %v1021 = vsel %vm1017, 1, 0
          %v1022 = vsel %vm1018, 1, 0
          %v1023 = vsel %vm1019, 1, 0
          %v1024 = vsel %vm1020, 1, 0
          %v1025 = vcvt.s32.f32 %v1021
          %v1026 = vcvt.s32.f32 %v1022
          %v1027 = vcvt.s32.f32 %v1023
          %v1028 = vcvt.s32.f32 %v1024
          %v1029 = vld [vmem:[%s4] sm:$0xff]
          %v1030 = vld [vmem:[%s4 + $0x8] sm:$0xff]
          %v1031 = vld [vmem:[%s4 + $0x10] sm:$0xff]
          %v1032 = vld [vmem:[%s4 + $0x18] sm:$0xff]
          %v1033 = vld [vmem:[%s4 + $0x20] sm:$0xff]
          %v1034 = vld [vmem:[%s4 + $0x28] sm:$0xff]
          %v1035 = vld [vmem:[%s4 + $0x30] sm:$0xff]
          %v1036 = vld [vmem:[%s4 + $0x38] sm:$0xff]
          %v1037 = vld [vmem:[%s4 + $0x40] sm:$0xff]
          %v1038 = vld [vmem:[%s4 + $0x48] sm:$0xff]
          %v1039 = vld [vmem:[%s4 + $0x50] sm:$0xff]
          %v1040 = vld [vmem:[%s4 + $0x58] sm:$0xff]
          %v1041 = vld [vmem:[%s4 + $0x60] sm:$0xff]
          %v1042 = vld [vmem:[%s4 + $0x68] sm:$0xff]
          %v1043 = vld [vmem:[%s4 + $0x70] sm:$0xff]
          %v1044 = vld [vmem:[%s4 + $0x78] sm:$0xff]
          %v1045 = vld [vmem:[%s1] sm:$0xff]
          %v1046 = vld [vmem:[%s1 + $0x8] sm:$0xff]
          %v1047 = vld [vmem:[%s1 + $0x10] sm:$0xff]
          %v1048 = vld [vmem:[%s1 + $0x18] sm:$0xff]
          %1049 = vmatprep.subr.mxu0 0.0
          %1050 = vmatpush1.msra.mxu0 %v1029
          %1051 = vmatprep.subr.mxu0 0.0
          %1052 = vmatpush1.msra.mxu0 %v1030
          %1053 = vmatprep.subr.mxu0 0.0
          %1054 = vmatpush1.msra.mxu0 %v1031
          %1055 = vmatprep.subr.mxu0 0.0
          %1056 = vmatpush1.msra.mxu0 %v1032
          %1057 = vmatprep.subr.mxu0 0.0
          %1058 = vmatpush1.msra.mxu0 %v1033
          %1059 = vmatprep.subr.mxu0 0.0
          %1060 = vmatpush1.msra.mxu0 %v1034
          %1061 = vmatprep.subr.mxu0 0.0
          %1062 = vmatpush1.msra.mxu0 %v1035
          %1063 = vmatprep.subr.mxu0 0.0
          %1064 = vmatpush1.msra.mxu0 %v1036
          %1065 = vmatprep.subr.mxu0 0.0
          %1066 = vmatpush1.msra.mxu0 %v1037
          %1067 = vmatprep.subr.mxu0 0.0
          %1068 = vmatpush1.msra.mxu0 %v1038
          %1069 = vmatprep.subr.mxu0 0.0
          %1070 = vmatpush1.msra.mxu0 %v1039
          %1071 = vmatprep.subr.mxu0 0.0
          %1072 = vmatpush1.msra.mxu0 %v1040
          %1073 = vmatprep.subr.mxu0 0.0
          %1074 = vmatpush1.msra.mxu0 %v1041
          %1075 = vmatprep.subr.mxu0 0.0
          %1076 = vmatpush1.msra.mxu0 %v1042
          %1077 = vmatprep.subr.mxu0 0.0
          %1078 = vmatpush1.msra.mxu0 %v1043
          %1079 = vmatprep.subr.mxu0 0.0
          %1080 = vmatpush1.msra.mxu0 %v1044
          %1081 = vmatprep.subr.mxu0 0.0
          %1082 = vmatpush1.msra.mxu0 0.0
          %1083 = vmatprep.subr.mxu0 0.0
          %1084 = vmatpush1.msra.mxu0 0.0
          %1085 = vmatprep.subr.mxu0 0.0
          %1086 = vmatpush1.msra.mxu0 0.0
          %1087 = vmatprep.subr.mxu0 0.0
          %1088 = vmatpush1.msra.mxu0 0.0
          %1089 = vmatprep.subr.mxu0 0.0
          %1090 = vmatpush1.msra.mxu0 0.0
          %1091 = vmatprep.subr.mxu0 0.0
          %1092 = vmatpush1.msra.mxu0 0.0
          %1093 = vmatprep.subr.mxu0 0.0
          %1094 = vmatpush1.msra.mxu0 0.0
          %1095 = vmatprep.subr.mxu0 0.0
          %1096 = vmatpush1.msra.mxu0 0.0
          %1097 = vmatprep.subr.mxu0 0.0
          %1098 = vmatpush1.msra.mxu0 0.0
          %1099 = vmatprep.subr.mxu0 0.0
          %1100 = vmatpush1.msra.mxu0 0.0
          %1101 = vmatprep.subr.mxu0 0.0
          %1102 = vmatpush1.msra.mxu0 0.0
          %1103 = vmatprep.subr.mxu0 0.0
          %1104 = vmatpush1.msra.mxu0 0.0
          %1105 = vmatprep.subr.mxu0 0.0
          %1106 = vmatpush1.msra.mxu0 0.0
          %1107 = vmatprep.subr.mxu0 0.0
          %1108 = vmatpush1.msra.mxu0 0.0
          %1109 = vmatprep.subr.mxu0 0.0
          %1110 = vmatpush1.msra.mxu0 0.0
          %1111 = vmatprep.subr.mxu0 0.0
          %1112 = vmatpush1.msra.mxu0 0.0
          %1113 = vmatprep.mubr.f32.mxu0 0.0
          %1114 = vmatmul.mubr.f32.gmra.mrb[0].mxu0 %v1025
          %v1115 = vpop.f32.mrb[0].mxu0
          %v1116 = vadd.f32 %v1045, %v1115
          %v1117 = vpop.f32.mrb[0].mxu0
          %1118 = vmatprep.mubr.f32.mxu0 0.0
          %1119 = vmatmul.mubr.f32.gmra.mrb[0].mxu0 %v1026
          %v1120 = vpop.f32.mrb[0].mxu0
          %v1121 = vadd.f32 %v1046, %v1120
          %v1122 = vpop.f32.mrb[0].mxu0
          %1123 = vmatprep.mubr.f32.mxu0 0.0
          %1124 = vmatmul.mubr.f32.gmra.mrb[0].mxu0 %v1027
          %v1125 = vpop.f32.mrb[0].mxu0
          %v1126 = vadd.f32 %v1047, %v1125
          %v1127 = vpop.f32.mrb[0].mxu0
          %1128 = vmatprep.mubr.f32.mxu0 0.0
          %1129 = vmatmul.mubr.f32.gmra.mrb[0].mxu0 %v1028
          %v1130 = vpop.f32.mrb[0].mxu0
          %v1131 = vadd.f32 %v1048, %v1130
          %v1132 = vpop.f32.mrb[0].mxu0
          %1133 = vdwg.mxu0
          %v1134 = vld [vmem:[%s2] sm:$0x1]
          %v1135 = vld [vmem:[%s3] sm:$0x1]
          %1136 = vadd.xlane.f32.xlu0 %v1116
          %v1137 = vpop.xlane.xlu0 %1136
          %1138 = vadd.xlane.f32.xlu0 %v1121
          %v1139 = vpop.xlane.xlu0 %1138
          %1140 = vadd.xlane.f32.xlu0 %v1126
          %v1141 = vpop.xlane.xlu0 %1140
          %1142 = vadd.xlane.f32.xlu0 %v1131
          %v1143 = vpop.xlane.xlu0 %1142
          %v1144 = vrcp.pop 128.0
          %v1145 = vmul.f32 %v1137, %v1144
          %v1146 = vmul.f32 %v1139, %v1144
          %v1147 = vmul.f32 %v1141, %v1144
          %v1148 = vmul.f32 %v1143, %v1144
          %v1149 = vmul.f32 %v1116, %v1116
          %v1150 = vmul.f32 %v1121, %v1121
          %v1151 = vmul.f32 %v1126, %v1126
          %v1152 = vmul.f32 %v1131, %v1131
          %1153 = vadd.xlane.f32.xlu0 %v1149
          %v1154 = vpop.xlane.xlu0 %1153
          %1155 = vadd.xlane.f32.xlu0 %v1150
          %v1156 = vpop.xlane.xlu0 %1155
          %1157 = vadd.xlane.f32.xlu0 %v1151
          %v1158 = vpop.xlane.xlu0 %1157
          %1159 = vadd.xlane.f32.xlu0 %v1152
          %v1160 = vpop.xlane.xlu0 %1159
          %v1161 = vmul.f32 %v1154, %v1144
          %v1162 = vmul.f32 %v1156, %v1144
          %v1163 = vmul.f32 %v1158, %v1144
          %v1164 = vmul.f32 %v1160, %v1144
          %v1165 = vmul.f32 %v1145, %v1145
          %v1166 = vmul.f32 %v1146, %v1146
          %v1167 = vmul.f32 %v1147, %v1147
          %v1168 = vmul.f32 %v1148, %v1148
          %v1169 = vsub.f32 %v1161, %v1165
          %v1170 = vsub.f32 %v1162, %v1166
          %v1171 = vsub.f32 %v1163, %v1167
          %v1172 = vsub.f32 %v1164, %v1168
          %v1173 = vmax.f32 %v1169, 0.0
          %v1174 = vmax.f32 %v1170, 0.0
          %v1175 = vmax.f32 %v1171, 0.0
          %v1176 = vmax.f32 %v1172, 0.0
          %v1177 = vsub.f32 %v1116, %v1145
          %v1178 = vsub.f32 %v1121, %v1146
          %v1179 = vsub.f32 %v1126, %v1147
          %v1180 = vsub.f32 %v1131, %v1148
          %v1181 = vadd.f32 %v1173, 1e-12
          %v1182 = vadd.f32 %v1174, 1e-12
          %v1183 = vadd.f32 %v1175, 1e-12
          %v1184 = vadd.f32 %v1176, 1e-12
          %v1185 = vrsqrt.pop %v1181
          %v1186 = vrsqrt.pop %v1182
          %v1187 = vrsqrt.pop %v1183
          %v1188 = vrsqrt.pop %v1184
          %v1189 = vmul.f32 %v1177, %v1185
          %v1190 = vmul.f32 %v1178, %v1186
          %v1191 = vmul.f32 %v1179, %v1187
          %v1192 = vmul.f32 %v1180, %v1188
          %v1194 = vlaneseq
          %v1195 = vshrl.u32 %v1194, 7
          %v1196 = vsub.s32 0, %v1195
          %v1197 = vrot.slane %v1134, %v1196
          %v1199 = vmul.f32 %v1189, %v1197
          %v1200 = vmul.f32 %v1190, %v1197
          %v1201 = vmul.f32 %v1191, %v1197
          %v1202 = vmul.f32 %v1192, %v1197
          %v1204 = vlaneseq
          %v1205 = vshrl.u32 %v1204, 7
          %v1206 = vsub.s32 0, %v1205
          %v1207 = vrot.slane %v1135, %v1206
          %v1209 = vadd.f32 %v1199, %v1207
          %v1210 = vadd.f32 %v1200, %v1207
          %v1211 = vadd.f32 %v1201, %v1207
          %v1212 = vadd.f32 %v1202, %v1207
          %1213 = vst [vmem:[#allocation2] sm:$0xff] %v1209
          %1214 = vst [vmem:[#allocation2 + $0x8] sm:$0xff] %v1210
          %1215 = vst [vmem:[#allocation2 + $0x10] sm:$0xff] %v1211
          %1216 = vst [vmem:[#allocation2 + $0x18] sm:$0xff] %v1212
        $region148: #{biomed_encoder_forward.1} parent=95 // pred_fallthru
          _
        %v1217 = vld [vmem:[#allocation2] sm:$0xff]
        %v1218 = vld [vmem:[#allocation2 + $0x8] sm:$0xff]
        %v1219 = vld [vmem:[#allocation2 + $0x10] sm:$0xff]
        %v1220 = vld [vmem:[#allocation2 + $0x18] sm:$0xff]
        %v1221 = vpack.c.bf16 %v1218, %v1217
        %v1222 = vpack.c.bf16 %v1220, %v1219
        %v1223 = vld [vmem:[%s802] sm:$0xff]
        %v1224 = vld [vmem:[%s802 + $0x8] sm:$0xf]
        %v1225 = vld [vmem:[%s802 + $0xc] sm:$0xff]
        %v1226 = vld [vmem:[%s802 + $0x14] sm:$0xf]
        %v1227 = vld [vmem:[%s802 + $0x18] sm:$0xff]
        %v1228 = vld [vmem:[%s802 + $0x20] sm:$0xf]
        %v1229 = vld [vmem:[%s802 + $0x24] sm:$0xff]
        %v1230 = vld [vmem:[%s802 + $0x2c] sm:$0xf]
        %v1231 = vld [vmem:[%s802 + $0x30] sm:$0xff]
        %v1232 = vld [vmem:[%s802 + $0x38] sm:$0xf]
        %v1233 = vld [vmem:[%s802 + $0x3c] sm:$0xff]
        %v1234 = vld [vmem:[%s802 + $0x44] sm:$0xf]
        %v1235 = vld [vmem:[%s802 + $0x48] sm:$0xff]
        %v1236 = vld [vmem:[%s802 + $0x50] sm:$0xf]
        %v1237 = vld [vmem:[%s802 + $0x54] sm:$0xff]
        %v1238 = vld [vmem:[%s802 + $0x5c] sm:$0xf]
        %v1239 = vld [vmem:[%s802 + $0x60] sm:$0xff]
        %v1240 = vld [vmem:[%s802 + $0x68] sm:$0xf]
        %v1241 = vld [vmem:[%s802 + $0x6c] sm:$0xff]
        %v1242 = vld [vmem:[%s802 + $0x74] sm:$0xf]
        %v1243 = vld [vmem:[%s802 + $0x78] sm:$0xff]
        %v1244 = vld [vmem:[%s802 + $0x80] sm:$0xf]
        %v1245 = vld [vmem:[%s802 + $0x84] sm:$0xff]
        %v1246 = vld [vmem:[%s802 + $0x8c] sm:$0xf]
        %v1247 = vld [vmem:[%s802 + $0x90] sm:$0xff]
        %v1248 = vld [vmem:[%s802 + $0x98] sm:$0xf]
        %v1249 = vld [vmem:[%s802 + $0x9c] sm:$0xff]
        %v1250 = vld [vmem:[%s802 + $0xa4] sm:$0xf]
        %v1251 = vld [vmem:[%s802 + $0xa8] sm:$0xff]
        %v1252 = vld [vmem:[%s802 + $0xb0] sm:$0xf]
        %v1253 = vld [vmem:[%s802 + $0xb4] sm:$0xff]
        %v1254 = vld [vmem:[%s802 + $0xbc] sm:$0xf]
        %v1255 = vld [vmem:[%s811] sm:$0x7]
        %v1257 = vlaneseq
        %v1258 = vshrl.u32 %v1257, 7
        %v1259 = vsub.s32 0, %v1258
        %v1260 = vrot.slane %v1255, %v1259
        %v1261 = vlaneseq
        %v1262 = vshrl.u32 %v1261, 7
        %v1263 = vsub.s32 1, %v1262
        %v1264 = vrot.slane %v1255, %v1263
        %v1265 = vlaneseq
        %v1266 = vshrl.u32 %v1265, 7
        %v1267 = vsub.s32 2, %v1266
        %v1268 = vrot.slane %v1255, %v1267
        %v1304 = vunpack.c.l.b16 %v1223
        %v1305 = vunpack.c.h.b16 %v1223
        %v1306 = vunpack.c.l.b16 %v1224
        %v1307 = vunpack.c.l.b16 %v1225
        %v1308 = vunpack.c.h.b16 %v1225
        %v1309 = vunpack.c.l.b16 %v1226
        %v1310 = vunpack.c.l.b16 %v1227
        %v1311 = vunpack.c.h.b16 %v1227
        %v1312 = vunpack.c.l.b16 %v1228
        %v1313 = vunpack.c.l.b16 %v1229
        %v1314 = vunpack.c.h.b16 %v1229
        %v1315 = vunpack.c.l.b16 %v1230
        %v1316 = vunpack.c.l.b16 %v1231
        %v1317 = vunpack.c.h.b16 %v1231
        %v1318 = vunpack.c.l.b16 %v1232
        %v1319 = vunpack.c.l.b16 %v1233
        %v1320 = vunpack.c.h.b16 %v1233
        %v1321 = vunpack.c.l.b16 %v1234
        %v1322 = vunpack.c.l.b16 %v1235
        %v1323 = vunpack.c.h.b16 %v1235
        %v1324 = vunpack.c.l.b16 %v1236
        %v1325 = vunpack.c.l.b16 %v1237
        %v1326 = vunpack.c.h.b16 %v1237
        %v1327 = vunpack.c.l.b16 %v1238
        %v1328 = vunpack.c.l.b16 %v1239
        %v1329 = vunpack.c.h.b16 %v1239
        %v1330 = vunpack.c.l.b16 %v1240
        %v1331 = vunpack.c.l.b16 %v1241
        %v1332 = vunpack.c.h.b16 %v1241
        %v1333 = vunpack.c.l.b16 %v1242
        %v1334 = vunpack.c.l.b16 %v1243
        %v1335 = vunpack.c.h.b16 %v1243
        %v1336 = vunpack.c.l.b16 %v1244
        %v1337 = vunpack.c.l.b16 %v1245
        %v1338 = vunpack.c.h.b16 %v1245
        %v1339 = vunpack.c.l.b16 %v1246
        %v1340 = vunpack.c.l.b16 %v1247
        %v1341 = vunpack.c.h.b16 %v1247
        %v1342 = vunpack.c.l.b16 %v1248
        %v1343 = vunpack.c.l.b16 %v1249
        %v1344 = vunpack.c.h.b16 %v1249
        %v1345 = vunpack.c.l.b16 %v1250
        %v1346 = vunpack.c.l.b16 %v1251
        %v1347 = vunpack.c.h.b16 %v1251
        %v1348 = vunpack.c.l.b16 %v1252
        %v1349 = vunpack.c.l.b16 %v1253
        %v1350 = vunpack.c.h.b16 %v1253
        %v1351 = vunpack.c.l.b16 %v1254
        %v1352 = vpack.c.b16 %v1307, %v1304
        %v1353 = vpack.c.b16 %v1308, %v1305
        %v1354 = vpack.c.b16 %v1309, %v1306
        %v1355 = vpack.c.b16 %v1313, %v1310
        %v1356 = vpack.c.b16 %v1314, %v1311
        %v1357 = vpack.c.b16 %v1315, %v1312
        %v1358 = vpack.c.b16 %v1319, %v1316
        %v1359 = vpack.c.b16 %v1320, %v1317
        %v1360 = vpack.c.b16 %v1321, %v1318
        %v1361 = vpack.c.b16 %v1325, %v1322
        %v1362 = vpack.c.b16 %v1326, %v1323
        %v1363 = vpack.c.b16 %v1327, %v1324
        %v1364 = vpack.c.b16 %v1331, %v1328
        %v1365 = vpack.c.b16 %v1332, %v1329
        %v1366 = vpack.c.b16 %v1333, %v1330
        %v1367 = vpack.c.b16 %v1337, %v1334
        %v1368 = vpack.c.b16 %v1338, %v1335
        %v1369 = vpack.c.b16 %v1339, %v1336
        %v1370 = vpack.c.b16 %v1343, %v1340
        %v1371 = vpack.c.b16 %v1344, %v1341
        %v1372 = vpack.c.b16 %v1345, %v1342
        %v1373 = vpack.c.b16 %v1349, %v1346
        %v1374 = vpack.c.b16 %v1350, %v1347
        %v1375 = vpack.c.b16 %v1351, %v1348
        %1400 = vmatprep.subr.bf16.mxu0 %v1353
        %1401 = vmatpush1.bf16.msra.mxu0 %v1352
        %1402 = vmatprep.subr.bf16.mxu0 %v1356
        %1403 = vmatpush1.bf16.msra.mxu0 %v1355
        %1404 = vmatprep.subr.bf16.mxu0 %v1359
        %1405 = vmatpush1.bf16.msra.mxu0 %v1358
        %1406 = vmatprep.subr.bf16.mxu0 %v1362
        %1407 = vmatpush1.bf16.msra.mxu0 %v1361
        %1408 = vmatprep.subr.bf16.mxu0 %v1365
        %1409 = vmatpush1.bf16.msra.mxu0 %v1364
        %1410 = vmatprep.subr.bf16.mxu0 %v1368
        %1411 = vmatpush1.bf16.msra.mxu0 %v1367
        %1412 = vmatprep.subr.bf16.mxu0 %v1371
        %1413 = vmatpush1.bf16.msra.mxu0 %v1370
        %1414 = vmatprep.subr.bf16.mxu0 %v1374
        %1415 = vmatpush1.bf16.msra.mxu0 %v1373
        %1416 = vmatprep.subr.bf16.mxu0 0
        %1417 = vmatpush1.bf16.msra.mxu0 0
        %1418 = vmatprep.subr.bf16.mxu0 0
        %1419 = vmatpush1.bf16.msra.mxu0 0
        %1420 = vmatprep.subr.bf16.mxu0 0
        %1421 = vmatpush1.bf16.msra.mxu0 0
        %1422 = vmatprep.subr.bf16.mxu0 0
        %1423 = vmatpush1.bf16.msra.mxu0 0
        %1424 = vmatprep.subr.bf16.mxu0 0
        %1425 = vmatpush1.bf16.msra.mxu0 0
        %1426 = vmatprep.subr.bf16.mxu0 0
        %1427 = vmatpush1.bf16.msra.mxu0 0
        %1428 = vmatprep.subr.bf16.mxu0 0
        %1429 = vmatpush1.bf16.msra.mxu0 0
        %1430 = vmatprep.subr.bf16.mxu0 0
        %1431 = vmatpush1.bf16.msra.mxu0 0
        %1432 = vmatprep.mubr.bf16.mxu0 0
        %1433 = vmatmul.mubr.bf16.gmra.mrb[0].mxu0 %v1221
        %v1434 = vpop.f32.mrb[0].mxu0
        %v1435 = vadd.f32 %v1260, %v1434
        %v1436 = vpop.f32.mrb[0].mxu0
        %v1437 = vadd.f32 %v1264, %v1436
        %v1438 = vpop.f32.mrb[0].mxu0
        %v1439 = vadd.f32 %v1260, %v1438
        %v1440 = vpop.f32.mrb[0].mxu0
        %v1441 = vadd.f32 %v1264, %v1440
        %1442 = vmatprep.mubr.bf16.mxu0 0
        %1443 = vmatmul.mubr.bf16.gmra.mrb[0].mxu0 %v1222
        %v1444 = vpop.f32.mrb[0].mxu0
        %v1445 = vadd.f32 %v1260, %v1444
        %v1446 = vpop.f32.mrb[0].mxu0
        %v1447 = vadd.f32 %v1264, %v1446
        %v1448 = vpop.f32.mrb[0].mxu0
        %v1449 = vadd.f32 %v1260, %v1448
        %v1450 = vpop.f32.mrb[0].mxu0
        %v1451 = vadd.f32 %v1264, %v1450
        %1452 = vdwg.mxu0
        %1453 = vmatprep.subr.bf16.mxu0 0
        %1454 = vmatpush1.bf16.msra.mxu0 %v1354
        %1455 = vmatprep.subr.bf16.mxu0 0
        %1456 = vmatpush1.bf16.msra.mxu0 %v1357
        %1457 = vmatprep.subr.bf16.mxu0 0
        %1458 = vmatpush1.bf16.msra.mxu0 %v1360
        %1459 = vmatprep.subr.bf16.mxu0 0
        %1460 = vmatpush1.bf16.msra.mxu0 %v1363
        %1461 = vmatprep.subr.bf16.mxu0 0
        %1462 = vmatpush1.bf16.msra.mxu0 %v1366
        %1463 = vmatprep.subr.bf16.mxu0 0
        %1464 = vmatpush1.bf16.msra.mxu0 %v1369
        %1465 = vmatprep.subr.bf16.mxu0 0
        %1466 = vmatpush1.bf16.msra.mxu0 %v1372
        %1467 = vmatprep.subr.bf16.mxu0 0
        %1468 = vmatpush1.bf16.msra.mxu0 %v1375
        %1469 = vmatprep.subr.bf16.mxu0 0
        %1470 = vmatpush1.bf16.msra.mxu0 0
        %1471 = vmatprep.subr.bf16.mxu0 0
        %1472 = vmatpush1.bf16.msra.mxu0 0
        %1473 = vmatprep.subr.bf16.mxu0 0
        %1474 = vmatpush1.bf16.msra.mxu0 0
        %1475 = vmatprep.subr.bf16.mxu0 0
        %1476 = vmatpush1.bf16.msra.mxu0 0
        %1477 = vmatprep.subr.bf16.mxu0 0
        %1478 = vmatpush1.bf16.msra.mxu0 0
        %1479 = vmatprep.subr.bf16.mxu0 0
        %1480 = vmatpush1.bf16.msra.mxu0 0
        %1481 = vmatprep.subr.bf16.mxu0 0
        %1482 = vmatpush1.bf16.msra.mxu0 0
        %1483 = vmatprep.subr.bf16.mxu0 0
        %1484 = vmatpush1.bf16.msra.mxu0 0
        %1485 = vmatprep.mubr.bf16.mxu0 0
        %1486 = vmatmul.mubr.bf16.gmra.mrb[0].mxu0 %v1221
        %v1487 = vpop.f32.mrb[0].mxu0
        %v1488 = vadd.f32 %v1268, %v1487
        %v1489 = vpop.f32.mrb[0].mxu0
        %v1490 = vpop.f32.mrb[0].mxu0
        %v1491 = vadd.f32 %v1268, %v1490
        %v1492 = vpop.f32.mrb[0].mxu0
        %1493 = vmatprep.mubr.bf16.mxu0 0
        %1494 = vmatmul.mubr.bf16.gmra.mrb[0].mxu0 %v1222
        %v1495 = vpop.f32.mrb[0].mxu0
        %v1496 = vadd.f32 %v1268, %v1495
        %v1497 = vpop.f32.mrb[0].mxu0
        %v1498 = vpop.f32.mrb[0].mxu0
        %v1499 = vadd.f32 %v1268, %v1498
        %v1500 = vpop.f32.mrb[0].mxu0
        %1501 = vdwg.mxu0
        %v1502 = vpack.c.bf16 %v1439, %v1435
        %v1503 = vpack.c.bf16 %v1441, %v1437
        %v1504 = vpack.c.bf16 %v1491, %v1488
        %v1505 = vpack.c.bf16 %v1449, %v1445
        %v1506 = vpack.c.bf16 %v1451, %v1447
        %v1507 = vpack.c.bf16 %v1499, %v1496
        %v1508 = vld [vmem:[%s5] sm:$0xff]
        %v1509 = vld [vmem:[%s5 + $0x8] sm:$0xff]
        %v1510 = vld [vmem:[%s5 + $0x10] sm:$0xff]
        %v1511 = vld [vmem:[%s5 + $0x18] sm:$0xff]
        %v1512 = vld [vmem:[%s5 + $0x20] sm:$0xff]
        %v1513 = vld [vmem:[%s5 + $0x28] sm:$0xff]
        %v1514 = vld [vmem:[%s5 + $0x30] sm:$0xff]
        %v1515 = vld [vmem:[%s5 + $0x38] sm:$0xff]
        %v1516 = vld [vmem:[%s5 + $0x40] sm:$0xff]
        %v1517 = vld [vmem:[%s5 + $0x48] sm:$0xff]
        %v1518 = vld [vmem:[%s5 + $0x50] sm:$0xff]
        %v1519 = vld [vmem:[%s5 + $0x58] sm:$0xff]
        %v1520 = vld [vmem:[%s5 + $0x60] sm:$0xff]
        %v1521 = vld [vmem:[%s5 + $0x68] sm:$0xff]
        %v1522 = vld [vmem:[%s5 + $0x70] sm:$0xff]
        %v1523 = vld [vmem:[%s5 + $0x78] sm:$0xff]
        %v1524 = vpack.c.bf16 %v1509, %v1508
        %v1525 = vpack.c.bf16 %v1511, %v1510
        %v1526 = vpack.c.bf16 %v1513, %v1512
        %v1527 = vpack.c.bf16 %v1515, %v1514
        %v1528 = vpack.c.bf16 %v1517, %v1516
        %v1529 = vpack.c.bf16 %v1519, %v1518
        %v1530 = vpack.c.bf16 %v1521, %v1520
        %v1531 = vpack.c.bf16 %v1523, %v1522
        %v1532 = vmul.bf16 %v1502, %v1524
        %v1533 = vmul.bf16 %v1505, %v1525
        %v1534 = vmul.bf16 %v1502, %v1526
        %v1535 = vmul.bf16 %v1505, %v1527
        %v1536 = vmul.bf16 %v1502, %v1528
        %v1537 = vmul.bf16 %v1505, %v1529
        %v1538 = vmul.bf16 %v1502, %v1530
        %v1539 = vmul.bf16 %v1505, %v1531
        %v1540 = vld [vmem:[%s6] sm:$0xff]
        %v1541 = vld [vmem:[%s6 + $0x8] sm:$0xff]
        %v1542 = vld [vmem:[%s6 + $0x10] sm:$0xff]
        %v1543 = vld [vmem:[%s6 + $0x18] sm:$0xff]
        %v1544 = vld [vmem:[%s6 + $0x20] sm:$0xff]
        %v1545 = vld [vmem:[%s6 + $0x28] sm:$0xff]
        %v1546 = vld [vmem:[%s6 + $0x30] sm:$0xff]
        %v1547 = vld [vmem:[%s6 + $0x38] sm:$0xff]
        %v1548 = vld [vmem:[%s6 + $0x40] sm:$0xff]
        %v1549 = vld [vmem:[%s6 + $0x48] sm:$0xff]
        %v1550 = vld [vmem:[%s6 + $0x50] sm:$0xff]
        %v1551 = vld [vmem:[%s6 + $0x58] sm:$0xff]
        %v1552 = vld [vmem:[%s6 + $0x60] sm:$0xff]
        %v1553 = vld [vmem:[%s6 + $0x68] sm:$0xff]
        %v1554 = vld [vmem:[%s6 + $0x70] sm:$0xff]
        %v1555 = vld [vmem:[%s6 + $0x78] sm:$0xff]
        %1556 = vmatprep.subr.bf16.mxu0 0
        %1557 = vmatpush1.bf16.xpose.msra.mxu0 %v1503
        %1558 = vmatprep.subr.bf16.mxu0 0
        %1559 = vmatpush1.bf16.xpose.msra.mxu0 %v1506
        %1560 = vmatprep.subr.bf16.mxu0 0
        %1561 = vmatpush1.bf16.xpose.msra.mxu0 0
        %1562 = vmatprep.subr.bf16.mxu0 0
        %1563 = vmatpush1.bf16.xpose.msra.mxu0 0
        %1564 = vmatprep.subr.bf16.mxu0 0
        %1565 = vmatpush1.bf16.xpose.msra.mxu0 0
        %1566 = vmatprep.subr.bf16.mxu0 0
        %1567 = vmatpush1.bf16.xpose.msra.mxu0 0
        %1568 = vmatprep.subr.bf16.mxu0 0
        %1569 = vmatpush1.bf16.xpose.msra.mxu0 0
        %1570 = vmatprep.subr.bf16.mxu0 0
        %1571 = vmatpush1.bf16.xpose.msra.mxu0 0
        %1572 = vmatprep.subr.bf16.mxu0 0
        %1573 = vmatpush1.bf16.xpose.msra.mxu0 0
        %1574 = vmatprep.subr.bf16.mxu0 0
        %1575 = vmatpush1.bf16.xpose.msra.mxu0 0
        %1576 = vmatprep.subr.bf16.mxu0 0
        %1577 = vmatpush1.bf16.xpose.msra.mxu0 0
        %1578 = vmatprep.subr.bf16.mxu0 0
        %1579 = vmatpush1.bf16.xpose.msra.mxu0 0
        %1580 = vmatprep.subr.bf16.mxu0 0
        %1581 = vmatpush1.bf16.xpose.msra.mxu0 0
        %1582 = vmatprep.subr.bf16.mxu0 0
        %1583 = vmatpush1.bf16.xpose.msra.mxu0 0
        %1584 = vmatprep.subr.bf16.mxu0 0
        %1585 = vmatpush1.bf16.xpose.msra.mxu0 0
        %1586 = vmatprep.subr.bf16.mxu0 0
        %1587 = vmatpush1.bf16.xpose.msra.mxu0 0
        %1588 = vmatprep.mubr.bf16.mxu0 0
        %1589 = vmatmul.mubr.bf16.gmra.mrb[0].mxu0 %v1532
        %v1590 = vpop.f32.mrb[0].mxu0
        %v1591 = vadd.f32 %v1540, %v1590
        %v1592 = vpop.f32.mrb[0].mxu0
        %v1593 = vpop.f32.mrb[0].mxu0
        %v1594 = vadd.f32 %v1541, %v1593
        %v1595 = vpop.f32.mrb[0].mxu0
        %1596 = vmatprep.mubr.bf16.mxu0 0
        %1597 = vmatmul.mubr.bf16.gmra.mrb[0].mxu0 %v1533
        %v1598 = vpop.f32.mrb[0].mxu0
        %v1599 = vadd.f32 %v1542, %v1598
        %v1600 = vpop.f32.mrb[0].mxu0
        %v1601 = vpop.f32.mrb[0].mxu0
        %v1602 = vadd.f32 %v1543, %v1601
        %v1603 = vpop.f32.mrb[0].mxu0
        %1604 = vmatprep.mubr.bf16.mxu0 0
        %1605 = vmatmul.mubr.bf16.gmra.mrb[0].mxu0 %v1534
        %v1606 = vpop.f32.mrb[0].mxu0
        %v1607 = vadd.f32 %v1544, %v1606
        %v1608 = vpop.f32.mrb[0].mxu0
        %v1609 = vpop.f32.mrb[0].mxu0
        %v1610 = vadd.f32 %v1545, %v1609
        %v1611 = vpop.f32.mrb[0].mxu0
        %1612 = vmatprep.mubr.bf16.mxu0 0
        %1613 = vmatmul.mubr.bf16.gmra.mrb[0].mxu0 %v1535
        %v1614 = vpop.f32.mrb[0].mxu0
        %v1615 = vadd.f32 %v1546, %v1614
        %v1616 = vpop.f32.mrb[0].mxu0
        %v1617 = vpop.f32.mrb[0].mxu0
        %v1618 = vadd.f32 %v1547, %v1617
        %v1619 = vpop.f32.mrb[0].mxu0
        %1620 = vmatprep.mubr.bf16.mxu0 0
        %1621 = vmatmul.mubr.bf16.gmra.mrb[0].mxu0 %v1536
        %v1622 = vpop.f32.mrb[0].mxu0
        %v1623 = vadd.f32 %v1548, %v1622
        %v1624 = vpop.f32.mrb[0].mxu0
        %v1625 = vpop.f32.mrb[0].mxu0
        %v1626 = vadd.f32 %v1549, %v1625
        %v1627 = vpop.f32.mrb[0].mxu0
        %1628 = vmatprep.mubr.bf16.mxu0 0
        %1629 = vmatmul.mubr.bf16.gmra.mrb[0].mxu0 %v1537
        %v1630 = vpop.f32.mrb[0].mxu0
        %v1631 = vadd.f32 %v1550, %v1630
        %v1632 = vpop.f32.mrb[0].mxu0
        %v1633 = vpop.f32.mrb[0].mxu0
        %v1634 = vadd.f32 %v1551, %v1633
        %v1635 = vpop.f32.mrb[0].mxu0
        %1636 = vmatprep.mubr.bf16.mxu0 0
        %1637 = vmatmul.mubr.bf16.gmra.mrb[0].mxu0 %v1538
        %v1638 = vpop.f32.mrb[0].mxu0
        %v1639 = vadd.f32 %v1552, %v1638
        %v1640 = vpop.f32.mrb[0].mxu0
        %v1641 = vpop.f32.mrb[0].mxu0
        %v1642 = vadd.f32 %v1553, %v1641
        %v1643 = vpop.f32.mrb[0].mxu0
        %1644 = vmatprep.mubr.bf16.mxu0 0
        %1645 = vmatmul.mubr.bf16.gmra.mrb[0].mxu0 %v1539
        %v1646 = vpop.f32.mrb[0].mxu0
        %v1647 = vadd.f32 %v1554, %v1646
        %v1648 = vpop.f32.mrb[0].mxu0
        %v1649 = vpop.f32.mrb[0].mxu0
        %v1650 = vadd.f32 %v1555, %v1649
        %v1651 = vpop.f32.mrb[0].mxu0
        %1652 = vdwg.mxu0
        %vm1653 = vcmask 261120
        %v1654 = vsel %vm1653, %v1591, -inf
        %1655 = vmax.xlane.f32.xlu0 %v1654
        %v1656 = vpop.xlane.xlu0 %1655
        %v1657 = vsel %vm1653, %v1594, -inf
        %1658 = vmax.xlane.f32.xlu0 %v1657
        %v1659 = vpop.xlane.xlu0 %1658
        %v1660 = vsel %vm1653, %v1599, -inf
        %1661 = vmax.xlane.f32.xlu0 %v1660
        %v1662 = vpop.xlane.xlu0 %1661
        %v1663 = vsel %vm1653, %v1602, -inf
        %1664 = vmax.xlane.f32.xlu0 %v1663
        %v1665 = vpop.xlane.xlu0 %1664
        %v1666 = vsel %vm1653, %v1607, -inf
        %1667 = vmax.xlane.f32.xlu0 %v1666
        %v1668 = vpop.xlane.xlu0 %1667
        %v1669 = vsel %vm1653, %v1610, -inf
        %1670 = vmax.xlane.f32.xlu0 %v1669
        %v1671 = vpop.xlane.xlu0 %1670
        %v1672 = vsel %vm1653, %v1615, -inf
        %1673 = vmax.xlane.f32.xlu0 %v1672
        %v1674 = vpop.xlane.xlu0 %1673
        %v1675 = vsel %vm1653, %v1618, -inf
        %1676 = vmax.xlane.f32.xlu0 %v1675
        %v1677 = vpop.xlane.xlu0 %1676
        %v1678 = vsel %vm1653, %v1623, -inf
        %1679 = vmax.xlane.f32.xlu0 %v1678
        %v1680 = vpop.xlane.xlu0 %1679
        %v1681 = vsel %vm1653, %v1626, -inf
        %1682 = vmax.xlane.f32.xlu0 %v1681
        %v1683 = vpop.xlane.xlu0 %1682
        %v1684 = vsel %vm1653, %v1631, -inf
        %1685 = vmax.xlane.f32.xlu0 %v1684
        %v1686 = vpop.xlane.xlu0 %1685
        %v1687 = vsel %vm1653, %v1634, -inf
        %1688 = vmax.xlane.f32.xlu0 %v1687
        %v1689 = vpop.xlane.xlu0 %1688
        %v1690 = vsel %vm1653, %v1639, -inf
        %1691 = vmax.xlane.f32.xlu0 %v1690
        %v1692 = vpop.xlane.xlu0 %1691
        %v1693 = vsel %vm1653, %v1642, -inf
        %1694 = vmax.xlane.f32.xlu0 %v1693
        %v1695 = vpop.xlane.xlu0 %1694
        %v1696 = vsel %vm1653, %v1647, -inf
        %1697 = vmax.xlane.f32.xlu0 %v1696
        %v1698 = vpop.xlane.xlu0 %1697
        %v1699 = vsel %vm1653, %v1650, -inf
        %1700 = vmax.xlane.f32.xlu0 %v1699
        %v1701 = vpop.xlane.xlu0 %1700
        %v1702 = vsub.f32 %v1591, %v1656
        %v1703 = vsub.f32 %v1594, %v1659
        %v1704 = vsub.f32 %v1599, %v1662
        %v1705 = vsub.f32 %v1602, %v1665
        %v1706 = vsub.f32 %v1607, %v1668
        %v1707 = vsub.f32 %v1610, %v1671
        %v1708 = vsub.f32 %v1615, %v1674
        %v1709 = vsub.f32 %v1618, %v1677
        %v1710 = vsub.f32 %v1623, %v1680
        %v1711 = vsub.f32 %v1626, %v1683
        %v1712 = vsub.f32 %v1631, %v1686
        %v1713 = vsub.f32 %v1634, %v1689
        %v1714 = vsub.f32 %v1639, %v1692
        %v1715 = vsub.f32 %v1642, %v1695
        %v1716 = vsub.f32 %v1647, %v1698
        %v1717 = vsub.f32 %v1650, %v1701
        %v1718 = vmul.f32 %v1702, 1.442695
        %v1719 = vpow.pop %v1718
        %v1720 = vmul.f32 %v1703, 1.442695
        %v1721 = vpow.pop %v1720
        %v1722 = vmul.f32 %v1704, 1.442695
        %v1723 = vpow.pop %v1722
        %v1724 = vmul.f32 %v1705, 1.442695
        %v1725 = vpow.pop %v1724
        %v1726 = vmul.f32 %v1706, 1.442695
        %v1727 = vpow.pop %v1726
        %v1728 = vmul.f32 %v1707, 1.442695
        %v1729 = vpow.pop %v1728
        %v1730 = vmul.f32 %v1708, 1.442695
        %v1731 = vpow.pop %v1730
        %v1732 = vmul.f32 %v1709, 1.442695
        %v1733 = vpow.pop %v1732
        %v1734 = vmul.f32 %v1710, 1.442695
        %v1735 = vpow.pop %v1734
        %v1736 = vmul.f32 %v1711, 1.442695
        %v1737 = vpow.pop %v1736
        %v1738 = vmul.f32 %v1712, 1.442695
        %v1739 = vpow.pop %v1738
        %v1740 = vmul.f32 %v1713, 1.442695
        %v1741 = vpow.pop %v1740
        %v1742 = vmul.f32 %v1714, 1.442695
        %v1743 = vpow.pop %v1742
        %v1744 = vmul.f32 %v1715, 1.442695
        %v1745 = vpow.pop %v1744
        %v1746 = vmul.f32 %v1716, 1.442695
        %v1747 = vpow.pop %v1746
        %v1748 = vmul.f32 %v1717, 1.442695
        %v1749 = vpow.pop %v1748
        %v1750 = vsel %vm1653, %v1719, 0.0
        %1751 = vadd.xlane.f32.xlu0 %v1750
        %v1752 = vpop.xlane.xlu0 %1751
        %v1753 = vsel %vm1653, %v1721, 0.0
        %1754 = vadd.xlane.f32.xlu0 %v1753
        %v1755 = vpop.xlane.xlu0 %1754
        %v1756 = vsel %vm1653, %v1723, 0.0
        %1757 = vadd.xlane.f32.xlu0 %v1756
        %v1758 = vpop.xlane.xlu0 %1757
        %v1759 = vsel %vm1653, %v1725, 0.0
        %1760 = vadd.xlane.f32.xlu0 %v1759
        %v1761 = vpop.xlane.xlu0 %1760
        %v1762 = vsel %vm1653, %v1727, 0.0
        %1763 = vadd.xlane.f32.xlu0 %v1762
        %v1764 = vpop.xlane.xlu0 %1763
        %v1765 = vsel %vm1653, %v1729, 0.0
        %1766 = vadd.xlane.f32.xlu0 %v1765
        %v1767 = vpop.xlane.xlu0 %1766
        %v1768 = vsel %vm1653, %v1731, 0.0
        %1769 = vadd.xlane.f32.xlu0 %v1768
        %v1770 = vpop.xlane.xlu0 %1769
        %v1771 = vsel %vm1653, %v1733, 0.0
        %1772 = vadd.xlane.f32.xlu0 %v1771
        %v1773 = vpop.xlane.xlu0 %1772
        %v1774 = vsel %vm1653, %v1735, 0.0
        %1775 = vadd.xlane.f32.xlu0 %v1774
        %v1776 = vpop.xlane.xlu0 %1775
        %v1777 = vsel %vm1653, %v1737, 0.0
        %1778 = vadd.xlane.f32.xlu0 %v1777
        %v1779 = vpop.xlane.xlu0 %1778
        %v1780 = vsel %vm1653, %v1739, 0.0
        %1781 = vadd.xlane.f32.xlu0 %v1780
        %v1782 = vpop.xlane.xlu0 %1781
        %v1783 = vsel %vm1653, %v1741, 0.0
        %1784 = vadd.xlane.f32.xlu0 %v1783
        %v1785 = vpop.xlane.xlu0 %1784
        %v1786 = vsel %vm1653, %v1743, 0.0
        %1787 = vadd.xlane.f32.xlu0 %v1786
        %v1788 = vpop.xlane.xlu0 %1787
        %v1789 = vsel %vm1653, %v1745, 0.0
        %1790 = vadd.xlane.f32.xlu0 %v1789
        %v1791 = vpop.xlane.xlu0 %1790
        %v1792 = vsel %vm1653, %v1747, 0.0
        %1793 = vadd.xlane.f32.xlu0 %v1792
        %v1794 = vpop.xlane.xlu0 %1793
        %v1795 = vsel %vm1653, %v1749, 0.0
        %1796 = vadd.xlane.f32.xlu0 %v1795
        %v1797 = vpop.xlane.xlu0 %1796
        %v1798 = vrcp.pop %v1752
        %v1799 = vrcp.pop %v1755
        %v1800 = vrcp.pop %v1758
        %v1801 = vrcp.pop %v1761
        %v1802 = vrcp.pop %v1764
        %v1803 = vrcp.pop %v1767
        %v1804 = vrcp.pop %v1770
        %v1805 = vrcp.pop %v1773
        %v1806 = vrcp.pop %v1776
        %v1807 = vrcp.pop %v1779
        %v1808 = vrcp.pop %v1782
        %v1809 = vrcp.pop %v1785
        %v1810 = vrcp.pop %v1788
        %v1811 = vrcp.pop %v1791
        %v1812 = vrcp.pop %v1794
        %v1813 = vrcp.pop %v1797
        %v1814 = vmul.f32 %v1719, %v1798
        %v1815 = vmul.f32 %v1721, %v1799
        %v1816 = vmul.f32 %v1723, %v1800
        %v1817 = vmul.f32 %v1725, %v1801
        %v1818 = vmul.f32 %v1727, %v1802
        %v1819 = vmul.f32 %v1729, %v1803
        %v1820 = vmul.f32 %v1731, %v1804
        %v1821 = vmul.f32 %v1733, %v1805
        %v1822 = vmul.f32 %v1735, %v1806
        %v1823 = vmul.f32 %v1737, %v1807
        %v1824 = vmul.f32 %v1739, %v1808
        %v1825 = vmul.f32 %v1741, %v1809
        %v1826 = vmul.f32 %v1743, %v1810
        %v1827 = vmul.f32 %v1745, %v1811
        %v1828 = vmul.f32 %v1747, %v1812
        %v1829 = vmul.f32 %v1749, %v1813
        %v1830 = vpack.c.bf16 %v1815, %v1814
        %v1831 = vpack.c.bf16 %v1817, %v1816
        %v1832 = vpack.c.bf16 %v1819, %v1818
        %v1833 = vpack.c.bf16 %v1821, %v1820
        %v1834 = vpack.c.bf16 %v1823, %v1822
        %v1835 = vpack.c.bf16 %v1825, %v1824
        %v1836 = vpack.c.bf16 %v1827, %v1826
        %v1837 = vpack.c.bf16 %v1829, %v1828
        %v1839 = vsel %vm1653, %v1830, 0
        %v1842 = vsel %vm1653, %v1831, 0
        %v1845 = vsel %vm1653, %v1832, 0
        %v1848 = vsel %vm1653, %v1833, 0
        %v1851 = vsel %vm1653, %v1834, 0
        %v1854 = vsel %vm1653, %v1835, 0
        %v1857 = vsel %vm1653, %v1836, 0
        %v1860 = vsel %vm1653, %v1837, 0
        %1862 = vmatprep.subr.bf16.mxu0 0
        %1863 = vmatpush1.bf16.msra.mxu0 %v1504
        %1864 = vmatprep.subr.bf16.mxu0 0
        %1865 = vmatpush1.bf16.msra.mxu0 %v1507
        %1866 = vmatprep.subr.bf16.mxu0 0
        %1867 = vmatpush1.bf16.msra.mxu0 0
        %1868 = vmatprep.subr.bf16.mxu0 0
        %1869 = vmatpush1.bf16.msra.mxu0 0
        %1870 = vmatprep.subr.bf16.mxu0 0
        %1871 = vmatpush1.bf16.msra.mxu0 0
        %1872 = vmatprep.subr.bf16.mxu0 0
        %1873 = vmatpush1.bf16.msra.mxu0 0
        %1874 = vmatprep.subr.bf16.mxu0 0
        %1875 = vmatpush1.bf16.msra.mxu0 0
        %1876 = vmatprep.subr.bf16.mxu0 0
        %1877 = vmatpush1.bf16.msra.mxu0 0
        %1878 = vmatprep.subr.bf16.mxu0 0
        %1879 = vmatpush1.bf16.msra.mxu0 0
        %1880 = vmatprep.subr.bf16.mxu0 0
        %1881 = vmatpush1.bf16.msra.mxu0 0
        %1882 = vmatprep.subr.bf16.mxu0 0
        %1883 = vmatpush1.bf16.msra.mxu0 0
        %1884 = vmatprep.subr.bf16.mxu0 0
        %1885 = vmatpush1.bf16.msra.mxu0 0
        %1886 = vmatprep.subr.bf16.mxu0 0
        %1887 = vmatpush1.bf16.msra.mxu0 0
        %1888 = vmatprep.subr.bf16.mxu0 0
        %1889 = vmatpush1.bf16.msra.mxu0 0
        %1890 = vmatprep.subr.bf16.mxu0 0
        %1891 = vmatpush1.bf16.msra.mxu0 0
        %1892 = vmatprep.subr.bf16.mxu0 0
        %1893 = vmatpush1.bf16.msra.mxu0 0
        %1894 = vmatprep.mubr.bf16.mxu0 0
        %1895 = vmatmul.mubr.bf16.gmra.mrb[0].mxu0 %v1839
        %v1896 = vpop.f32.mrb[0].mxu0
        %v1897 = vadd.f32 0.0, %v1896
        %v1898 = vpop.f32.mrb[0].mxu0
        %v1899 = vpop.f32.mrb[0].mxu0
        %v1900 = vadd.f32 0.0, %v1899
        %v1901 = vpop.f32.mrb[0].mxu0
        %1902 = vmatprep.mubr.bf16.mxu0 0
        %1903 = vmatmul.mubr.bf16.gmra.mrb[0].mxu0 %v1842
        %v1904 = vpop.f32.mrb[0].mxu0
        %v1905 = vadd.f32 0.0, %v1904
        %v1906 = vpop.f32.mrb[0].mxu0
        %v1907 = vpop.f32.mrb[0].mxu0
        %v1908 = vadd.f32 0.0, %v1907
        %v1909 = vpop.f32.mrb[0].mxu0
        %1910 = vmatprep.mubr.bf16.mxu0 0
        %1911 = vmatmul.mubr.bf16.gmra.mrb[0].mxu0 %v1845
        %v1912 = vpop.f32.mrb[0].mxu0
        %v1913 = vadd.f32 0.0, %v1912
        %v1914 = vpop.f32.mrb[0].mxu0
        %v1915 = vpop.f32.mrb[0].mxu0
        %v1916 = vadd.f32 0.0, %v1915
        %v1917 = vpop.f32.mrb[0].mxu0
        %1918 = vmatprep.mubr.bf16.mxu0 0
        %1919 = vmatmul.mubr.bf16.gmra.mrb[0].mxu0 %v1848
        %v1920 = vpop.f32.mrb[0].mxu0
        %v1921 = vadd.f32 0.0, %v1920
        %v1922 = vpop.f32.mrb[0].mxu0
        %v1923 = vpop.f32.mrb[0].mxu0
        %v1924 = vadd.f32 0.0, %v1923
        %v1925 = vpop.f32.mrb[0].mxu0
        %1926 = vmatprep.mubr.bf16.mxu0 0
        %1927 = vmatmul.mubr.bf16.gmra.mrb[0].mxu0 %v1851
        %v1928 = vpop.f32.mrb[0].mxu0
        %v1929 = vadd.f32 0.0, %v1928
        %v1930 = vpop.f32.mrb[0].mxu0
        %v1931 = vpop.f32.mrb[0].mxu0
        %v1932 = vadd.f32 0.0, %v1931
        %v1933 = vpop.f32.mrb[0].mxu0
        %1934 = vmatprep.mubr.bf16.mxu0 0
        %1935 = vmatmul.mubr.bf16.gmra.mrb[0].mxu0 %v1854
        %v1936 = vpop.f32.mrb[0].mxu0
        %v1937 = vadd.f32 0.0, %v1936
        %v1938 = vpop.f32.mrb[0].mxu0
        %v1939 = vpop.f32.mrb[0].mxu0
        %v1940 = vadd.f32 0.0, %v1939
        %v1941 = vpop.f32.mrb[0].mxu0
        %1942 = vmatprep.mubr.bf16.mxu0 0
        %1943 = vmatmul.mubr.bf16.gmra.mrb[0].mxu0 %v1857
        %v1944 = vpop.f32.mrb[0].mxu0
        %v1945 = vadd.f32 0.0, %v1944
        %v1946 = vpop.f32.mrb[0].mxu0
        %v1947 = vpop.f32.mrb[0].mxu0
        %v1948 = vadd.f32 0.0, %v1947
        %v1949 = vpop.f32.mrb[0].mxu0
        %1950 = vmatprep.mubr.bf16.mxu0 0
        %1951 = vmatmul.mubr.bf16.gmra.mrb[0].mxu0 %v1860
        %v1952 = vpop.f32.mrb[0].mxu0
        %v1953 = vadd.f32 0.0, %v1952
        %v1954 = vpop.f32.mrb[0].mxu0
        %v1955 = vpop.f32.mrb[0].mxu0
        %v1956 = vadd.f32 0.0, %v1955
        %v1957 = vpop.f32.mrb[0].mxu0
        %1958 = vdwg.mxu0
        %v1959 = vmul.f32 %v1897, %v1508
        %v1960 = vmul.f32 %v1900, %v1509
        %v1961 = vmul.f32 %v1905, %v1510
        %v1962 = vmul.f32 %v1908, %v1511
        %v1963 = vmul.f32 %v1913, %v1512
        %v1964 = vmul.f32 %v1916, %v1513
        %v1965 = vmul.f32 %v1921, %v1514
        %v1966 = vmul.f32 %v1924, %v1515
        %v1967 = vmul.f32 %v1929, %v1516
        %v1968 = vmul.f32 %v1932, %v1517
        %v1969 = vmul.f32 %v1937, %v1518
        %v1970 = vmul.f32 %v1940, %v1519
        %v1971 = vmul.f32 %v1945, %v1520
        %v1972 = vmul.f32 %v1948, %v1521
        %v1973 = vmul.f32 %v1953, %v1522
        %v1974 = vmul.f32 %v1956, %v1523
        %v1975 = vadd.f32 %v1959, %v1963
        %v1976 = vadd.f32 %v1960, %v1964
        %v1977 = vadd.f32 %v1961, %v1965
        %v1978 = vadd.f32 %v1962, %v1966
        %v1979 = vadd.f32 %v1975, %v1967
        %v1980 = vadd.f32 %v1976, %v1968
        %v1981 = vadd.f32 %v1977, %v1969
        %v1982 = vadd.f32 %v1978, %v1970
        %v1983 = vadd.f32 %v1979, %v1971
        %v1984 = vadd.f32 %v1980, %v1972
        %v1985 = vadd.f32 %v1981, %v1973
        %v1986 = vadd.f32 %v1982, %v1974
        %v1987 = vpack.c.bf16 %v1984, %v1983
        %v1988 = vpack.c.bf16 %v1986, %v1985
        %v1989 = vld [vmem:[%s820] sm:$0xf]
        %v1990 = vld [vmem:[%s820 + $0x4] sm:$0xf]
        %v1991 = vld [vmem:[%s820 + $0x8] sm:$0xf]
        %v1992 = vld [vmem:[%s820 + $0xc] sm:$0xf]
        %v1993 = vld [vmem:[%s820 + $0x10] sm:$0xf]
        %v1994 = vld [vmem:[%s820 + $0x14] sm:$0xf]
        %v1995 = vld [vmem:[%s820 + $0x18] sm:$0xf]
        %v1996 = vld [vmem:[%s820 + $0x1c] sm:$0xf]
        %v1997 = vld [vmem:[%s820 + $0x20] sm:$0xf]
        %v1998 = vld [vmem:[%s820 + $0x24] sm:$0xf]
        %v1999 = vld [vmem:[%s820 + $0x28] sm:$0xf]
        %v2000 = vld [vmem:[%s820 + $0x2c] sm:$0xf]
        %v2001 = vld [vmem:[%s820 + $0x30] sm:$0xf]
        %v2002 = vld [vmem:[%s820 + $0x34] sm:$0xf]
        %v2003 = vld [vmem:[%s820 + $0x38] sm:$0xf]
        %v2004 = vld [vmem:[%s820 + $0x3c] sm:$0xf]
        %v2005 = vld [vmem:[%s828] sm:$0x1]
        %v2007 = vlaneseq
        %v2008 = vshrl.u32 %v2007, 7
        %v2009 = vsub.s32 0, %v2008
        %v2010 = vrot.slane %v2005, %v2009
        %v2028 = vunpack.c.l.b16 %v1989
        %v2029 = vunpack.c.l.b16 %v1990
        %v2030 = vunpack.c.l.b16 %v1991
        %v2031 = vunpack.c.l.b16 %v1992
        %v2032 = vunpack.c.l.b16 %v1993
        %v2033 = vunpack.c.l.b16 %v1994
        %v2034 = vunpack.c.l.b16 %v1995
        %v2035 = vunpack.c.l.b16 %v1996
        %v2036 = vunpack.c.l.b16 %v1997
        %v2037 = vunpack.c.l.b16 %v1998
        %v2038 = vunpack.c.l.b16 %v1999
        %v2039 = vunpack.c.l.b16 %v2000
        %v2040 = vunpack.c.l.b16 %v2001
        %v2041 = vunpack.c.l.b16 %v2002
        %v2042 = vunpack.c.l.b16 %v2003
        %v2043 = vunpack.c.l.b16 %v2004
        %v2044 = vpack.c.b16 %v2029, %v2028
        %v2045 = vpack.c.b16 %v2031, %v2030
        %v2046 = vpack.c.b16 %v2033, %v2032
        %v2047 = vpack.c.b16 %v2035, %v2034
        %v2048 = vpack.c.b16 %v2037, %v2036
        %v2049 = vpack.c.b16 %v2039, %v2038
        %v2050 = vpack.c.b16 %v2041, %v2040
        %v2051 = vpack.c.b16 %v2043, %v2042
        %2060 = vmatprep.subr.bf16.mxu0 0
        %2061 = vmatpush1.bf16.msra.mxu0 %v2044
        %2062 = vmatprep.subr.bf16.mxu0 0
        %2063 = vmatpush1.bf16.msra.mxu0 %v2045
        %2064 = vmatprep.subr.bf16.mxu0 0
        %2065 = vmatpush1.bf16.msra.mxu0 %v2046
        %2066 = vmatprep.subr.bf16.mxu0 0
        %2067 = vmatpush1.bf16.msra.mxu0 %v2047
        %2068 = vmatprep.subr.bf16.mxu0 0
        %2069 = vmatpush1.bf16.msra.mxu0 %v2048
        %2070 = vmatprep.subr.bf16.mxu0 0
        %2071 = vmatpush1.bf16.msra.mxu0 %v2049
        %2072 = vmatprep.subr.bf16.mxu0 0
        %2073 = vmatpush1.bf16.msra.mxu0 %v2050
        %2074 = vmatprep.subr.bf16.mxu0 0
        %2075 = vmatpush1.bf16.msra.mxu0 %v2051
        %2076 = vmatprep.subr.bf16.mxu0 0
        %2077 = vmatpush1.bf16.msra.mxu0 0
        %2078 = vmatprep.subr.bf16.mxu0 0
        %2079 = vmatpush1.bf16.msra.mxu0 0
        %2080 = vmatprep.subr.bf16.mxu0 0
        %2081 = vmatpush1.bf16.msra.mxu0 0
        %2082 = vmatprep.subr.bf16.mxu0 0
        %2083 = vmatpush1.bf16.msra.mxu0 0
        %2084 = vmatprep.subr.bf16.mxu0 0
        %2085 = vmatpush1.bf16.msra.mxu0 0
        %2086 = vmatprep.subr.bf16.mxu0 0
        %2087 = vmatpush1.bf16.msra.mxu0 0
        %2088 = vmatprep.subr.bf16.mxu0 0
        %2089 = vmatpush1.bf16.msra.mxu0 0
        %2090 = vmatprep.subr.bf16.mxu0 0
        %2091 = vmatpush1.bf16.msra.mxu0 0
        %2092 = vmatprep.mubr.bf16.mxu0 0
        %2093 = vmatmul.mubr.bf16.gmra.mrb[0].mxu0 %v1987
        %v2094 = vpop.f32.mrb[0].mxu0
        %v2095 = vadd.f32 %v2010, %v2094
        %v2096 = vpop.f32.mrb[0].mxu0
        %v2097 = vpop.f32.mrb[0].mxu0
        %v2098 = vadd.f32 %v2010, %v2097
        %v2099 = vpop.f32.mrb[0].mxu0
        %2100 = vmatprep.mubr.bf16.mxu0 0
        %2101 = vmatmul.mubr.bf16.gmra.mrb[0].mxu0 %v1988
        %v2102 = vpop.f32.mrb[0].mxu0
        %v2103 = vadd.f32 %v2010, %v2102
        %v2104 = vpop.f32.mrb[0].mxu0
        %v2105 = vpop.f32.mrb[0].mxu0
        %v2106 = vadd.f32 %v2010, %v2105
        %v2107 = vpop.f32.mrb[0].mxu0
        %2108 = vdwg.mxu0
        %v2109 = vadd.f32 %v1217, %v2095
        %v2110 = vadd.f32 %v1218, %v2098
        %v2111 = vadd.f32 %v1219, %v2103
        %v2112 = vadd.f32 %v1220, %v2106
        %v2113 = vld [vmem:[%s836] sm:$0x1]
        %v2114 = vld [vmem:[%s844] sm:$0x1]
        %2115 = vadd.xlane.f32.xlu0 %v2109
        %v2116 = vpop.xlane.xlu0 %2115
        %2117 = vadd.xlane.f32.xlu0 %v2110
        %v2118 = vpop.xlane.xlu0 %2117
        %2119 = vadd.xlane.f32.xlu0 %v2111
        %v2120 = vpop.xlane.xlu0 %2119
        %2121 = vadd.xlane.f32.xlu0 %v2112
        %v2122 = vpop.xlane.xlu0 %2121
        %v2123 = vrcp.pop 128.0
        %v2124 = vmul.f32 %v2116, %v2123
        %v2125 = vmul.f32 %v2118, %v2123
        %v2126 = vmul.f32 %v2120, %v2123
        %v2127 = vmul.f32 %v2122, %v2123
        %v2128 = vmul.f32 %v2109, %v2109
        %v2129 = vmul.f32 %v2110, %v2110
        %v2130 = vmul.f32 %v2111, %v2111
        %v2131 = vmul.f32 %v2112, %v2112
        %2132 = vadd.xlane.f32.xlu0 %v2128
        %v2133 = vpop.xlane.xlu0 %2132
        %2134 = vadd.xlane.f32.xlu0 %v2129
        %v2135 = vpop.xlane.xlu0 %2134
        %2136 = vadd.xlane.f32.xlu0 %v2130
        %v2137 = vpop.xlane.xlu0 %2136
        %2138 = vadd.xlane.f32.xlu0 %v2131
        %v2139 = vpop.xlane.xlu0 %2138
        %v2140 = vmul.f32 %v2133, %v2123
        %v2141 = vmul.f32 %v2135, %v2123
        %v2142 = vmul.f32 %v2137, %v2123
        %v2143 = vmul.f32 %v2139, %v2123
        %v2144 = vmul.f32 %v2124, %v2124
        %v2145 = vmul.f32 %v2125, %v2125
        %v2146 = vmul.f32 %v2126, %v2126
        %v2147 = vmul.f32 %v2127, %v2127
        %v2148 = vsub.f32 %v2140, %v2144
        %v2149 = vsub.f32 %v2141, %v2145
        %v2150 = vsub.f32 %v2142, %v2146
        %v2151 = vsub.f32 %v2143, %v2147
        %v2152 = vmax.f32 %v2148, 0.0
        %v2153 = vmax.f32 %v2149, 0.0
        %v2154 = vmax.f32 %v2150, 0.0
        %v2155 = vmax.f32 %v2151, 0.0
        %v2156 = vsub.f32 %v2109, %v2124
        %v2157 = vsub.f32 %v2110, %v2125
        %v2158 = vsub.f32 %v2111, %v2126
        %v2159 = vsub.f32 %v2112, %v2127
        %v2160 = vadd.f32 %v2152, 1e-12
        %v2161 = vadd.f32 %v2153, 1e-12
        %v2162 = vadd.f32 %v2154, 1e-12
        %v2163 = vadd.f32 %v2155, 1e-12
        %v2164 = vrsqrt.pop %v2160
        %v2165 = vrsqrt.pop %v2161
        %v2166 = vrsqrt.pop %v2162
        %v2167 = vrsqrt.pop %v2163
        %v2168 = vmul.f32 %v2156, %v2164
        %v2169 = vmul.f32 %v2157, %v2165
        %v2170 = vmul.f32 %v2158, %v2166
        %v2171 = vmul.f32 %v2159, %v2167
        %v2173 = vlaneseq
        %v2174 = vshrl.u32 %v2173, 7
        %v2175 = vsub.s32 0, %v2174
        %v2176 = vrot.slane %v2113, %v2175
        %v2178 = vmul.f32 %v2168, %v2176
        %v2179 = vmul.f32 %v2169, %v2176
        %v2180 = vmul.f32 %v2170, %v2176
        %v2181 = vmul.f32 %v2171, %v2176
        %v2183 = vlaneseq
        %v2184 = vshrl.u32 %v2183, 7
        %v2185 = vsub.s32 0, %v2184
        %v2186 = vrot.slane %v2114, %v2185
        %v2188 = vadd.f32 %v2178, %v2186
        %v2189 = vadd.f32 %v2179, %v2186
        %v2190 = vadd.f32 %v2180, %v2186
        %v2191 = vadd.f32 %v2181, %v2186
        %v2192 = vpack.c.bf16 %v2189, %v2188
        %v2193 = vpack.c.bf16 %v2191, %v2190
        %v2194 = vld [vmem:[%s853] sm:$0xff]
        %v2195 = vld [vmem:[%s853 + $0x8] sm:$0xff]
        %v2196 = vld [vmem:[%s853 + $0x10] sm:$0xff]
        %v2197 = vld [vmem:[%s853 + $0x18] sm:$0xff]
        %v2198 = vld [vmem:[%s853 + $0x20] sm:$0xff]
        %v2199 = vld [vmem:[%s853 + $0x28] sm:$0xff]
        %v2200 = vld [vmem:[%s853 + $0x30] sm:$0xff]
        %v2201 = vld [vmem:[%s853 + $0x38] sm:$0xff]
        %v2202 = vld [vmem:[%s853 + $0x40] sm:$0xff]
        %v2203 = vld [vmem:[%s853 + $0x48] sm:$0xff]
        %v2204 = vld [vmem:[%s853 + $0x50] sm:$0xff]
        %v2205 = vld [vmem:[%s853 + $0x58] sm:$0xff]
        %v2206 = vld [vmem:[%s853 + $0x60] sm:$0xff]
        %v2207 = vld [vmem:[%s853 + $0x68] sm:$0xff]
        %v2208 = vld [vmem:[%s853 + $0x70] sm:$0xff]
        %v2209 = vld [vmem:[%s853 + $0x78] sm:$0xff]
        %v2210 = vld [vmem:[%s853 + $0x80] sm:$0xff]
        %v2211 = vld [vmem:[%s853 + $0x88] sm:$0xff]
        %v2212 = vld [vmem:[%s853 + $0x90] sm:$0xff]
        %v2213 = vld [vmem:[%s853 + $0x98] sm:$0xff]
        %v2214 = vld [vmem:[%s853 + $0xa0] sm:$0xff]
        %v2215 = vld [vmem:[%s853 + $0xa8] sm:$0xff]
        %v2216 = vld [vmem:[%s853 + $0xb0] sm:$0xff]
        %v2217 = vld [vmem:[%s853 + $0xb8] sm:$0xff]
        %v2218 = vld [vmem:[%s853 + $0xc0] sm:$0xff]
        %v2219 = vld [vmem:[%s853 + $0xc8] sm:$0xff]
        %v2220 = vld [vmem:[%s853 + $0xd0] sm:$0xff]
        %v2221 = vld [vmem:[%s853 + $0xd8] sm:$0xff]
        %v2222 = vld [vmem:[%s853 + $0xe0] sm:$0xff]
        %v2223 = vld [vmem:[%s853 + $0xe8] sm:$0xff]
        %v2224 = vld [vmem:[%s853 + $0xf0] sm:$0xff]
        %v2225 = vld [vmem:[%s853 + $0xf8] sm:$0xff]
        %v2226 = vld [vmem:[%s862] sm:$0xf]
        %v2228 = vlaneseq
        %v2229 = vshrl.u32 %v2228, 7
        %v2230 = vsub.s32 0, %v2229
        %v2231 = vrot.slane %v2226, %v2230
        %v2232 = vlaneseq
        %v2233 = vshrl.u32 %v2232, 7
        %v2234 = vsub.s32 1, %v2233
        %v2235 = vrot.slane %v2226, %v2234
        %v2236 = vlaneseq
        %v2237 = vshrl.u32 %v2236, 7
        %v2238 = vsub.s32 2, %v2237
        %v2239 = vrot.slane %v2226, %v2238
        %v2240 = vlaneseq
        %v2241 = vshrl.u32 %v2240, 7
        %v2242 = vsub.s32 3, %v2241
        %v2243 = vrot.slane %v2226, %v2242
        %v2280 = vunpack.c.l.b16 %v2194
        %v2281 = vunpack.c.h.b16 %v2194
        %v2282 = vunpack.c.l.b16 %v2195
        %v2283 = vunpack.c.h.b16 %v2195
        %v2284 = vunpack.c.l.b16 %v2196
        %v2285 = vunpack.c.h.b16 %v2196
        %v2286 = vunpack.c.l.b16 %v2197
        %v2287 = vunpack.c.h.b16 %v2197
        %v2288 = vunpack.c.l.b16 %v2198
        %v2289 = vunpack.c.h.b16 %v2198
        %v2290 = vunpack.c.l.b16 %v2199
        %v2291 = vunpack.c.h.b16 %v2199
        %v2292 = vunpack.c.l.b16 %v2200
        %v2293 = vunpack.c.h.b16 %v2200
        %v2294 = vunpack.c.l.b16 %v2201
        %v2295 = vunpack.c.h.b16 %v2201
        %v2296 = vunpack.c.l.b16 %v2202
        %v2297 = vunpack.c.h.b16 %v2202
        %v2298 = vunpack.c.l.b16 %v2203
        %v2299 = vunpack.c.h.b16 %v2203
        %v2300 = vunpack.c.l.b16 %v2204
        %v2301 = vunpack.c.h.b16 %v2204
        %v2302 = vunpack.c.l.b16 %v2205
        %v2303 = vunpack.c.h.b16 %v2205
        %v2304 = vunpack.c.l.b16 %v2206
        %v2305 = vunpack.c.h.b16 %v2206
        %v2306 = vunpack.c.l.b16 %v2207
        %v2307 = vunpack.c.h.b16 %v2207
        %v2308 = vunpack.c.l.b16 %v2208
        %v2309 = vunpack.c.h.b16 %v2208
        %v2310 = vunpack.c.l.b16 %v2209
        %v2311 = vunpack.c.h.b16 %v2209
        %v2312 = vunpack.c.l.b16 %v2210
        %v2313 = vunpack.c.h.b16 %v2210
        %v2314 = vunpack.c.l.b16 %v2211
        %v2315 = vunpack.c.h.b16 %v2211
        %v2316 = vunpack.c.l.b16 %v2212
        %v2317 = vunpack.c.h.b16 %v2212
        %v2318 = vunpack.c.l.b16 %v2213
        %v2319 = vunpack.c.h.b16 %v2213
        %v2320 = vunpack.c.l.b16 %v2214
        %v2321 = vunpack.c.h.b16 %v2214
        %v2322 = vunpack.c.l.b16 %v2215
        %v2323 = vunpack.c.h.b16 %v2215
        %v2324 = vunpack.c.l.b16 %v2216
        %v2325 = vunpack.c.h.b16 %v2216
        %v2326 = vunpack.c.l.b16 %v2217
        %v2327 = vunpack.c.h.b16 %v2217
        %v2328 = vunpack.c.l.b16 %v2218
        %v2329 = vunpack.c.h.b16 %v2218
        %v2330 = vunpack.c.l.b16 %v2219
        %v2331 = vunpack.c.h.b16 %v2219
        %v2332 = vunpack.c.l.b16 %v2220
        %v2333 = vunpack.c.h.b16 %v2220
        %v2334 = vunpack.c.l.b16 %v2221
        %v2335 = vunpack.c.h.b16 %v2221
        %v2336 = vunpack.c.l.b16 %v2222
        %v2337 = vunpack.c.h.b16 %v2222
        %v2338 = vunpack.c.l.b16 %v2223
        %v2339 = vunpack.c.h.b16 %v2223
        %v2340 = vunpack.c.l.b16 %v2224
        %v2341 = vunpack.c.h.b16 %v2224
        %v2342 = vunpack.c.l.b16 %v2225
        %v2343 = vunpack.c.h.b16 %v2225
        %v2344 = vpack.c.b16 %v2284, %v2280
        %v2345 = vpack.c.b16 %v2285, %v2281
        %v2346 = vpack.c.b16 %v2286, %v2282
        %v2347 = vpack.c.b16 %v2287, %v2283
        %v2348 = vpack.c.b16 %v2292, %v2288
        %v2349 = vpack.c.b16 %v2293, %v2289
        %v2350 = vpack.c.b16 %v2294, %v2290
        %v2351 = vpack.c.b16 %v2295, %v2291
        %v2352 = vpack.c.b16 %v2300, %v2296
        %v2353 = vpack.c.b16 %v2301, %v2297
        %v2354 = vpack.c.b16 %v2302, %v2298
        %v2355 = vpack.c.b16 %v2303, %v2299
        %v2356 = vpack.c.b16 %v2308, %v2304
        %v2357 = vpack.c.b16 %v2309, %v2305
        %v2358 = vpack.c.b16 %v2310, %v2306
        %v2359 = vpack.c.b16 %v2311, %v2307
        %v2360 = vpack.c.b16 %v2316, %v2312
        %v2361 = vpack.c.b16 %v2317, %v2313
        %v2362 = vpack.c.b16 %v2318, %v2314
        %v2363 = vpack.c.b16 %v2319, %v2315
        %v2364 = vpack.c.b16 %v2324, %v2320
        %v2365 = vpack.c.b16 %v2325, %v2321
        %v2366 = vpack.c.b16 %v2326, %v2322
        %v2367 = vpack.c.b16 %v2327, %v2323
        %v2368 = vpack.c.b16 %v2332, %v2328
        %v2369 = vpack.c.b16 %v2333, %v2329
        %v2370 = vpack.c.b16 %v2334, %v2330
        %v2371 = vpack.c.b16 %v2335, %v2331
        %v2372 = vpack.c.b16 %v2340, %v2336
        %v2373 = vpack.c.b16 %v2341, %v2337
        %v2374 = vpack.c.b16 %v2342, %v2338
        %v2375 = vpack.c.b16 %v2343, %v2339
        %2408 = vmatprep.subr.bf16.mxu0 %v2345
        %2409 = vmatpush1.bf16.msra.mxu0 %v2344
        %2410 = vmatprep.subr.bf16.mxu0 %v2349
        %2411 = vmatpush1.bf16.msra.mxu0 %v2348
        %2412 = vmatprep.subr.bf16.mxu0 %v2353
        %2413 = vmatpush1.bf16.msra.mxu0 %v2352
        %2414 = vmatprep.subr.bf16.mxu0 %v2357
        %2415 = vmatpush1.bf16.msra.mxu0 %v2356
        %2416 = vmatprep.subr.bf16.mxu0 %v2361
        %2417 = vmatpush1.bf16.msra.mxu0 %v2360
        %2418 = vmatprep.subr.bf16.mxu0 %v2365
        %2419 = vmatpush1.bf16.msra.mxu0 %v2364
        %2420 = vmatprep.subr.bf16.mxu0 %v2369
        %2421 = vmatpush1.bf16.msra.mxu0 %v2368
        %2422 = vmatprep.subr.bf16.mxu0 %v2373
        %2423 = vmatpush1.bf16.msra.mxu0 %v2372
        %2424 = vmatprep.subr.bf16.mxu0 0
        %2425 = vmatpush1.bf16.msra.mxu0 0
        %2426 = vmatprep.subr.bf16.mxu0 0
        %2427 = vmatpush1.bf16.msra.mxu0 0
        %2428 = vmatprep.subr.bf16.mxu0 0
        %2429 = vmatpush1.bf16.msra.mxu0 0
        %2430 = vmatprep.subr.bf16.mxu0 0
        %2431 = vmatpush1.bf16.msra.mxu0 0
        %2432 = vmatprep.subr.bf16.mxu0 0
        %2433 = vmatpush1.bf16.msra.mxu0 0
        %2434 = vmatprep.subr.bf16.mxu0 0
        %2435 = vmatpush1.bf16.msra.mxu0 0
        %2436 = vmatprep.subr.bf16.mxu0 0
        %2437 = vmatpush1.bf16.msra.mxu0 0
        %2438 = vmatprep.subr.bf16.mxu0 0
        %2439 = vmatpush1.bf16.msra.mxu0 0
        %2440 = vmatprep.mubr.bf16.mxu0 0
        %2441 = vmatmul.mubr.bf16.gmra.mrb[0].mxu0 %v2192
        %v2442 = vpop.f32.mrb[0].mxu0
        %v2443 = vadd.f32 %v2231, %v2442
        %v2444 = vpop.f32.mrb[0].mxu0
        %v2445 = vadd.f32 %v2235, %v2444
        %v2446 = vpop.f32.mrb[0].mxu0
        %v2447 = vadd.f32 %v2231, %v2446
        %v2448 = vpop.f32.mrb[0].mxu0
        %v2449 = vadd.f32 %v2235, %v2448
        %2450 = vmatprep.mubr.bf16.mxu0 0
        %2451 = vmatmul.mubr.bf16.gmra.mrb[0].mxu0 %v2193
        %v2452 = vpop.f32.mrb[0].mxu0
        %v2453 = vadd.f32 %v2231, %v2452
        %v2454 = vpop.f32.mrb[0].mxu0
        %v2455 = vadd.f32 %v2235, %v2454
        %v2456 = vpop.f32.mrb[0].mxu0
        %v2457 = vadd.f32 %v2231, %v2456
        %v2458 = vpop.f32.mrb[0].mxu0
        %v2459 = vadd.f32 %v2235, %v2458
        %2460 = vdwg.mxu0
        %2461 = vmatprep.subr.bf16.mxu0 %v2347
        %2462 = vmatpush1.bf16.msra.mxu0 %v2346
        %2463 = vmatprep.subr.bf16.mxu0 %v2351
        %2464 = vmatpush1.bf16.msra.mxu0 %v2350
        %2465 = vmatprep.subr.bf16.mxu0 %v2355
        %2466 = vmatpush1.bf16.msra.mxu0 %v2354
        %2467 = vmatprep.subr.bf16.mxu0 %v2359
        %2468 = vmatpush1.bf16.msra.mxu0 %v2358
        %2469 = vmatprep.subr.bf16.mxu0 %v2363
        %2470 = vmatpush1.bf16.msra.mxu0 %v2362
        %2471 = vmatprep.subr.bf16.mxu0 %v2367
        %2472 = vmatpush1.bf16.msra.mxu0 %v2366
        %2473 = vmatprep.subr.bf16.mxu0 %v2371
        %2474 = vmatpush1.bf16.msra.mxu0 %v2370
        %2475 = vmatprep.subr.bf16.mxu0 %v2375
        %2476 = vmatpush1.bf16.msra.mxu0 %v2374
        %2477 = vmatprep.subr.bf16.mxu0 0
        %2478 = vmatpush1.bf16.msra.mxu0 0
        %2479 = vmatprep.subr.bf16.mxu0 0
        %2480 = vmatpush1.bf16.msra.mxu0 0
        %2481 = vmatprep.subr.bf16.mxu0 0
        %2482 = vmatpush1.bf16.msra.mxu0 0
        %2483 = vmatprep.subr.bf16.mxu0 0
        %2484 = vmatpush1.bf16.msra.mxu0 0
        %2485 = vmatprep.subr.bf16.mxu0 0
        %2486 = vmatpush1.bf16.msra.mxu0 0
        %2487 = vmatprep.subr.bf16.mxu0 0
        %2488 = vmatpush1.bf16.msra.mxu0 0
        %2489 = vmatprep.subr.bf16.mxu0 0
        %2490 = vmatpush1.bf16.msra.mxu0 0
        %2491 = vmatprep.subr.bf16.mxu0 0
        %2492 = vmatpush1.bf16.msra.mxu0 0
        %2493 = vmatprep.mubr.bf16.mxu0 0
        %2494 = vmatmul.mubr.bf16.gmra.mrb[0].mxu0 %v2192
        %v2495 = vpop.f32.mrb[0].mxu0
        %v2496 = vadd.f32 %v2239, %v2495
        %v2497 = vpop.f32.mrb[0].mxu0
        %v2498 = vadd.f32 %v2243, %v2497
        %v2499 = vpop.f32.mrb[0].mxu0
        %v2500 = vadd.f32 %v2239, %v2499
        %v2501 = vpop.f32.mrb[0].mxu0
        %v2502 = vadd.f32 %v2243, %v2501
        %2503 = vmatprep.mubr.bf16.mxu0 0
        %2504 = vmatmul.mubr.bf16.gmra.mrb[0].mxu0 %v2193
        %v2505 = vpop.f32.mrb[0].mxu0
        %v2506 = vadd.f32 %v2239, %v2505
        %v2507 = vpop.f32.mrb[0].mxu0
        %v2508 = vadd.f32 %v2243, %v2507
        %v2509 = vpop.f32.mrb[0].mxu0
        %v2510 = vadd.f32 %v2239, %v2509
        %v2511 = vpop.f32.mrb[0].mxu0
        %v2512 = vadd.f32 %v2243, %v2511
        %2513 = vdwg.mxu0
        %v2514 = vmul.f32 %v2443, %v2443
        %v2515 = vmul.f32 %v2445, %v2445
        %v2516 = vmul.f32 %v2496, %v2496
        %v2517 = vmul.f32 %v2498, %v2498
        %v2518 = vmul.f32 %v2447, %v2447
        %v2519 = vmul.f32 %v2449, %v2449
        %v2520 = vmul.f32 %v2500, %v2500
        %v2521 = vmul.f32 %v2502, %v2502
        %v2522 = vmul.f32 %v2453, %v2453
        %v2523 = vmul.f32 %v2455, %v2455
        %v2524 = vmul.f32 %v2506, %v2506
        %v2525 = vmul.f32 %v2508, %v2508
        %v2526 = vmul.f32 %v2457, %v2457
        %v2527 = vmul.f32 %v2459, %v2459
        %v2528 = vmul.f32 %v2510, %v2510
        %v2529 = vmul.f32 %v2512, %v2512
        %v2530 = vmul.f32 %v2443, %v2514
        %v2531 = vmul.f32 %v2445, %v2515
        %v2532 = vmul.f32 %v2496, %v2516
        %v2533 = vmul.f32 %v2498, %v2517
        %v2534 = vmul.f32 %v2447, %v2518
        %v2535 = vmul.f32 %v2449, %v2519
        %v2536 = vmul.f32 %v2500, %v2520
        %v2537 = vmul.f32 %v2502, %v2521
        %v2538 = vmul.f32 %v2453, %v2522
        %v2539 = vmul.f32 %v2455, %v2523
        %v2540 = vmul.f32 %v2506, %v2524
        %v2541 = vmul.f32 %v2508, %v2525
        %v2542 = vmul.f32 %v2457, %v2526
        %v2543 = vmul.f32 %v2459, %v2527
        %v2544 = vmul.f32 %v2510, %v2528
        %v2545 = vmul.f32 %v2512, %v2529
        %v2546 = vmul.f32 %v2530, 0.044715
        %v2547 = vmul.f32 %v2531, 0.044715
        %v2548 = vmul.f32 %v2532, 0.044715
        %v2549 = vmul.f32 %v2533, 0.044715
        %v2550 = vmul.f32 %v2534, 0.044715
        %v2551 = vmul.f32 %v2535, 0.044715
        %v2552 = vmul.f32 %v2536, 0.044715
        %v2553 = vmul.f32 %v2537, 0.044715
        %v2554 = vmul.f32 %v2538, 0.044715
        %v2555 = vmul.f32 %v2539, 0.044715
        %v2556 = vmul.f32 %v2540, 0.044715
        %v2557 = vmul.f32 %v2541, 0.044715
        %v2558 = vmul.f32 %v2542, 0.044715
        %v2559 = vmul.f32 %v2543, 0.044715
        %v2560 = vmul.f32 %v2544, 0.044715
        %v2561 = vmul.f32 %v2545, 0.044715
        %v2562 = vadd.f32 %v2443, %v2546
        %v2563 = vadd.f32 %v2445, %v2547
        %v2564 = vadd.f32 %v2496, %v2548
        %v2565 = vadd.f32 %v2498, %v2549
        %v2566 = vadd.f32 %v2447, %v2550
        %v2567 = vadd.f32 %v2449, %v2551
        %v2568 = vadd.f32 %v2500, %v2552
        %v2569 = vadd.f32 %v2502, %v2553
        %v2570 = vadd.f32 %v2453, %v2554
        %v2571 = vadd.f32 %v2455, %v2555
        %v2572 = vadd.f32 %v2506, %v2556
        %v2573 = vadd.f32 %v2508, %v2557
        %v2574 = vadd.f32 %v2457, %v2558
        %v2575 = vadd.f32 %v2459, %v2559
        %v2576 = vadd.f32 %v2510, %v2560
        %v2577 = vadd.f32 %v2512, %v2561
        %v2578 = vmul.f32 %v2562, 0.7978846
        %v2579 = vmul.f32 %v2563, 0.7978846
        %v2580 = vmul.f32 %v2564, 0.7978846
        %v2581 = vmul.f32 %v2565, 0.7978846
        %v2582 = vmul.f32 %v2566, 0.7978846
        %v2583 = vmul.f32 %v2567, 0.7978846
        %v2584 = vmul.f32 %v2568, 0.7978846
        %v2585 = vmul.f32 %v2569, 0.7978846
        %v2586 = vmul.f32 %v2570, 0.7978846
        %v2587 = vmul.f32 %v2571, 0.7978846
        %v2588 = vmul.f32 %v2572, 0.7978846
        %v2589 = vmul.f32 %v2573, 0.7978846
        %v2590 = vmul.f32 %v2574, 0.7978846
        %v2591 = vmul.f32 %v2575, 0.7978846
        %v2592 = vmul.f32 %v2576, 0.7978846
        %v2593 = vmul.f32 %v2577, 0.7978846
        %v2594 = vtanh.pop %v2578
        %v2595 = vtanh.pop %v2579
        %v2596 = vtanh.pop %v2580
        %v2597 = vtanh.pop %v2581
        %v2598 = vtanh.pop %v2582
        %v2599 = vtanh.pop %v2583
        %v2600 = vtanh.pop %v2584
        %v2601 = vtanh.pop %v2585
        %v2602 = vtanh.pop %v2586
        %v2603 = vtanh.pop %v2587
        %v2604 = vtanh.pop %v2588
        %v2605 = vtanh.pop %v2589
        %v2606 = vtanh.pop %v2590
        %v2607 = vtanh.pop %v2591
        %v2608 = vtanh.pop %v2592
        %v2609 = vtanh.pop %v2593
        %v2610 = vadd.f32 %v2594, 1.0
        %v2611 = vadd.f32 %v2595, 1.0
        %v2612 = vadd.f32 %v2596, 1.0
        %v2613 = vadd.f32 %v2597, 1.0
        %v2614 = vadd.f32 %v2598, 1.0
        %v2615 = vadd.f32 %v2599, 1.0
        %v2616 = vadd.f32 %v2600, 1.0
        %v2617 = vadd.f32 %v2601, 1.0
        %v2618 = vadd.f32 %v2602, 1.0
        %v2619 = vadd.f32 %v2603, 1.0
        %v2620 = vadd.f32 %v2604, 1.0
        %v2621 = vadd.f32 %v2605, 1.0
        %v2622 = vadd.f32 %v2606, 1.0
        %v2623 = vadd.f32 %v2607, 1.0
        %v2624 = vadd.f32 %v2608, 1.0
        %v2625 = vadd.f32 %v2609, 1.0
        %v2626 = vmul.f32 %v2610, 0.5
        %v2627 = vmul.f32 %v2611, 0.5
        %v2628 = vmul.f32 %v2612, 0.5
        %v2629 = vmul.f32 %v2613, 0.5
        %v2630 = vmul.f32 %v2614, 0.5
        %v2631 = vmul.f32 %v2615, 0.5
        %v2632 = vmul.f32 %v2616, 0.5
        %v2633 = vmul.f32 %v2617, 0.5
        %v2634 = vmul.f32 %v2618, 0.5
        %v2635 = vmul.f32 %v2619, 0.5
        %v2636 = vmul.f32 %v2620, 0.5
        %v2637 = vmul.f32 %v2621, 0.5
        %v2638 = vmul.f32 %v2622, 0.5
        %v2639 = vmul.f32 %v2623, 0.5
        %v2640 = vmul.f32 %v2624, 0.5
        %v2641 = vmul.f32 %v2625, 0.5
        %v2642 = vmul.f32 %v2443, %v2626
        %v2643 = vmul.f32 %v2445, %v2627
        %v2644 = vmul.f32 %v2496, %v2628
        %v2645 = vmul.f32 %v2498, %v2629
        %v2646 = vmul.f32 %v2447, %v2630
        %v2647 = vmul.f32 %v2449, %v2631
        %v2648 = vmul.f32 %v2500, %v2632
        %v2649 = vmul.f32 %v2502, %v2633
        %v2650 = vmul.f32 %v2453, %v2634
        %v2651 = vmul.f32 %v2455, %v2635
        %v2652 = vmul.f32 %v2506, %v2636
        %v2653 = vmul.f32 %v2508, %v2637
        %v2654 = vmul.f32 %v2457, %v2638
        %v2655 = vmul.f32 %v2459, %v2639
        %v2656 = vmul.f32 %v2510, %v2640
        %v2657 = vmul.f32 %v2512, %v2641
        %v2658 = vpack.c.bf16 %v2646, %v2642
        %v2659 = vpack.c.bf16 %v2647, %v2643
        %v2660 = vpack.c.bf16 %v2648, %v2644
        %v2661 = vpack.c.bf16 %v2649, %v2645
        %v2662 = vpack.c.bf16 %v2654, %v2650
        %v2663 = vpack.c.bf16 %v2655, %v2651
        %v2664 = vpack.c.bf16 %v2656, %v2652
        %v2665 = vpack.c.bf16 %v2657, %v2653
        %v2666 = vld [vmem:[%s871] sm:$0xf]
        %v2667 = vld [vmem:[%s871 + $0x4] sm:$0xf]
        %v2668 = vld [vmem:[%s871 + $0x8] sm:$0xf]
        %v2669 = vld [vmem:[%s871 + $0xc] sm:$0xf]
        %v2670 = vld [vmem:[%s871 + $0x10] sm:$0xf]
        %v2671 = vld [vmem:[%s871 + $0x14] sm:$0xf]
        %v2672 = vld [vmem:[%s871 + $0x18] sm:$0xf]
        %v2673 = vld [vmem:[%s871 + $0x1c] sm:$0xf]
        %v2674 = vld [vmem:[%s871 + $0x20] sm:$0xf]
        %v2675 = vld [vmem:[%s871 + $0x24] sm:$0xf]
        %v2676 = vld [vmem:[%s871 + $0x28] sm:$0xf]
        %v2677 = vld [vmem:[%s871 + $0x2c] sm:$0xf]
        %v2678 = vld [vmem:[%s871 + $0x30] sm:$0xf]
        %v2679 = vld [vmem:[%s871 + $0x34] sm:$0xf]
        %v2680 = vld [vmem:[%s871 + $0x38] sm:$0xf]
        %v2681 = vld [vmem:[%s871 + $0x3c] sm:$0xf]
        %v2682 = vld [vmem:[%s871 + $0x40] sm:$0xf]
        %v2683 = vld [vmem:[%s871 + $0x44] sm:$0xf]
        %v2684 = vld [vmem:[%s871 + $0x48] sm:$0xf]
        %v2685 = vld [vmem:[%s871 + $0x4c] sm:$0xf]
        %v2686 = vld [vmem:[%s871 + $0x50] sm:$0xf]
        %v2687 = vld [vmem:[%s871 + $0x54] sm:$0xf]
        %v2688 = vld [vmem:[%s871 + $0x58] sm:$0xf]
        %v2689 = vld [vmem:[%s871 + $0x5c] sm:$0xf]
        %v2690 = vld [vmem:[%s871 + $0x60] sm:$0xf]
        %v2691 = vld [vmem:[%s871 + $0x64] sm:$0xf]
        %v2692 = vld [vmem:[%s871 + $0x68] sm:$0xf]
        %v2693 = vld [vmem:[%s871 + $0x6c] sm:$0xf]
        %v2694 = vld [vmem:[%s871 + $0x70] sm:$0xf]
        %v2695 = vld [vmem:[%s871 + $0x74] sm:$0xf]
        %v2696 = vld [vmem:[%s871 + $0x78] sm:$0xf]
        %v2697 = vld [vmem:[%s871 + $0x7c] sm:$0xf]
        %v2698 = vld [vmem:[%s871 + $0x80] sm:$0xf]
        %v2699 = vld [vmem:[%s871 + $0x84] sm:$0xf]
        %v2700 = vld [vmem:[%s871 + $0x88] sm:$0xf]
        %v2701 = vld [vmem:[%s871 + $0x8c] sm:$0xf]
        %v2702 = vld [vmem:[%s871 + $0x90] sm:$0xf]
        %v2703 = vld [vmem:[%s871 + $0x94] sm:$0xf]
        %v2704 = vld [vmem:[%s871 + $0x98] sm:$0xf]
        %v2705 = vld [vmem:[%s871 + $0x9c] sm:$0xf]
        %v2706 = vld [vmem:[%s871 + $0xa0] sm:$0xf]
        %v2707 = vld [vmem:[%s871 + $0xa4] sm:$0xf]
        %v2708 = vld [vmem:[%s871 + $0xa8] sm:$0xf]
        %v2709 = vld [vmem:[%s871 + $0xac] sm:$0xf]
        %v2710 = vld [vmem:[%s871 + $0xb0] sm:$0xf]
        %v2711 = vld [vmem:[%s871 + $0xb4] sm:$0xf]
        %v2712 = vld [vmem:[%s871 + $0xb8] sm:$0xf]
        %v2713 = vld [vmem:[%s871 + $0xbc] sm:$0xf]
        %v2714 = vld [vmem:[%s871 + $0xc0] sm:$0xf]
        %v2715 = vld [vmem:[%s871 + $0xc4] sm:$0xf]
        %v2716 = vld [vmem:[%s871 + $0xc8] sm:$0xf]
        %v2717 = vld [vmem:[%s871 + $0xcc] sm:$0xf]
        %v2718 = vld [vmem:[%s871 + $0xd0] sm:$0xf]
        %v2719 = vld [vmem:[%s871 + $0xd4] sm:$0xf]
        %v2720 = vld [vmem:[%s871 + $0xd8] sm:$0xf]
        %v2721 = vld [vmem:[%s871 + $0xdc] sm:$0xf]
        %v2722 = vld [vmem:[%s871 + $0xe0] sm:$0xf]
        %v2723 = vld [vmem:[%s871 + $0xe4] sm:$0xf]
        %v2724 = vld [vmem:[%s871 + $0xe8] sm:$0xf]
        %v2725 = vld [vmem:[%s871 + $0xec] sm:$0xf]
        %v2726 = vld [vmem:[%s871 + $0xf0] sm:$0xf]
        %v2727 = vld [vmem:[%s871 + $0xf4] sm:$0xf]
        %v2728 = vld [vmem:[%s871 + $0xf8] sm:$0xf]
        %v2729 = vld [vmem:[%s871 + $0xfc] sm:$0xf]
        %v2730 = vld [vmem:[%s879] sm:$0x1]
        %v2732 = vlaneseq
        %v2733 = vshrl.u32 %v2732, 7
        %v2734 = vsub.s32 0, %v2733
        %v2735 = vrot.slane %v2730, %v2734
        %v2801 = vunpack.c.l.b16 %v2666
        %v2802 = vunpack.c.l.b16 %v2667
        %v2803 = vunpack.c.l.b16 %v2668
        %v2804 = vunpack.c.l.b16 %v2669
        %v2805 = vunpack.c.l.b16 %v2670
        %v2806 = vunpack.c.l.b16 %v2671
        %v2807 = vunpack.c.l.b16 %v2672
        %v2808 = vunpack.c.l.b16 %v2673
        %v2809 = vunpack.c.l.b16 %v2674
        %v2810 = vunpack.c.l.b16 %v2675
        %v2811 = vunpack.c.l.b16 %v2676
        %v2812 = vunpack.c.l.b16 %v2677
        %v2813 = vunpack.c.l.b16 %v2678
        %v2814 = vunpack.c.l.b16 %v2679
        %v2815 = vunpack.c.l.b16 %v2680
        %v2816 = vunpack.c.l.b16 %v2681
        %v2817 = vunpack.c.l.b16 %v2682
        %v2818 = vunpack.c.l.b16 %v2683
        %v2819 = vunpack.c.l.b16 %v2684
        %v2820 = vunpack.c.l.b16 %v2685
        %v2821 = vunpack.c.l.b16 %v2686
        %v2822 = vunpack.c.l.b16 %v2687
        %v2823 = vunpack.c.l.b16 %v2688
        %v2824 = vunpack.c.l.b16 %v2689
        %v2825 = vunpack.c.l.b16 %v2690
        %v2826 = vunpack.c.l.b16 %v2691
        %v2827 = vunpack.c.l.b16 %v2692
        %v2828 = vunpack.c.l.b16 %v2693
        %v2829 = vunpack.c.l.b16 %v2694
        %v2830 = vunpack.c.l.b16 %v2695
        %v2831 = vunpack.c.l.b16 %v2696
        %v2832 = vunpack.c.l.b16 %v2697
        %v2833 = vunpack.c.l.b16 %v2698
        %v2834 = vunpack.c.l.b16 %v2699
        %v2835 = vunpack.c.l.b16 %v2700
        %v2836 = vunpack.c.l.b16 %v2701
        %v2837 = vunpack.c.l.b16 %v2702
        %v2838 = vunpack.c.l.b16 %v2703
        %v2839 = vunpack.c.l.b16 %v2704
        %v2840 = vunpack.c.l.b16 %v2705
        %v2841 = vunpack.c.l.b16 %v2706
        %v2842 = vunpack.c.l.b16 %v2707
        %v2843 = vunpack.c.l.b16 %v2708
        %v2844 = vunpack.c.l.b16 %v2709
        %v2845 = vunpack.c.l.b16 %v2710
        %v2846 = vunpack.c.l.b16 %v2711
        %v2847 = vunpack.c.l.b16 %v2712
        %v2848 = vunpack.c.l.b16 %v2713
        %v2849 = vunpack.c.l.b16 %v2714
        %v2850 = vunpack.c.l.b16 %v2715
        %v2851 = vunpack.c.l.b16 %v2716
        %v2852 = vunpack.c.l.b16 %v2717
        %v2853 = vunpack.c.l.b16 %v2718
        %v2854 = vunpack.c.l.b16 %v2719
        %v2855 = vunpack.c.l.b16 %v2720
        %v2856 = vunpack.c.l.b16 %v2721
        %v2857 = vunpack.c.l.b16 %v2722
        %v2858 = vunpack.c.l.b16 %v2723
        %v2859 = vunpack.c.l.b16 %v2724
        %v2860 = vunpack.c.l.b16 %v2725
        %v2861 = vunpack.c.l.b16 %v2726
        %v2862 = vunpack.c.l.b16 %v2727
        %v2863 = vunpack.c.l.b16 %v2728
        %v2864 = vunpack.c.l.b16 %v2729
        %v2865 = vpack.c.b16 %v2802, %v2801
        %v2866 = vpack.c.b16 %v2804, %v2803
        %v2867 = vpack.c.b16 %v2806, %v2805
        %v2868 = vpack.c.b16 %v2808, %v2807
        %v2869 = vpack.c.b16 %v2810, %v2809
        %v2870 = vpack.c.b16 %v2812, %v2811
        %v2871 = vpack.c.b16 %v2814, %v2813
        %v2872 = vpack.c.b16 %v2816, %v2815
        %v2873 = vpack.c.b16 %v2818, %v2817
        %v2874 = vpack.c.b16 %v2820, %v2819
        %v2875 = vpack.c.b16 %v2822, %v2821
        %v2876 = vpack.c.b16 %v2824, %v2823
        %v2877 = vpack.c.b16 %v2826, %v2825
        %v2878 = vpack.c.b16 %v2828, %v2827
        %v2879 = vpack.c.b16 %v2830, %v2829
        %v2880 = vpack.c.b16 %v2832, %v2831
        %v2881 = vpack.c.b16 %v2834, %v2833
        %v2882 = vpack.c.b16 %v2836, %v2835
        %v2883 = vpack.c.b16 %v2838, %v2837
        %v2884 = vpack.c.b16 %v2840, %v2839
        %v2885 = vpack.c.b16 %v2842, %v2841
        %v2886 = vpack.c.b16 %v2844, %v2843
        %v2887 = vpack.c.b16 %v2846, %v2845
        %v2888 = vpack.c.b16 %v2848, %v2847
        %v2889 = vpack.c.b16 %v2850, %v2849
        %v2890 = vpack.c.b16 %v2852, %v2851
        %v2891 = vpack.c.b16 %v2854, %v2853
        %v2892 = vpack.c.b16 %v2856, %v2855
        %v2893 = vpack.c.b16 %v2858, %v2857
        %v2894 = vpack.c.b16 %v2860, %v2859
        %v2895 = vpack.c.b16 %v2862, %v2861
        %v2896 = vpack.c.b16 %v2864, %v2863
        %2929 = vmatprep.subr.bf16.mxu0 0
        %2930 = vmatpush1.bf16.msra.mxu0 %v2865
        %2931 = vmatprep.subr.bf16.mxu0 0
        %2932 = vmatpush1.bf16.msra.mxu0 %v2866
        %2933 = vmatprep.subr.bf16.mxu0 0
        %2934 = vmatpush1.bf16.msra.mxu0 %v2867
        %2935 = vmatprep.subr.bf16.mxu0 0
        %2936 = vmatpush1.bf16.msra.mxu0 %v2868
        %2937 = vmatprep.subr.bf16.mxu0 0
        %2938 = vmatpush1.bf16.msra.mxu0 %v2869
        %2939 = vmatprep.subr.bf16.mxu0 0
        %2940 = vmatpush1.bf16.msra.mxu0 %v2870
        %2941 = vmatprep.subr.bf16.mxu0 0
        %2942 = vmatpush1.bf16.msra.mxu0 %v2871
        %2943 = vmatprep.subr.bf16.mxu0 0
        %2944 = vmatpush1.bf16.msra.mxu0 %v2872
        %2945 = vmatprep.subr.bf16.mxu0 0
        %2946 = vmatpush1.bf16.msra.mxu0 %v2873
        %2947 = vmatprep.subr.bf16.mxu0 0
        %2948 = vmatpush1.bf16.msra.mxu0 %v2874
        %2949 = vmatprep.subr.bf16.mxu0 0
        %2950 = vmatpush1.bf16.msra.mxu0 %v2875
        %2951 = vmatprep.subr.bf16.mxu0 0
        %2952 = vmatpush1.bf16.msra.mxu0 %v2876
        %2953 = vmatprep.subr.bf16.mxu0 0
        %2954 = vmatpush1.bf16.msra.mxu0 %v2877
        %2955 = vmatprep.subr.bf16.mxu0 0
        %2956 = vmatpush1.bf16.msra.mxu0 %v2878
        %2957 = vmatprep.subr.bf16.mxu0 0
        %2958 = vmatpush1.bf16.msra.mxu0 %v2879
        %2959 = vmatprep.subr.bf16.mxu0 0
        %2960 = vmatpush1.bf16.msra.mxu0 %v2880
        %2961 = vmatprep.mubr.bf16.mxu0 %v2659
        %2962 = vmatmul.mubr.bf16.gmra.mrb[0].mxu0 %v2658
        %v2963 = vpop.f32.mrb[0].mxu0
        %v2964 = vadd.f32 %v2735, %v2963
        %v2965 = vpop.f32.mrb[0].mxu0
        %v2966 = vpop.f32.mrb[0].mxu0
        %v2967 = vadd.f32 %v2735, %v2966
        %v2968 = vpop.f32.mrb[0].mxu0
        %2969 = vmatprep.mubr.bf16.mxu0 %v2663
        %2970 = vmatmul.mubr.bf16.gmra.mrb[0].mxu0 %v2662
        %v2971 = vpop.f32.mrb[0].mxu0
        %v2972 = vadd.f32 %v2735, %v2971
        %v2973 = vpop.f32.mrb[0].mxu0
        %v2974 = vpop.f32.mrb[0].mxu0
        %v2975 = vadd.f32 %v2735, %v2974
        %v2976 = vpop.f32.mrb[0].mxu0
        %2977 = vdwg.mxu0
        %2978 = vmatprep.subr.bf16.mxu0 0
        %2979 = vmatpush1.bf16.msra.mxu0 %v2881
        %2980 = vmatprep.subr.bf16.mxu0 0
        %2981 = vmatpush1.bf16.msra.mxu0 %v2882
        %2982 = vmatprep.subr.bf16.mxu0 0
        %2983 = vmatpush1.bf16.msra.mxu0 %v2883
        %2984 = vmatprep.subr.bf16.mxu0 0
        %2985 = vmatpush1.bf16.msra.mxu0 %v2884
        %2986 = vmatprep.subr.bf16.mxu0 0
        %2987 = vmatpush1.bf16.msra.mxu0 %v2885
        %2988 = vmatprep.subr.bf16.mxu0 0
        %2989 = vmatpush1.bf16.msra.mxu0 %v2886
        %2990 = vmatprep.subr.bf16.mxu0 0
        %2991 = vmatpush1.bf16.msra.mxu0 %v2887
        %2992 = vmatprep.subr.bf16.mxu0 0
        %2993 = vmatpush1.bf16.msra.mxu0 %v2888
        %2994 = vmatprep.subr.bf16.mxu0 0
        %2995 = vmatpush1.bf16.msra.mxu0 %v2889
        %2996 = vmatprep.subr.bf16.mxu0 0
        %2997 = vmatpush1.bf16.msra.mxu0 %v2890
        %2998 = vmatprep.subr.bf16.mxu0 0
        %2999 = vmatpush1.bf16.msra.mxu0 %v2891
        %3000 = vmatprep.subr.bf16.mxu0 0
        %3001 = vmatpush1.bf16.msra.mxu0 %v2892
        %3002 = vmatprep.subr.bf16.mxu0 0
        %3003 = vmatpush1.bf16.msra.mxu0 %v2893
        %3004 = vmatprep.subr.bf16.mxu0 0
        %3005 = vmatpush1.bf16.msra.mxu0 %v2894
        %3006 = vmatprep.subr.bf16.mxu0 0
        %3007 = vmatpush1.bf16.msra.mxu0 %v2895
        %3008 = vmatprep.subr.bf16.mxu0 0
        %3009 = vmatpush1.bf16.msra.mxu0 %v2896
        %3010 = vmatprep.mubr.bf16.mxu0 %v2661
        %3011 = vmatmul.mubr.bf16.gmra.mrb[0].mxu0 %v2660
        %v3012 = vpop.f32.mrb[0].mxu0
        %v3013 = vadd.f32 %v2964, %v3012
        %v3014 = vpop.f32.mrb[0].mxu0
        %v3015 = vpop.f32.mrb[0].mxu0
        %v3016 = vadd.f32 %v2967, %v3015
        %v3017 = vpop.f32.mrb[0].mxu0
        %3018 = vmatprep.mubr.bf16.mxu0 %v2665
        %3019 = vmatmul.mubr.bf16.gmra.mrb[0].mxu0 %v2664
        %v3020 = vpop.f32.mrb[0].mxu0
        %v3021 = vadd.f32 %v2972, %v3020
        %v3022 = vpop.f32.mrb[0].mxu0
        %v3023 = vpop.f32.mrb[0].mxu0
        %v3024 = vadd.f32 %v2975, %v3023
        %v3025 = vpop.f32.mrb[0].mxu0
        %3026 = vdwg.mxu0
        %v3027 = vadd.f32 %v2188, %v3013
        %v3028 = vadd.f32 %v2189, %v3016
        %v3029 = vadd.f32 %v2190, %v3021
        %v3030 = vadd.f32 %v2191, %v3024
        %v3031 = vld [vmem:[%s887] sm:$0x1]
        %v3032 = vld [vmem:[%s895] sm:$0x1]
        %3033 = vadd.xlane.f32.xlu0 %v3027
        %v3034 = vpop.xlane.xlu0 %3033
        %3035 = vadd.xlane.f32.xlu0 %v3028
        %v3036 = vpop.xlane.xlu0 %3035
        %3037 = vadd.xlane.f32.xlu0 %v3029
        %v3038 = vpop.xlane.xlu0 %3037
        %3039 = vadd.xlane.f32.xlu0 %v3030
        %v3040 = vpop.xlane.xlu0 %3039
        %v3041 = vmul.f32 %v3034, %v2123
        %v3042 = vmul.f32 %v3036, %v2123
        %v3043 = vmul.f32 %v3038, %v2123
        %v3044 = vmul.f32 %v3040, %v2123
        %v3045 = vmul.f32 %v3027, %v3027
        %v3046 = vmul.f32 %v3028, %v3028
        %v3047 = vmul.f32 %v3029, %v3029
        %v3048 = vmul.f32 %v3030, %v3030
        %3049 = vadd.xlane.f32.xlu0 %v3045
        %v3050 = vpop.xlane.xlu0 %3049
        %3051 = vadd.xlane.f32.xlu0 %v3046
        %v3052 = vpop.xlane.xlu0 %3051
        %3053 = vadd.xlane.f32.xlu0 %v3047
        %v3054 = vpop.xlane.xlu0 %3053
        %3055 = vadd.xlane.f32.xlu0 %v3048
        %v3056 = vpop.xlane.xlu0 %3055
        %v3057 = vmul.f32 %v3050, %v2123
        %v3058 = vmul.f32 %v3052, %v2123
        %v3059 = vmul.f32 %v3054, %v2123
        %v3060 = vmul.f32 %v3056, %v2123
        %v3061 = vmul.f32 %v3041, %v3041
        %v3062 = vmul.f32 %v3042, %v3042
        %v3063 = vmul.f32 %v3043, %v3043
        %v3064 = vmul.f32 %v3044, %v3044
        %v3065 = vsub.f32 %v3057, %v3061
        %v3066 = vsub.f32 %v3058, %v3062
        %v3067 = vsub.f32 %v3059, %v3063
        %v3068 = vsub.f32 %v3060, %v3064
        %v3069 = vmax.f32 %v3065, 0.0
        %v3070 = vmax.f32 %v3066, 0.0
        %v3071 = vmax.f32 %v3067, 0.0
        %v3072 = vmax.f32 %v3068, 0.0
        %v3073 = vsub.f32 %v3027, %v3041
        %v3074 = vsub.f32 %v3028, %v3042
        %v3075 = vsub.f32 %v3029, %v3043
        %v3076 = vsub.f32 %v3030, %v3044
        %v3077 = vadd.f32 %v3069, 1e-12
        %v3078 = vadd.f32 %v3070, 1e-12
        %v3079 = vadd.f32 %v3071, 1e-12
        %v3080 = vadd.f32 %v3072, 1e-12
        %v3081 = vrsqrt.pop %v3077
        %v3082 = vrsqrt.pop %v3078
        %v3083 = vrsqrt.pop %v3079
        %v3084 = vrsqrt.pop %v3080
        %v3085 = vmul.f32 %v3073, %v3081
        %v3086 = vmul.f32 %v3074, %v3082
        %v3087 = vmul.f32 %v3075, %v3083
        %v3088 = vmul.f32 %v3076, %v3084
        %v3090 = vlaneseq
        %v3091 = vshrl.u32 %v3090, 7
        %v3092 = vsub.s32 0, %v3091
        %v3093 = vrot.slane %v3031, %v3092
        %v3095 = vmul.f32 %v3085, %v3093
        %v3096 = vmul.f32 %v3086, %v3093
        %v3097 = vmul.f32 %v3087, %v3093
        %v3098 = vmul.f32 %v3088, %v3093
        %v3100 = vlaneseq
        %v3101 = vshrl.u32 %v3100, 7
        %v3102 = vsub.s32 0, %v3101
        %v3103 = vrot.slane %v3032, %v3102
        %v3105 = vadd.f32 %v3095, %v3103
        %v3106 = vadd.f32 %v3096, %v3103
        %v3107 = vadd.f32 %v3097, %v3103
        %v3108 = vadd.f32 %v3098, %v3103
        %3109 = vst [vmem:[#allocation2] sm:$0xff] %v3105
        %3110 = vst [vmem:[#allocation2 + $0x8] sm:$0xff] %v3106
        %3111 = vst [vmem:[#allocation2 + $0x10] sm:$0xff] %v3107
        %3112 = vst [vmem:[#allocation2 + $0x18] sm:$0xff] %v3108
        %p3113 = scmp.eq.s32.totalorder %s52, 1
        // Predicated region
        $region149: #{biomed_encoder_forward.1} parent=95 // pred_check
          %p3114 = pneg %p3113
        $region150: #{biomed_encoder_forward.1} parent=95 // pred_check_branch
          %3116 = sbr.rel (%p3114) target = $region152
        $region151: #{biomed_encoder_forward.1} parent=95 // pred_region
          %3117 = vst [vmem:[#allocation23] sm:$0x1] %v3105
          %3118 = vst [vmem:[#allocation23 + $0x1] sm:$0x1] %v3107
        $region152: #{biomed_encoder_forward.1} parent=95 // pred_fallthru
          _
        // Predicated region
        $region153: #{biomed_encoder_forward.1} parent=95 // pred_check
          %p3119 = pneg %p524
        $region154: #{biomed_encoder_forward.1} parent=95 // pred_check_branch
          %3121 = sbr.rel (%p3119) target = $region156
        $region155: #{biomed_encoder_forward.1} parent=95 // pred_region
          %s3123 = ssub.s32 32, 32
          %3124 = vsyncadd [#allocation5], %s3123
          %s3126 = sshll.u32 [#allocation23], 4
          %s3127 = int_to_ptr.vmem [resolvable:$true] %s3126
          %3129 = dma.vmem_to_hbm [thread:$0]  %s3127, 32, %s19, [#allocation5]
        $region156: #{biomed_encoder_forward.1} parent=95 // pred_fallthru
          _
        // Predicated region
        $region157: #{biomed_encoder_forward.1} parent=95 // pred_check
          %p3130 = pneg %p524
        $region158: #{biomed_encoder_forward.1} parent=95 // pred_check_branch
          %3132 = sbr.rel (%p3130) target = $region160
        $region159: #{biomed_encoder_forward.1} parent=95 // pred_region
          %3133 = dma.done [#allocation5], 32
        $region160: #{biomed_encoder_forward.1} parent=95 // pred_fallthru
          _
      $region96: #{biomed_encoder_forward.1} parent=5 // pred_fallthru
        _
      %p3134 = scmp.le.s32.totalorder 2, %s47
      // Predicated region
      $region161: #{biomed_encoder_forward.1} parent=5 // pred_check
        %p3135 = pneg %p3134
      $region162: #{biomed_encoder_forward.1} parent=5 // pred_check_branch
        %3137 = sbr.rel (%p3135) target = $region164
      $region163: #{biomed_encoder_forward.1} parent=5 // pred_region
        %s3138 = ssub.s32 %s47, 2
      $region164: #{biomed_encoder_forward.1} parent=5 // pred_fallthru
        _
    $region6: #{biomed_encoder_forward.1} parent=1 // loop_footer
      %s51 = sadd.s32 1, %s47
    $region7: #{biomed_encoder_forward.1} parent=1 // loop_footer_branch
      %46 = sbr.rel target = $region3
    $region8: #{biomed_encoder_forward.1} parent=1 // loop_exit
      _
    %3139 = vsyncpa [#allocation4], 1
    %s3140 = scalar_lea.sflag [#allocation4], 1
    %3141 = vsyncpa %s3140, 1
    %3142 = vsyncpa [#allocation7], 1
    %s3143 = scalar_lea.sflag [#allocation7], 1
    %3144 = vsyncpa %s3143, 1
    %3145 = vsyncpa [#allocation10], 1
    %s3146 = scalar_lea.sflag [#allocation10], 1
    %3147 = vsyncpa %s3146, 1
    %3148 = vsyncpa [#allocation13], 1
    %s3149 = scalar_lea.sflag [#allocation13], 1
    %3150 = vsyncpa %s3149, 1
    %3151 = vsyncpa [#allocation16], 1
    %s3152 = scalar_lea.sflag [#allocation16], 1
    %3153 = vsyncpa %s3152, 1
    %3154 = vsyncpa [#allocation19], 1
    %s3155 = scalar_lea.sflag [#allocation19], 1
    %3156 = vsyncpa %s3155, 1
    %3157 = vsyncpa [#allocation22], 1
    %s3158 = scalar_lea.sflag [#allocation22], 1
    %3159 = vsyncpa %s3158, 1
    %3160 = vsyncpa [#allocation5], 1
    %s3161 = scalar_lea.sflag [#allocation5], 1
    %3162 = vsyncpa %s3161, 1

</llo_original>
